<compile_context>
chip_gen: v7x
topology: tpu7x:2x2x1
jax: 0.10.0
libtpu: 0.0.40
codegen_flags: <defaults>
</compile_context>

<pallas_src>
import jax
import jax.numpy as jnp
from jax import lax
from jax.experimental import pallas as pl
from jax.experimental.pallas import tpu as pltpu


def _round_up(x, m):
    return ((x + m - 1) // m) * m


# ---------------------------------------------------------------------------
# Fused Pallas kernel
# ---------------------------------------------------------------------------
def _build_kernel(*, n_phases, bn, r, out_w, cin, cm, co, cp, rp, pad_lo,
                  taps, has_short):
    """Fused Bottleneck kernel for one batch block (bn images) per grid step.

    n_phases : 1 (stride 1) or 4 (stride 2 -- the four spatial phases of x)
    bn, r    : images per grid step, flattened output positions per image
    out_w    : output width (columns), used for the boundary masks
    cp       : bottleneck width cm zero-padded to a multiple of 128 lanes
    rp       : rows per phase region in the scratch (pad_lo + bn*r [+ pad_hi])
    taps     : 9 tuples (input phase, row offset, boundary-mask names)
    """
    bnr = bn * r
    f32 = jnp.float32
    bf16 = jnp.bfloat16

    def kernel(*refs):
        if has_short:
            (x_ref, w1_ref, w2_ref, w3_ref, ws_ref, b_ref, o_ref, y1s_ref) = refs
        else:
            (x_ref, w1_ref, w2_ref, w3_ref, b_ref, o_ref, y1s_ref) = refs
            ws_ref = None

        # conv1 (1x1) + folded BN1 + ReLU, one M=bn*r matmul per phase.  The
        # result (exact zeros in the padding lanes >= cm) goes straight into
        # the padded conv2 scratch; stores are (8,128)-aligned and unmasked.
        w1 = w1_ref[...]
        b1 = b_ref[0:1, :cp]
        for ph in range(n_phases):
            xp = (x_ref[...] if n_phases == 1 else x_ref[ph]).reshape(bnr, cin)
            y1 = jnp.dot(xp.astype(bf16), w1, preferred_element_type=f32)
            y1 = jnp.maximum(y1 + b1, 0.0)
            base = ph * rp + pad_lo
            y1s_ref[base:base + bnr, :] = y1

        # Boundary masks generated in-kernel (no HBM mask input).  The per-image
        # output-row pattern repeats every r rows, so one iota covers the whole
        # batch block; the same masks also kill rows whose shifted window read
        # would bleed into a neighbouring image or the uninitialised pad rows.
        s_local = lax.broadcasted_iota(jnp.int32, (bnr, 1), 0) % r
        col = s_local % out_w
        conds = {
            "row0": s_local >= out_w,
            "row2": s_local < r - out_w,
            "col0": col != 0,
            "col2": col != out_w - 1,
        }

        # conv2 (3x3; stride folded into the phase decomposition) + BN2 + ReLU.
        # Each tap = one contiguous window read of the scratch + one K=cp MXU
        # matmul; the f32 accumulate chain is uninterrupted (v7x MRB friendly).
        acc = None
        for t, (ph_in, d, names) in enumerate(taps):
            start = ph_in * rp + pad_lo + d
            win = y1s_ref[start:start + bnr, :]
            mask = None
            for nm in names:
                c = conds[nm]
                mask = c if mask is None else jnp.logical_and(mask, c)
            if mask is not None:
                win = jnp.where(mask, win, 0.0)
            part = jnp.dot(win.astype(bf16), w2_ref[t], preferred_element_type=f32)
            acc = part if acc is None else acc + part
        y2 = jnp.maximum(acc + b_ref[1:2, :cm], 0.0)

        # conv3 (1x1) + BN3, shortcut branch, residual add + final ReLU.
        y3 = jnp.dot(y2.astype(bf16), w3_ref[...], preferred_element_type=f32)
        y3 = y3 + b_ref[2:3, :co]
        x0 = (x_ref[...] if n_phases == 1 else x_ref[0]).reshape(bnr, cin)
        if has_short:
            ident = jnp.dot(x0.astype(bf16), ws_ref[...], preferred_element_type=f32)
            ident = ident + b_ref[3:4, :co]
        else:
            ident = x0        # f32 identity (cin == co): no bf16 rounding on the residual
        out = jnp.maximum(y3 + ident, 0.0)
        o_ref[...] = out.reshape(bn, r, co).astype(o_ref.dtype)

    return kernel


# ---------------------------------------------------------------------------
# Glue (plain JAX): layout, phase decomposition, BN folding, parameter init
# ---------------------------------------------------------------------------
def _bn_fold(gamma, beta, mean, var, eps=1e-5):
    scale = gamma / jnp.sqrt(var + eps)
    bias = beta - mean * scale
    return scale, bias


def init_params(key, in_channels, out_channels):
    channels = out_channels // 4
    keys = jax.random.split(key, 16)

    def bn(k, c):
        k1, k2, k3, k4 = jax.random.split(k, 4)
        gamma = 1.0 + 0.1 * jax.random.normal(k1, (c,), jnp.float32)
        beta = 0.1 * jax.random.normal(k2, (c,), jnp.float32)
        mean = 0.1 * jax.random.normal(k3, (c,), jnp.float32)
        var = 1.0 + 0.1 * jax.random.uniform(k4, (c,), jnp.float32)
        return gamma, beta, mean, var

    return {
        # HWIO weights
        "w1": 0.1 * jax.random.normal(keys[0], (1, 1, in_channels, channels), jnp.float32),
        "w2": 0.1 * jax.random.normal(keys[1], (3, 3, channels, channels), jnp.float32),
        "w3": 0.1 * jax.random.normal(keys[2], (1, 1, channels, out_channels), jnp.float32),
        "ws": 0.1 * jax.random.normal(keys[3], (1, 1, in_channels, out_channels), jnp.float32),
        "bn1": bn(keys[4], channels),
        "bn2": bn(keys[5], channels),
        "bn3": bn(keys[6], out_channels),
        "bns": bn(keys[7], out_channels),
    }


def _pick_batch_block(n, r, n_phases, cin, co, cp, want):
    """Largest divisor of n that is <= `want` and keeps the per-step VMEM
    footprint well inside every generation's scoped limit (v7x is smallest)."""
    budget = 12 * 2 ** 20

    def footprint(b):
        rows = b * r
        scratch = n_phases * (rows + 64) * cp * 4                      # f32 scratch
        x_in = 2 * n_phases * rows * _round_up(cin, 128) * 4           # dbl-buffered in
        o_out = 2 * rows * _round_up(co, 128) * 2                      # dbl-buffered out
        return scratch + x_in + o_out

    b = max(1, min(want, n))
    while n % b:
        b -= 1
    while b > 1 and footprint(b) > budget:
        b -= 1
        while n % b:
            b -= 1
    return b


def bottleneck_forward(x_nchw, params, stride, *, batch_block=8):
    """Fused Pallas implementation of Bottleneck.forward (eval-mode BN)."""
    # Boundary layout conversion only; a full network would stay NHWC.
    x = jnp.transpose(x_nchw, (0, 2, 3, 1)).astype(jnp.float32)   # NHWC
    n, h, w, cin = x.shape
    cm = params["w1"].shape[-1]           # bottleneck width (out_channels // 4)
    co = params["w3"].shape[-1]           # out_channels

    # Fold BN into per-output-channel scale (into the weights) + bias.
    s1, b1 = _bn_fold(*params["bn1"])
    s2, b2 = _bn_fold(*params["bn2"])
    s3, b3 = _bn_fold(*params["bn3"])

    cp = _round_up(cm, 128)               # lane-padded bottleneck width
    bw = _round_up(max(cm, co), 128)      # width of the packed bias array

    w1f = jnp.pad(params["w1"].reshape(cin, cm) * s1[None, :],
                  ((0, 0), (0, cp - cm))).astype(jnp.bfloat16)           # (cin, cp)
    w2f = jnp.pad(params["w2"] * s2[None, None, None, :],
                  ((0, 0), (0, 0), (0, cp - cm), (0, 0)))
    w2f = w2f.reshape(9, cp, cm).astype(jnp.bfloat16)                    # (9, cp, cm)
    w3f = (params["w3"].reshape(cm, co) * s3[None, :]).astype(jnp.bfloat16)

    has_short = stride != 1
    if has_short:
        ss, bs = _bn_fold(*params["bns"])
        wsf = (params["ws"].reshape(cin, co) * ss[None, :]).astype(jnp.bfloat16)
    else:
        assert cin == co, "stride==1 Bottleneck (Identity shortcut) needs cin == cout"
        wsf = None
        bs = jnp.zeros((co,), jnp.float32)

    bias = jnp.stack([
        jnp.pad(b1, (0, bw - cm)),
        jnp.pad(b2, (0, bw - cm)),
        jnp.pad(b3, (0, bw - co)),
        jnp.pad(bs, (0, bw - co)),
    ]).astype(jnp.float32)                                               # (4, bw)

    # ---- spatial phase decomposition (pure permutation of x, no duplication)
    if stride == 1:
        ho, wo = h, w
        r = ho * wo
        n_phases = 1
        xk = x.reshape(n, r, cin)
    elif stride == 2:
        assert h % 2 == 0 and w % 2 == 0, "stride-2 path assumes even H, W"
        ho, wo = h // 2, w // 2
        r = ho * wo
        n_phases = 4
        phases = [x[:, p::2, q::2, :].reshape(n, r, cin)
                  for p in (0, 1) for q in (0, 1)]
        xk = jnp.stack(phases, axis=0)                  # (4, n, r, cin), phase-major
    else:
        raise NotImplementedError("Bottleneck kernel supports stride 1 or 2 only")

    bn = _pick_batch_block(n, r, n_phases, cin, co, cp, batch_block)
    bnr = bn * r

    # conv2 tap table: (input phase, row offset in the scratch, mask names)
    taps = []
    if stride == 1:
        pad_lo = _round_up(wo + 1, 8)
        pad_hi = pad_lo
        for dh in range(3):
            for dw in range(3):
                d = (dh - 1) * wo + (dw - 1)
                names = []
                if dh == 0:
                    names.append("row0")
                if dh == 2:
                    names.append("row2")
                if dw == 0:
                    names.append("col0")
                if dw == 2:
                    names.append("col2")
                taps.append((0, d, tuple(names)))
    else:
        pad_lo = _round_up(wo + 1, 8)
        pad_hi = 0
        for dh in range(3):
            for dw in range(3):
                ph_in = 2 * ((dh - 1) % 2) + ((dw - 1) % 2)
                d = (-wo if dh == 0 else 0) + (-1 if dw == 0 else 0)
                names = []
                if dh == 0:
                    names.append("row0")
                if dw == 0:
                    names.append("col0")
                taps.append((ph_in, d, tuple(names)))
    rp = pad_lo + bnr + pad_hi

    kernel = _build_kernel(n_phases=n_phases, bn=bn, r=r, out_w=wo, cin=cin,
                           cm=cm, co=co, cp=cp, rp=rp, pad_lo=pad_lo,
                           taps=tuple(taps), has_short=has_short)

    if n_phases == 1:
        x_spec = pl.BlockSpec((bn, r, cin), lambda i: (i, 0, 0))
    else:
        x_spec = pl.BlockSpec((n_phases, bn, r, cin), lambda i: (0, i, 0, 0))

    in_specs = [x_spec,
                pl.BlockSpec((cin, cp), lambda i: (0, 0)),           # w1 (BN1 folded)
                pl.BlockSpec((9, cp, cm), lambda i: (0, 0, 0)),      # w2 (BN2 folded)
                pl.BlockSpec((cm, co), lambda i: (0, 0))]            # w3 (BN3 folded)
    args = [xk, w1f, w2f, w3f]
    if has_short:
        in_specs.append(pl.BlockSpec((cin, co), lambda i: (0, 0)))   # ws (BNs folded)
        args.append(wsf)
    in_specs.append(pl.BlockSpec((4, bw), lambda i: (0, 0)))         # packed biases
    args.append(bias)

    out = pl.pallas_call(
        kernel,
        out_shape=jax.ShapeDtypeStruct((n, r, co), jnp.bfloat16),
        grid_spec=pltpu.PrefetchScalarGridSpec(
            num_scalar_prefetch=0,
            grid=(n // bn,),
            in_specs=in_specs,
            out_specs=pl.BlockSpec((bn, r, co), lambda i: (i, 0, 0)),
            scratch_shapes=[pltpu.VMEM((n_phases * rp, cp), jnp.float32)],
        ),
        compiler_params=pltpu.CompilerParams(dimension_semantics=("parallel",)),
    )(*args)

    out = out.reshape(n, ho, wo, co)
    return jnp.transpose(out, (0, 3, 1, 2))  # back to NCHW (bf16) at the boundary


# ---------------------------------------------------------------------------
# Pure-JAX reference for verification
# ---------------------------------------------------------------------------
def bottleneck_reference(x_nchw, params, stride, eps=1e-5):
    x = jnp.transpose(x_nchw, (0, 2, 3, 1))

    def conv_bn(z, w, bn, strd, pad, relu):
        g, b, m, v = bn
        y = lax.conv_general_dilated(
            z, w, (strd, strd), pad, dimension_numbers=("NHWC", "HWIO", "NHWC"))
        y = (y - m) * (g / jnp.sqrt(v + eps)) + b
        return jnp.maximum(y, 0.0) if relu else y

    if stride != 1:
        identity = conv_bn(x, params["ws"], params["bns"], stride, "VALID", False)
    else:
        identity = x
    y = conv_bn(x, params["w1"], params["bn1"], 1, "VALID", True)
    y = conv_bn(y, params["w2"], params["bn2"], stride, [(1, 1), (1, 1)], True)
    y = conv_bn(y, params["w3"], params["bn3"], 1, "VALID", False)
    y = jnp.maximum(y + identity, 0.0)
    return jnp.transpose(y, (0, 3, 1, 2))


# ---------------------------------------------------------------------------
if __name__ == "__main__":
    key = jax.random.PRNGKey(0)
    kx, kp, kx2, kp2 = jax.random.split(key, 4)

    fwd = jax.jit(bottleneck_forward, static_argnums=(2,))

    # Config A: stride-2 downsampling block (1x1 shortcut conv), CIFAR-ish shapes.
    N, C_IN, H, W = 2, 16, 16, 16
    C_OUT, STRIDE = 32, 2
    x = jax.random.normal(kx, (N, C_IN, H, W), jnp.float32)   # NCHW like PyTorch
    params = init_params(kp, C_IN, C_OUT)

    out = jax.block_until_ready(fwd(x, params, STRIDE)).astype(jnp.float32)
    ref = jax.block_until_ready(bottleneck_reference(x, params, STRIDE))
    assert out.shape == ref.shape == (N, C_OUT, H // STRIDE, W // STRIDE)
    # bf16 MXU operands / bf16 output, f32 accumulation -> small numerical
    # difference vs the f32 reference.
    assert jnp.allclose(out, ref, atol=4e-2, rtol=4e-2), "stride-2 mismatch vs reference"

    # Config B: stride-1 block (identity shortcut), in_channels == out_channels.
    N2, C2, H2, W2 = 2, 32, 8, 8
    x2 = jax.random.normal(kx2, (N2, C2, H2, W2), jnp.float32)
    params2 = init_params(kp2, C2, C2)

    out2 = jax.block_until_ready(fwd(x2, params2, 1)).astype(jnp.float32)
    ref2 = jax.block_until_ready(bottleneck_reference(x2, params2, 1))
    assert out2.shape == ref2.shape == (N2, C2, H2, W2)
    assert jnp.allclose(out2, ref2, atol=4e-2, rtol=4e-2), "stride-1 mismatch vs reference"

    print("KERNEL_OK")
</pallas_src>

<mosaic_0001>
module attributes {stable_mosaic.version = 11 : i64} {
  func.func @kernel(%arg0: i32, %arg1: memref<4x2x64x16xf32, #tpu.memory_space<vmem>>, %arg2: memref<16x128xbf16, #tpu.memory_space<vmem>>, %arg3: memref<9x128x8xbf16, #tpu.memory_space<vmem>>, %arg4: memref<8x32xbf16, #tpu.memory_space<vmem>>, %arg5: memref<16x32xbf16, #tpu.memory_space<vmem>>, %arg6: memref<4x128xf32, #tpu.memory_space<vmem>>, %arg7: memref<2x64x32xbf16, #tpu.memory_space<vmem>>, %arg8: memref<576x128xf32, #tpu.memory_space<vmem>>) attributes {dimension_semantics = [#tpu.dimension_semantics<parallel>], iteration_bounds = array<i64: 1>, scalar_prefetch = 0 : i64, scratch_operands = 1 : i64, tpu.core_type = #tpu.core_type<tc>, window_params = [{transform_indices = @transform_0, window_bounds = array<i64: 4, 2, 64, 16>}, {pipeline_mode = #tpu.pipeline_mode<synchronous>, transform_indices = @transform_1, window_bounds = array<i64: 16, 128>}, {pipeline_mode = #tpu.pipeline_mode<synchronous>, transform_indices = @transform_2, window_bounds = array<i64: 9, 128, 8>}, {pipeline_mode = #tpu.pipeline_mode<synchronous>, transform_indices = @transform_3, window_bounds = array<i64: 8, 32>}, {pipeline_mode = #tpu.pipeline_mode<synchronous>, transform_indices = @transform_4, window_bounds = array<i64: 16, 32>}, {pipeline_mode = #tpu.pipeline_mode<synchronous>, transform_indices = @transform_5, window_bounds = array<i64: 4, 128>}, {transform_indices = @transform_6, window_bounds = array<i64: 2, 64, 32>}]} {
    %c0 = arith.constant 0 : index
    %c0_0 = arith.constant 0 : index
    %0 = vector.load %arg2[%c0, %c0_0] : memref<16x128xbf16, #tpu.memory_space<vmem>>, vector<16x128xbf16>
    %c0_1 = arith.constant 0 : index
    %c0_2 = arith.constant 0 : index
    %1 = vector.load %arg6[%c0_1, %c0_2] : memref<4x128xf32, #tpu.memory_space<vmem>>, vector<1x128xf32>
    %c0_3 = arith.constant 0 : index
    %c0_4 = arith.constant 0 : index
    %c0_5 = arith.constant 0 : index
    %c0_6 = arith.constant 0 : index
    %2 = vector.load %arg1[%c0_3, %c0_4, %c0_5, %c0_6] : memref<4x2x64x16xf32, #tpu.memory_space<vmem>>, vector<1x2x64x16xf32>
    %3 = vector.shape_cast %2 : vector<1x2x64x16xf32> to vector<2x64x16xf32>
    %4 = vector.shape_cast %3 : vector<2x64x16xf32> to vector<128x16xf32>
    %5 = arith.truncf %4 : vector<128x16xf32> to vector<128x16xbf16>
    %cst = arith.constant dense<0.000000e+00> : vector<128x128xf32>
    %6 = tpu.matmul %5, %0, %cst {dimension_numbers = #tpu.dot_dimension_numbers<[1], [0], [0], [1], [0, 0, 1, 1], [], []>} : vector<128x16xbf16>, vector<16x128xbf16>, vector<128x128xf32> -> vector<128x128xf32>
    %7 = vector.broadcast %1 : vector<1x128xf32> to vector<128x128xf32>
    %8 = arith.addf %6, %7 : vector<128x128xf32>
    %cst_7 = arith.constant 0.000000e+00 : f32
    %9 = vector.broadcast %cst_7 : f32 to vector<128x128xf32>
    %10 = arith.maximumf %8, %9 : vector<128x128xf32>
    %c16 = arith.constant 16 : index
    %c0_8 = arith.constant 0 : index
    %11 = vector.load %arg8[%c16, %c0_8] : memref<576x128xf32, #tpu.memory_space<vmem>>, vector<128x128xf32>
    tpu.vector_store %arg8[%c16, %c0_8], %10 {strides = array<i32>} : memref<576x128xf32, #tpu.memory_space<vmem>>, vector<128x128xf32>,
    %c1 = arith.constant 1 : index
    %c0_9 = arith.constant 0 : index
    %c0_10 = arith.constant 0 : index
    %c0_11 = arith.constant 0 : index
    %12 = vector.load %arg1[%c1, %c0_9, %c0_10, %c0_11] : memref<4x2x64x16xf32, #tpu.memory_space<vmem>>, vector<1x2x64x16xf32>
    %13 = vector.shape_cast %12 : vector<1x2x64x16xf32> to vector<2x64x16xf32>
    %14 = vector.shape_cast %13 : vector<2x64x16xf32> to vector<128x16xf32>
    %15 = arith.truncf %14 : vector<128x16xf32> to vector<128x16xbf16>
    %cst_12 = arith.constant dense<0.000000e+00> : vector<128x128xf32>
    %16 = tpu.matmul %15, %0, %cst_12 {dimension_numbers = #tpu.dot_dimension_numbers<[1], [0], [0], [1], [0, 0, 1, 1], [], []>} : vector<128x16xbf16>, vector<16x128xbf16>, vector<128x128xf32> -> vector<128x128xf32>
    %17 = vector.broadcast %1 : vector<1x128xf32> to vector<128x128xf32>
    %18 = arith.addf %16, %17 : vector<128x128xf32>
    %cst_13 = arith.constant 0.000000e+00 : f32
    %19 = vector.broadcast %cst_13 : f32 to vector<128x128xf32>
    %20 = arith.maximumf %18, %19 : vector<128x128xf32>
    %c160 = arith.constant 160 : index
    %c0_14 = arith.constant 0 : index
    %21 = vector.load %arg8[%c160, %c0_14] : memref<576x128xf32, #tpu.memory_space<vmem>>, vector<128x128xf32>
    tpu.vector_store %arg8[%c160, %c0_14], %20 {strides = array<i32>} : memref<576x128xf32, #tpu.memory_space<vmem>>, vector<128x128xf32>,
    %c2 = arith.constant 2 : index
    %c0_15 = arith.constant 0 : index
    %c0_16 = arith.constant 0 : index
    %c0_17 = arith.constant 0 : index
    %22 = vector.load %arg1[%c2, %c0_15, %c0_16, %c0_17] : memref<4x2x64x16xf32, #tpu.memory_space<vmem>>, vector<1x2x64x16xf32>
    %23 = vector.shape_cast %22 : vector<1x2x64x16xf32> to vector<2x64x16xf32>
    %24 = vector.shape_cast %23 : vector<2x64x16xf32> to vector<128x16xf32>
    %25 = arith.truncf %24 : vector<128x16xf32> to vector<128x16xbf16>
    %cst_18 = arith.constant dense<0.000000e+00> : vector<128x128xf32>
    %26 = tpu.matmul %25, %0, %cst_18 {dimension_numbers = #tpu.dot_dimension_numbers<[1], [0], [0], [1], [0, 0, 1, 1], [], []>} : vector<128x16xbf16>, vector<16x128xbf16>, vector<128x128xf32> -> vector<128x128xf32>
    %27 = vector.broadcast %1 : vector<1x128xf32> to vector<128x128xf32>
    %28 = arith.addf %26, %27 : vector<128x128xf32>
    %cst_19 = arith.constant 0.000000e+00 : f32
    %29 = vector.broadcast %cst_19 : f32 to vector<128x128xf32>
    %30 = arith.maximumf %28, %29 : vector<128x128xf32>
    %c304 = arith.constant 304 : index
    %c0_20 = arith.constant 0 : index
    %31 = vector.load %arg8[%c304, %c0_20] : memref<576x128xf32, #tpu.memory_space<vmem>>, vector<128x128xf32>
    tpu.vector_store %arg8[%c304, %c0_20], %30 {strides = array<i32>} : memref<576x128xf32, #tpu.memory_space<vmem>>, vector<128x128xf32>,
    %c3 = arith.constant 3 : index
    %c0_21 = arith.constant 0 : index
    %c0_22 = arith.constant 0 : index
    %c0_23 = arith.constant 0 : index
    %32 = vector.load %arg1[%c3, %c0_21, %c0_22, %c0_23] : memref<4x2x64x16xf32, #tpu.memory_space<vmem>>, vector<1x2x64x16xf32>
    %33 = vector.shape_cast %32 : vector<1x2x64x16xf32> to vector<2x64x16xf32>
    %34 = vector.shape_cast %33 : vector<2x64x16xf32> to vector<128x16xf32>
    %35 = arith.truncf %34 : vector<128x16xf32> to vector<128x16xbf16>
    %cst_24 = arith.constant dense<0.000000e+00> : vector<128x128xf32>
    %36 = tpu.matmul %35, %0, %cst_24 {dimension_numbers = #tpu.dot_dimension_numbers<[1], [0], [0], [1], [0, 0, 1, 1], [], []>} : vector<128x16xbf16>, vector<16x128xbf16>, vector<128x128xf32> -> vector<128x128xf32>
    %37 = vector.broadcast %1 : vector<1x128xf32> to vector<128x128xf32>
    %38 = arith.addf %36, %37 : vector<128x128xf32>
    %cst_25 = arith.constant 0.000000e+00 : f32
    %39 = vector.broadcast %cst_25 : f32 to vector<128x128xf32>
    %40 = arith.maximumf %38, %39 : vector<128x128xf32>
    %c448 = arith.constant 448 : index
    %c0_26 = arith.constant 0 : index
    %41 = vector.load %arg8[%c448, %c0_26] : memref<576x128xf32, #tpu.memory_space<vmem>>, vector<128x128xf32>
    tpu.vector_store %arg8[%c448, %c0_26], %40 {strides = array<i32>} : memref<576x128xf32, #tpu.memory_space<vmem>>, vector<128x128xf32>,
    %42 = tpu.iota {dimensions = array<i32: 0>} : vector<128x1xi32>
    %c64_i32 = arith.constant 64 : i32
    %c0_i32 = arith.constant 0 : i32
    %43 = arith.cmpi eq, %c64_i32, %c0_i32 : i32
    %c1_i32 = arith.constant 1 : i32
    %44 = arith.select %43, %c1_i32, %c64_i32 : i32
    %45 = vector.broadcast %44 : i32 to vector<128x1xi32>
    %46 = arith.remsi %42, %45 : vector<128x1xi32>
    %c0_i32_27 = arith.constant 0 : i32
    %47 = vector.broadcast %c0_i32_27 : i32 to vector<128x1xi32>
    %48 = arith.cmpi ne, %46, %47 : vector<128x1xi32>
    %c0_i32_28 = arith.constant 0 : i32
    %49 = vector.broadcast %c0_i32_28 : i32 to vector<128x1xi32>
    %50 = arith.cmpi slt, %46, %49 : vector<128x1xi32>
    %c0_i32_29 = arith.constant 0 : i32
    %51 = arith.cmpi slt, %44, %c0_i32_29 : i32
    %52 = vector.broadcast %51 : i1 to vector<128x1xi1>
    %53 = vector.broadcast %52 : vector<128x1xi1> to vector<128x1xi1>
    %54 = arith.xori %50, %53 : vector<128x1xi1>
    %55 = arith.andi %54, %48 : vector<128x1xi1>
    %56 = vector.broadcast %44 : i32 to vector<128x1xi32>
    %57 = arith.addi %46, %56 : vector<128x1xi32>
    %58 = arith.select %55, %57, %46 : vector<128x1xi1>, vector<128x1xi32>
    %c8_i32 = arith.constant 8 : i32
    %c0_i32_30 = arith.constant 0 : i32
    %59 = arith.cmpi eq, %c8_i32, %c0_i32_30 : i32
    %c1_i32_31 = arith.constant 1 : i32
    %60 = arith.select %59, %c1_i32_31, %c8_i32 : i32
    %61 = vector.broadcast %60 : i32 to vector<128x1xi32>
    %62 = arith.remsi %58, %61 : vector<128x1xi32>
    %c0_i32_32 = arith.constant 0 : i32
    %63 = vector.broadcast %c0_i32_32 : i32 to vector<128x1xi32>
    %64 = arith.cmpi ne, %62, %63 : vector<128x1xi32>
    %c0_i32_33 = arith.constant 0 : i32
    %65 = vector.broadcast %c0_i32_33 : i32 to vector<128x1xi32>
    %66 = arith.cmpi slt, %62, %65 : vector<128x1xi32>
    %c0_i32_34 = arith.constant 0 : i32
    %67 = arith.cmpi slt, %60, %c0_i32_34 : i32
    %68 = vector.broadcast %67 : i1 to vector<128x1xi1>
    %69 = vector.broadcast %68 : vector<128x1xi1> to vector<128x1xi1>
    %70 = arith.xori %66, %69 : vector<128x1xi1>
    %71 = arith.andi %70, %64 : vector<128x1xi1>
    %72 = vector.broadcast %60 : i32 to vector<128x1xi32>
    %73 = arith.addi %62, %72 : vector<128x1xi32>
    %74 = arith.select %71, %73, %62 : vector<128x1xi1>, vector<128x1xi32>
    %c8_i32_35 = arith.constant 8 : i32
    %75 = vector.broadcast %c8_i32_35 : i32 to vector<128x1xi32>
    %76 = arith.cmpi sge, %58, %75 : vector<128x1xi32>
    %c0_i32_36 = arith.constant 0 : i32
    %77 = vector.broadcast %c0_i32_36 : i32 to vector<128x1xi32>
    %78 = arith.cmpi ne, %74, %77 : vector<128x1xi32>
    %c439 = arith.constant 439 : index
    %c0_37 = arith.constant 0 : index
    %79 = vector.load %arg8[%c439, %c0_37] : memref<576x128xf32, #tpu.memory_space<vmem>>, vector<128x128xf32>
    %80 = arith.andi %76, %78 : vector<128x1xi1>
    %cst_38 = arith.constant 0.000000e+00 : f32
    %81 = vector.shape_cast %80 : vector<128x1xi1> to vector<128x1xi1>
    %82 = vector.broadcast %81 : vector<128x1xi1> to vector<128x128xi1>
    %83 = vector.broadcast %cst_38 : f32 to vector<128x128xf32>
    %84 = arith.select %82, %79, %83 : vector<128x128xi1>, vector<128x128xf32>
    %85 = arith.truncf %84 : vector<128x128xf32> to vector<128x128xbf16>
    %c0_39 = arith.constant 0 : index
    %c0_40 = arith.constant 0 : index
    %c0_41 = arith.constant 0 : index
    %86 = vector.load %arg3[%c0_39, %c0_40, %c0_41] : memref<9x128x8xbf16, #tpu.memory_space<vmem>>, vector<1x128x8xbf16>
    %87 = vector.shape_cast %86 : vector<1x128x8xbf16> to vector<128x8xbf16>
    %cst_42 = arith.constant dense<0.000000e+00> : vector<128x8xf32>
    %88 = tpu.matmul %85, %87, %cst_42 {dimension_numbers = #tpu.dot_dimension_numbers<[1], [0], [0], [1], [0, 0, 1, 1], [], []>} : vector<128x128xbf16>, vector<128x8xbf16>, vector<128x8xf32> -> vector<128x8xf32>
    %c296 = arith.constant 296 : index
    %c0_43 = arith.constant 0 : index
    %89 = vector.load %arg8[%c296, %c0_43] : memref<576x128xf32, #tpu.memory_space<vmem>>, vector<128x128xf32>
    %cst_44 = arith.constant 0.000000e+00 : f32
    %90 = vector.shape_cast %76 : vector<128x1xi1> to vector<128x1xi1>
    %91 = vector.broadcast %90 : vector<128x1xi1> to vector<128x128xi1>
    %92 = vector.broadcast %cst_44 : f32 to vector<128x128xf32>
    %93 = arith.select %91, %89, %92 : vector<128x128xi1>, vector<128x128xf32>
    %94 = arith.truncf %93 : vector<128x128xf32> to vector<128x128xbf16>
    %c1_45 = arith.constant 1 : index
    %c0_46 = arith.constant 0 : index
    %c0_47 = arith.constant 0 : index
    %95 = vector.load %arg3[%c1_45, %c0_46, %c0_47] : memref<9x128x8xbf16, #tpu.memory_space<vmem>>, vector<1x128x8xbf16>
    %96 = vector.shape_cast %95 : vector<1x128x8xbf16> to vector<128x8xbf16>
    %cst_48 = arith.constant dense<0.000000e+00> : vector<128x8xf32>
    %97 = tpu.matmul %94, %96, %cst_48 {dimension_numbers = #tpu.dot_dimension_numbers<[1], [0], [0], [1], [0, 0, 1, 1], [], []>} : vector<128x128xbf16>, vector<128x8xbf16>, vector<128x8xf32> -> vector<128x8xf32>
    %98 = arith.addf %88, %97 : vector<128x8xf32>
    %c440 = arith.constant 440 : index
    %c0_49 = arith.constant 0 : index
    %99 = vector.load %arg8[%c440, %c0_49] : memref<576x128xf32, #tpu.memory_space<vmem>>, vector<128x128xf32>
    %cst_50 = arith.constant 0.000000e+00 : f32
    %100 = vector.shape_cast %76 : vector<128x1xi1> to vector<128x1xi1>
    %101 = vector.broadcast %100 : vector<128x1xi1> to vector<128x128xi1>
    %102 = vector.broadcast %cst_50 : f32 to vector<128x128xf32>
    %103 = arith.select %101, %99, %102 : vector<128x128xi1>, vector<128x128xf32>
    %104 = arith.truncf %103 : vector<128x128xf32> to vector<128x128xbf16>
    %c2_51 = arith.constant 2 : index
    %c0_52 = arith.constant 0 : index
    %c0_53 = arith.constant 0 : index
    %105 = vector.load %arg3[%c2_51, %c0_52, %c0_53] : memref<9x128x8xbf16, #tpu.memory_space<vmem>>, vector<1x128x8xbf16>
    %106 = vector.shape_cast %105 : vector<1x128x8xbf16> to vector<128x8xbf16>
    %cst_54 = arith.constant dense<0.000000e+00> : vector<128x8xf32>
    %107 = tpu.matmul %104, %106, %cst_54 {dimension_numbers = #tpu.dot_dimension_numbers<[1], [0], [0], [1], [0, 0, 1, 1], [], []>} : vector<128x128xbf16>, vector<128x8xbf16>, vector<128x8xf32> -> vector<128x8xf32>
    %108 = arith.addf %98, %107 : vector<128x8xf32>
    %c159 = arith.constant 159 : index
    %c0_55 = arith.constant 0 : index
    %109 = vector.load %arg8[%c159, %c0_55] : memref<576x128xf32, #tpu.memory_space<vmem>>, vector<128x128xf32>
    %cst_56 = arith.constant 0.000000e+00 : f32
    %110 = vector.shape_cast %78 : vector<128x1xi1> to vector<128x1xi1>
    %111 = vector.broadcast %110 : vector<128x1xi1> to vector<128x128xi1>
    %112 = vector.broadcast %cst_56 : f32 to vector<128x128xf32>
    %113 = arith.select %111, %109, %112 : vector<128x128xi1>, vector<128x128xf32>
    %114 = arith.truncf %113 : vector<128x128xf32> to vector<128x128xbf16>
    %c3_57 = arith.constant 3 : index
    %c0_58 = arith.constant 0 : index
    %c0_59 = arith.constant 0 : index
    %115 = vector.load %arg3[%c3_57, %c0_58, %c0_59] : memref<9x128x8xbf16, #tpu.memory_space<vmem>>, vector<1x128x8xbf16>
    %116 = vector.shape_cast %115 : vector<1x128x8xbf16> to vector<128x8xbf16>
    %cst_60 = arith.constant dense<0.000000e+00> : vector<128x8xf32>
    %117 = tpu.matmul %114, %116, %cst_60 {dimension_numbers = #tpu.dot_dimension_numbers<[1], [0], [0], [1], [0, 0, 1, 1], [], []>} : vector<128x128xbf16>, vector<128x8xbf16>, vector<128x8xf32> -> vector<128x8xf32>
    %118 = arith.addf %108, %117 : vector<128x8xf32>
    %c16_61 = arith.constant 16 : index
    %c0_62 = arith.constant 0 : index
    %119 = vector.load %arg8[%c16_61, %c0_62] : memref<576x128xf32, #tpu.memory_space<vmem>>, vector<128x128xf32>
    %120 = arith.truncf %119 : vector<128x128xf32> to vector<128x128xbf16>
    %c4 = arith.constant 4 : index
    %c0_63 = arith.constant 0 : index
    %c0_64 = arith.constant 0 : index
    %121 = vector.load %arg3[%c4, %c0_63, %c0_64] : memref<9x128x8xbf16, #tpu.memory_space<vmem>>, vector<1x128x8xbf16>
    %122 = vector.shape_cast %121 : vector<1x128x8xbf16> to vector<128x8xbf16>
    %cst_65 = arith.constant dense<0.000000e+00> : vector<128x8xf32>
    %123 = tpu.matmul %120, %122, %cst_65 {dimension_numbers = #tpu.dot_dimension_numbers<[1], [0], [0], [1], [0, 0, 1, 1], [], []>} : vector<128x128xbf16>, vector<128x8xbf16>, vector<128x8xf32> -> vector<128x8xf32>
    %124 = arith.addf %118, %123 : vector<128x8xf32>
    %c160_66 = arith.constant 160 : index
    %c0_67 = arith.constant 0 : index
    %125 = vector.load %arg8[%c160_66, %c0_67] : memref<576x128xf32, #tpu.memory_space<vmem>>, vector<128x128xf32>
    %126 = arith.truncf %125 : vector<128x128xf32> to vector<128x128xbf16>
    %c5 = arith.constant 5 : index
    %c0_68 = arith.constant 0 : index
    %c0_69 = arith.constant 0 : index
    %127 = vector.load %arg3[%c5, %c0_68, %c0_69] : memref<9x128x8xbf16, #tpu.memory_space<vmem>>, vector<1x128x8xbf16>
    %128 = vector.shape_cast %127 : vector<1x128x8xbf16> to vector<128x8xbf16>
    %cst_70 = arith.constant dense<0.000000e+00> : vector<128x8xf32>
    %129 = tpu.matmul %126, %128, %cst_70 {dimension_numbers = #tpu.dot_dimension_numbers<[1], [0], [0], [1], [0, 0, 1, 1], [], []>} : vector<128x128xbf16>, vector<128x8xbf16>, vector<128x8xf32> -> vector<128x8xf32>
    %130 = arith.addf %124, %129 : vector<128x8xf32>
    %c447 = arith.constant 447 : index
    %c0_71 = arith.constant 0 : index
    %131 = vector.load %arg8[%c447, %c0_71] : memref<576x128xf32, #tpu.memory_space<vmem>>, vector<128x128xf32>
    %cst_72 = arith.constant 0.000000e+00 : f32
    %132 = vector.shape_cast %78 : vector<128x1xi1> to vector<128x1xi1>
    %133 = vector.broadcast %132 : vector<128x1xi1> to vector<128x128xi1>
    %134 = vector.broadcast %cst_72 : f32 to vector<128x128xf32>
    %135 = arith.select %133, %131, %134 : vector<128x128xi1>, vector<128x128xf32>
    %136 = arith.truncf %135 : vector<128x128xf32> to vector<128x128xbf16>
    %c6 = arith.constant 6 : index
    %c0_73 = arith.constant 0 : index
    %c0_74 = arith.constant 0 : index
    %137 = vector.load %arg3[%c6, %c0_73, %c0_74] : memref<9x128x8xbf16, #tpu.memory_space<vmem>>, vector<1x128x8xbf16>
    %138 = vector.shape_cast %137 : vector<1x128x8xbf16> to vector<128x8xbf16>
    %cst_75 = arith.constant dense<0.000000e+00> : vector<128x8xf32>
    %139 = tpu.matmul %136, %138, %cst_75 {dimension_numbers = #tpu.dot_dimension_numbers<[1], [0], [0], [1], [0, 0, 1, 1], [], []>} : vector<128x128xbf16>, vector<128x8xbf16>, vector<128x8xf32> -> vector<128x8xf32>
    %140 = arith.addf %130, %139 : vector<128x8xf32>
    %c304_76 = arith.constant 304 : index
    %c0_77 = arith.constant 0 : index
    %141 = vector.load %arg8[%c304_76, %c0_77] : memref<576x128xf32, #tpu.memory_space<vmem>>, vector<128x128xf32>
    %142 = arith.truncf %141 : vector<128x128xf32> to vector<128x128xbf16>
    %c7 = arith.constant 7 : index
    %c0_78 = arith.constant 0 : index
    %c0_79 = arith.constant 0 : index
    %143 = vector.load %arg3[%c7, %c0_78, %c0_79] : memref<9x128x8xbf16, #tpu.memory_space<vmem>>, vector<1x128x8xbf16>
    %144 = vector.shape_cast %143 : vector<1x128x8xbf16> to vector<128x8xbf16>
    %cst_80 = arith.constant dense<0.000000e+00> : vector<128x8xf32>
    %145 = tpu.matmul %142, %144, %cst_80 {dimension_numbers = #tpu.dot_dimension_numbers<[1], [0], [0], [1], [0, 0, 1, 1], [], []>} : vector<128x128xbf16>, vector<128x8xbf16>, vector<128x8xf32> -> vector<128x8xf32>
    %146 = arith.addf %140, %145 : vector<128x8xf32>
    %c448_81 = arith.constant 448 : index
    %c0_82 = arith.constant 0 : index
    %147 = vector.load %arg8[%c448_81, %c0_82] : memref<576x128xf32, #tpu.memory_space<vmem>>, vector<128x128xf32>
    %148 = arith.truncf %147 : vector<128x128xf32> to vector<128x128xbf16>
    %c8 = arith.constant 8 : index
    %c0_83 = arith.constant 0 : index
    %c0_84 = arith.constant 0 : index
    %149 = vector.load %arg3[%c8, %c0_83, %c0_84] : memref<9x128x8xbf16, #tpu.memory_space<vmem>>, vector<1x128x8xbf16>
    %150 = vector.shape_cast %149 : vector<1x128x8xbf16> to vector<128x8xbf16>
    %cst_85 = arith.constant dense<0.000000e+00> : vector<128x8xf32>
    %151 = tpu.matmul %148, %150, %cst_85 {dimension_numbers = #tpu.dot_dimension_numbers<[1], [0], [0], [1], [0, 0, 1, 1], [], []>} : vector<128x128xbf16>, vector<128x8xbf16>, vector<128x8xf32> -> vector<128x8xf32>
    %152 = arith.addf %146, %151 : vector<128x8xf32>
    %c1_86 = arith.constant 1 : index
    %c0_87 = arith.constant 0 : index
    %153 = vector.load %arg6[%c1_86, %c0_87] : memref<4x128xf32, #tpu.memory_space<vmem>>, vector<1x8xf32>
    %154 = vector.broadcast %153 : vector<1x8xf32> to vector<128x8xf32>
    %155 = arith.addf %152, %154 : vector<128x8xf32>
    %cst_88 = arith.constant 0.000000e+00 : f32
    %156 = vector.broadcast %cst_88 : f32 to vector<128x8xf32>
    %157 = arith.maximumf %155, %156 : vector<128x8xf32>
    %158 = arith.truncf %157 : vector<128x8xf32> to vector<128x8xbf16>
    %c0_89 = arith.constant 0 : index
    %c0_90 = arith.constant 0 : index
    %159 = vector.load %arg4[%c0_89, %c0_90] : memref<8x32xbf16, #tpu.memory_space<vmem>>, vector<8x32xbf16>
    %cst_91 = arith.constant dense<0.000000e+00> : vector<128x32xf32>
    %160 = tpu.matmul %158, %159, %cst_91 {dimension_numbers = #tpu.dot_dimension_numbers<[1], [0], [0], [1], [0, 0, 1, 1], [], []>} : vector<128x8xbf16>, vector<8x32xbf16>, vector<128x32xf32> -> vector<128x32xf32>
    %c2_92 = arith.constant 2 : index
    %c0_93 = arith.constant 0 : index
    %161 = vector.load %arg6[%c2_92, %c0_93] : memref<4x128xf32, #tpu.memory_space<vmem>>, vector<1x32xf32>
    %162 = vector.broadcast %161 : vector<1x32xf32> to vector<128x32xf32>
    %163 = arith.addf %160, %162 : vector<128x32xf32>
    %c0_94 = arith.constant 0 : index
    %c0_95 = arith.constant 0 : index
    %c0_96 = arith.constant 0 : index
    %c0_97 = arith.constant 0 : index
    %164 = vector.load %arg1[%c0_94, %c0_95, %c0_96, %c0_97] : memref<4x2x64x16xf32, #tpu.memory_space<vmem>>, vector<1x2x64x16xf32>
    %165 = vector.shape_cast %164 : vector<1x2x64x16xf32> to vector<2x64x16xf32>
    %166 = vector.shape_cast %165 : vector<2x64x16xf32> to vector<128x16xf32>
    %167 = arith.truncf %166 : vector<128x16xf32> to vector<128x16xbf16>
    %c0_98 = arith.constant 0 : index
    %c0_99 = arith.constant 0 : index
    %168 = vector.load %arg5[%c0_98, %c0_99] : memref<16x32xbf16, #tpu.memory_space<vmem>>, vector<16x32xbf16>
    %cst_100 = arith.constant dense<0.000000e+00> : vector<128x32xf32>
    %169 = tpu.matmul %167, %168, %cst_100 {dimension_numbers = #tpu.dot_dimension_numbers<[1], [0], [0], [1], [0, 0, 1, 1], [], []>} : vector<128x16xbf16>, vector<16x32xbf16>, vector<128x32xf32> -> vector<128x32xf32>
    %c3_101 = arith.constant 3 : index
    %c0_102 = arith.constant 0 : index
    %170 = vector.load %arg6[%c3_101, %c0_102] : memref<4x128xf32, #tpu.memory_space<vmem>>, vector<1x32xf32>
    %171 = vector.broadcast %170 : vector<1x32xf32> to vector<128x32xf32>
    %172 = arith.addf %169, %171 : vector<128x32xf32>
    %173 = arith.addf %163, %172 : vector<128x32xf32>
    %cst_103 = arith.constant 0.000000e+00 : f32
    %174 = vector.broadcast %cst_103 : f32 to vector<128x32xf32>
    %175 = arith.maximumf %173, %174 : vector<128x32xf32>
    %176 = vector.shape_cast %175 : vector<128x32xf32> to vector<2x64x32xf32>
    %177 = arith.truncf %176 : vector<2x64x32xf32> to vector<2x64x32xbf16>
    %c0_104 = arith.constant 0 : index
    %c0_105 = arith.constant 0 : index
    %c0_106 = arith.constant 0 : index
    %178 = vector.load %arg7[%c0_104, %c0_105, %c0_106] : memref<2x64x32xbf16, #tpu.memory_space<vmem>>, vector<2x64x32xbf16>
    tpu.vector_store %arg7[%c0_104, %c0_105, %c0_106], %177 {strides = array<i32>} : memref<2x64x32xbf16, #tpu.memory_space<vmem>>, vector<2x64x32xbf16>,
    return
  }
  func.func @transform_0(%arg0: i32) -> (i32, i32, i32, i32) {
    %c0_i32 = arith.constant 0 : i32
    %c0_i32_0 = arith.constant 0 : i32
    %c0_i32_1 = arith.constant 0 : i32
    %c0_i32_2 = arith.constant 0 : i32
    return %c0_i32, %arg0, %c0_i32_0, %c0_i32_1 : i32, i32, i32, i32
  }
  func.func @transform_1(%arg0: i32) -> (i32, i32) {
    %c0_i32 = arith.constant 0 : i32
    %c0_i32_0 = arith.constant 0 : i32
    %c0_i32_1 = arith.constant 0 : i32
    return %c0_i32, %c0_i32_0 : i32, i32
  }
  func.func @transform_2(%arg0: i32) -> (i32, i32, i32) {
    %c0_i32 = arith.constant 0 : i32
    %c0_i32_0 = arith.constant 0 : i32
    %c0_i32_1 = arith.constant 0 : i32
    %c0_i32_2 = arith.constant 0 : i32
    return %c0_i32, %c0_i32_0, %c0_i32_1 : i32, i32, i32
  }
  func.func @transform_3(%arg0: i32) -> (i32, i32) {
    %c0_i32 = arith.constant 0 : i32
    %c0_i32_0 = arith.constant 0 : i32
    %c0_i32_1 = arith.constant 0 : i32
    return %c0_i32, %c0_i32_0 : i32, i32
  }
  func.func @transform_4(%arg0: i32) -> (i32, i32) {
    %c0_i32 = arith.constant 0 : i32
    %c0_i32_0 = arith.constant 0 : i32
    %c0_i32_1 = arith.constant 0 : i32
    return %c0_i32, %c0_i32_0 : i32, i32
  }
  func.func @transform_5(%arg0: i32) -> (i32, i32) {
    %c0_i32 = arith.constant 0 : i32
    %c0_i32_0 = arith.constant 0 : i32
    %c0_i32_1 = arith.constant 0 : i32
    return %c0_i32, %c0_i32_0 : i32, i32
  }
  func.func @transform_6(%arg0: i32) -> (i32, i32, i32) {
    %c0_i32 = arith.constant 0 : i32
    %c0_i32_0 = arith.constant 0 : i32
    %c0_i32_1 = arith.constant 0 : i32
    return %arg0, %c0_i32, %c0_i32_0 : i32, i32, i32
  }
}

</mosaic_0001>

<llo_original>
// kernel: bottleneck_forward.1
$region0: #{bottleneck_forward.1}
  #allocation0 [shape = 'u32[]', space=smem, size = 0x4, offset = 0x4, fixed_abs, tag = 'smem constant byte address 0x4 - core index']
  #allocation1 [shape = 'u32[144,128]{1,0:T(1,128)}', space=vmem, size = 0x12000, scoped, tag = 'internal scratch']
  #allocation2 [shape = 'f32[576,128]{1,0:T(8,128)}', space=vmem, size = 0x48000, scoped, tag = 'scratch operand']
  %s0 = inlined_call_operand.vmem [shape: f32[4,2,64,16], index: 0, kind: input, shape index: {}]
  %s1 = inlined_call_operand.vmem [shape: bf16[16,128], index: 1, kind: input, shape index: {}]
  %s2 = inlined_call_operand.vmem [shape: bf16[9,128,8], index: 2, kind: input, shape index: {}]
  %s3 = inlined_call_operand.vmem [shape: bf16[8,32], index: 3, kind: input, shape index: {}]
  %s4 = inlined_call_operand.vmem [shape: bf16[16,32], index: 4, kind: input, shape index: {}]
  %s5 = inlined_call_operand.vmem [shape: f32[4,128], index: 5, kind: input, shape index: {}]
  %s6 = inlined_call_operand.hbm [shape: bf16[2,64,32], index: 6, kind: output, shape index: {}]
  %s7 = sld [smem:[#allocation0]]
  $region34: #{bottleneck_forward.1} parent=0
    _
  %s9 = ssub.s32 1, %s7
  %s10 = scalar_select 0, %s9, %s7
  $region1: #{bottleneck_forward.1} parent=0
    #allocation3 [shape = 'u8[32768]{0}', space=vmem, size = 0x8000, scoped, tag = 'output window, operand 0, single buffered']
    #allocation4 [shape = 's32[1]{0}', space=sflag, size = 0x4, scoped, tag = 'scoped memory for bottleneck_forward.1']
    %11 = vsyncpa [#allocation4], 0
    // Predicated region
    $region2: #{bottleneck_forward.1} parent=1 // pred_check
      _
    $region3: #{bottleneck_forward.1} parent=1 // pred_check_branch
      %13 = sbr.rel (0) target = $region5
    $region4: #{bottleneck_forward.1} parent=1 // pred_region
      _
    $region5: #{bottleneck_forward.1} parent=1 // pred_fallthru
      _
    // Predicated region
    $region6: #{bottleneck_forward.1} parent=1 // pred_check
      _
    $region7: #{bottleneck_forward.1} parent=1 // pred_check_branch
      %15 = sbr.rel (0) target = $region9
    $region8: #{bottleneck_forward.1} parent=1 // pred_region
      _
    $region9: #{bottleneck_forward.1} parent=1 // pred_fallthru
      _
    // Predicated region
    $region10: #{bottleneck_forward.1} parent=1 // pred_check
      _
    $region11: #{bottleneck_forward.1} parent=1 // pred_check_branch
      %17 = sbr.rel (0) target = $region13
    $region12: #{bottleneck_forward.1} parent=1 // pred_region
      _
    $region13: #{bottleneck_forward.1} parent=1 // pred_fallthru
      _
    // Predicated region
    $region14: #{bottleneck_forward.1} parent=1 // pred_check
      _
    $region15: #{bottleneck_forward.1} parent=1 // pred_check_branch
      %19 = sbr.rel (0) target = $region17
    $region16: #{bottleneck_forward.1} parent=1 // pred_region
      _
    $region17: #{bottleneck_forward.1} parent=1 // pred_fallthru
      _
    // Predicated region
    $region18: #{bottleneck_forward.1} parent=1 // pred_check
      _
    $region19: #{bottleneck_forward.1} parent=1 // pred_check_branch
      %21 = sbr.rel (0) target = $region21
    $region20: #{bottleneck_forward.1} parent=1 // pred_region
      _
    $region21: #{bottleneck_forward.1} parent=1 // pred_fallthru
      _
    // Predicated region
    $region22: #{bottleneck_forward.1} parent=1 // pred_check
      _
    $region23: #{bottleneck_forward.1} parent=1 // pred_check_branch
      %23 = sbr.rel (0) target = $region25
    $region24: #{bottleneck_forward.1} parent=1 // pred_region
      _
    $region25: #{bottleneck_forward.1} parent=1 // pred_fallthru
      _
    %v25 = vld [vmem:[%s1] sm:$0xf]
    %v26 = vld [vmem:[%s1 + $0x4] sm:$0xf]
    %v27 = vld [vmem:[%s5] sm:$0x1]
    %v28 = vld [vmem:[%s0] sm:$0xff]
    %v29 = vld [vmem:[%s0 + $0x8] sm:$0xff]
    %v30 = vld [vmem:[%s0 + $0x10] sm:$0xff]
    %v31 = vld [vmem:[%s0 + $0x18] sm:$0xff]
    %v32 = vld [vmem:[%s0 + $0x20] sm:$0xff]
    %v33 = vld [vmem:[%s0 + $0x28] sm:$0xff]
    %v34 = vld [vmem:[%s0 + $0x30] sm:$0xff]
    %v35 = vld [vmem:[%s0 + $0x38] sm:$0xff]
    %v36 = vld [vmem:[%s0 + $0x40] sm:$0xff]
    %v37 = vld [vmem:[%s0 + $0x48] sm:$0xff]
    %v38 = vld [vmem:[%s0 + $0x50] sm:$0xff]
    %v39 = vld [vmem:[%s0 + $0x58] sm:$0xff]
    %v40 = vld [vmem:[%s0 + $0x60] sm:$0xff]
    %v41 = vld [vmem:[%s0 + $0x68] sm:$0xff]
    %v42 = vld [vmem:[%s0 + $0x70] sm:$0xff]
    %v43 = vld [vmem:[%s0 + $0x78] sm:$0xff]
    %v44 = vpack.c.bf16 %v29, %v28
    %v45 = vpack.c.bf16 %v31, %v30
    %v46 = vpack.c.bf16 %v33, %v32
    %v47 = vpack.c.bf16 %v35, %v34
    %v48 = vpack.c.bf16 %v37, %v36
    %v49 = vpack.c.bf16 %v39, %v38
    %v50 = vpack.c.bf16 %v41, %v40
    %v51 = vpack.c.bf16 %v43, %v42
    %v52 = vlaneseq
    %v53 = vshrl.u32 %v52, 7
    %v54 = vsub.s32 0, %v53
    %v55 = vrot.slane %v27, %v54
    %v58 = vunpack.c.l.b16 %v25
    %v59 = vunpack.c.l.b16 %v26
    %v60 = vpack.c.b16 %v59, %v58
    %vm62 = vcmask 130048
    %v64 = vsel %vm62, %v44, 0
    %v67 = vsel %vm62, %v45, 0
    %v70 = vsel %vm62, %v46, 0
    %v73 = vsel %vm62, %v47, 0
    %v76 = vsel %vm62, %v48, 0
    %v79 = vsel %vm62, %v49, 0
    %v82 = vsel %vm62, %v50, 0
    %v85 = vsel %vm62, %v51, 0
    %87 = vmatprep.subr.bf16.mxu0 0
    %88 = vmatpush1.bf16.msra.mxu0 %v60
    %89 = vmatprep.subr.bf16.mxu0 0
    %90 = vmatpush1.bf16.msra.mxu0 0
    %91 = vmatprep.subr.bf16.mxu0 0
    %92 = vmatpush1.bf16.msra.mxu0 0
    %93 = vmatprep.subr.bf16.mxu0 0
    %94 = vmatpush1.bf16.msra.mxu0 0
    %95 = vmatprep.subr.bf16.mxu0 0
    %96 = vmatpush1.bf16.msra.mxu0 0
    %97 = vmatprep.subr.bf16.mxu0 0
    %98 = vmatpush1.bf16.msra.mxu0 0
    %99 = vmatprep.subr.bf16.mxu0 0
    %100 = vmatpush1.bf16.msra.mxu0 0
    %101 = vmatprep.subr.bf16.mxu0 0
    %102 = vmatpush1.bf16.msra.mxu0 0
    %103 = vmatprep.subr.bf16.mxu0 0
    %104 = vmatpush1.bf16.msra.mxu0 0
    %105 = vmatprep.subr.bf16.mxu0 0
    %106 = vmatpush1.bf16.msra.mxu0 0
    %107 = vmatprep.subr.bf16.mxu0 0
    %108 = vmatpush1.bf16.msra.mxu0 0
    %109 = vmatprep.subr.bf16.mxu0 0
    %110 = vmatpush1.bf16.msra.mxu0 0
    %111 = vmatprep.subr.bf16.mxu0 0
    %112 = vmatpush1.bf16.msra.mxu0 0
    %113 = vmatprep.subr.bf16.mxu0 0
    %114 = vmatpush1.bf16.msra.mxu0 0
    %115 = vmatprep.subr.bf16.mxu0 0
    %116 = vmatpush1.bf16.msra.mxu0 0
    %117 = vmatprep.subr.bf16.mxu0 0
    %118 = vmatpush1.bf16.msra.mxu0 0
    %119 = vmatprep.mubr.bf16.mxu0 0
    %120 = vmatmul.mubr.bf16.gmra.mrb[0].mxu0 %v64
    %v121 = vpop.f32.mrb[0].mxu0
    %v122 = vadd.f32 %v55, %v121
    %v123 = vpop.f32.mrb[0].mxu0
    %v124 = vpop.f32.mrb[0].mxu0
    %v125 = vadd.f32 %v55, %v124
    %v126 = vpop.f32.mrb[0].mxu0
    %127 = vmatprep.mubr.bf16.mxu0 0
    %128 = vmatmul.mubr.bf16.gmra.mrb[0].mxu0 %v67
    %v129 = vpop.f32.mrb[0].mxu0
    %v130 = vadd.f32 %v55, %v129
    %v131 = vpop.f32.mrb[0].mxu0
    %v132 = vpop.f32.mrb[0].mxu0
    %v133 = vadd.f32 %v55, %v132
    %v134 = vpop.f32.mrb[0].mxu0
    %135 = vmatprep.mubr.bf16.mxu0 0
    %136 = vmatmul.mubr.bf16.gmra.mrb[0].mxu0 %v70
    %v137 = vpop.f32.mrb[0].mxu0
    %v138 = vadd.f32 %v55, %v137
    %v139 = vpop.f32.mrb[0].mxu0
    %v140 = vpop.f32.mrb[0].mxu0
    %v141 = vadd.f32 %v55, %v140
    %v142 = vpop.f32.mrb[0].mxu0
    %143 = vmatprep.mubr.bf16.mxu0 0
    %144 = vmatmul.mubr.bf16.gmra.mrb[0].mxu0 %v73
    %v145 = vpop.f32.mrb[0].mxu0
    %v146 = vadd.f32 %v55, %v145
    %v147 = vpop.f32.mrb[0].mxu0
    %v148 = vpop.f32.mrb[0].mxu0
    %v149 = vadd.f32 %v55, %v148
    %v150 = vpop.f32.mrb[0].mxu0
    %151 = vmatprep.mubr.bf16.mxu0 0
    %152 = vmatmul.mubr.bf16.gmra.mrb[0].mxu0 %v76
    %v153 = vpop.f32.mrb[0].mxu0
    %v154 = vadd.f32 %v55, %v153
    %v155 = vpop.f32.mrb[0].mxu0
    %v156 = vpop.f32.mrb[0].mxu0
    %v157 = vadd.f32 %v55, %v156
    %v158 = vpop.f32.mrb[0].mxu0
    %159 = vmatprep.mubr.bf16.mxu0 0
    %160 = vmatmul.mubr.bf16.gmra.mrb[0].mxu0 %v79
    %v161 = vpop.f32.mrb[0].mxu0
    %v162 = vadd.f32 %v55, %v161
    %v163 = vpop.f32.mrb[0].mxu0
    %v164 = vpop.f32.mrb[0].mxu0
    %v165 = vadd.f32 %v55, %v164
    %v166 = vpop.f32.mrb[0].mxu0
    %167 = vmatprep.mubr.bf16.mxu0 0
    %168 = vmatmul.mubr.bf16.gmra.mrb[0].mxu0 %v82
    %v169 = vpop.f32.mrb[0].mxu0
    %v170 = vadd.f32 %v55, %v169
    %v171 = vpop.f32.mrb[0].mxu0
    %v172 = vpop.f32.mrb[0].mxu0
    %v173 = vadd.f32 %v55, %v172
    %v174 = vpop.f32.mrb[0].mxu0
    %175 = vmatprep.mubr.bf16.mxu0 0
    %176 = vmatmul.mubr.bf16.gmra.mrb[0].mxu0 %v85
    %v177 = vpop.f32.mrb[0].mxu0
    %v178 = vadd.f32 %v55, %v177
    %v179 = vpop.f32.mrb[0].mxu0
    %v180 = vpop.f32.mrb[0].mxu0
    %v181 = vadd.f32 %v55, %v180
    %v182 = vpop.f32.mrb[0].mxu0
    %183 = vdwg.mxu0
    %v184 = vmax.f32 %v122, 0.0
    %v185 = vmax.f32 %v125, 0.0
    %v186 = vmax.f32 %v130, 0.0
    %v187 = vmax.f32 %v133, 0.0
    %v188 = vmax.f32 %v138, 0.0
    %v189 = vmax.f32 %v141, 0.0
    %v190 = vmax.f32 %v146, 0.0
    %v191 = vmax.f32 %v149, 0.0
    %v192 = vmax.f32 %v154, 0.0
    %v193 = vmax.f32 %v157, 0.0
    %v194 = vmax.f32 %v162, 0.0
    %v195 = vmax.f32 %v165, 0.0
    %v196 = vmax.f32 %v170, 0.0
    %v197 = vmax.f32 %v173, 0.0
    %v198 = vmax.f32 %v178, 0.0
    %v199 = vmax.f32 %v181, 0.0
    %200 = vst [vmem:[#allocation2 + $0x10] sm:$0xff] %v184
    %201 = vst [vmem:[#allocation2 + $0x18] sm:$0xff] %v185
    %202 = vst [vmem:[#allocation2 + $0x20] sm:$0xff] %v186
    %203 = vst [vmem:[#allocation2 + $0x28] sm:$0xff] %v187
    %204 = vst [vmem:[#allocation2 + $0x30] sm:$0xff] %v188
    %205 = vst [vmem:[#allocation2 + $0x38] sm:$0xff] %v189
    %206 = vst [vmem:[#allocation2 + $0x40] sm:$0xff] %v190
    %207 = vst [vmem:[#allocation2 + $0x48] sm:$0xff] %v191
    %208 = vst [vmem:[#allocation2 + $0x50] sm:$0xff] %v192
    %209 = vst [vmem:[#allocation2 + $0x58] sm:$0xff] %v193
    %210 = vst [vmem:[#allocation2 + $0x60] sm:$0xff] %v194
    %211 = vst [vmem:[#allocation2 + $0x68] sm:$0xff] %v195
    %212 = vst [vmem:[#allocation2 + $0x70] sm:$0xff] %v196
    %213 = vst [vmem:[#allocation2 + $0x78] sm:$0xff] %v197
    %214 = vst [vmem:[#allocation2 + $0x80] sm:$0xff] %v198
    %215 = vst [vmem:[#allocation2 + $0x88] sm:$0xff] %v199
    %s216 = scalar_lea.vmem %s0, 128
    %v217 = vld [vmem:[%s216] sm:$0xff]
    %v218 = vld [vmem:[%s216 + $0x8] sm:$0xff]
    %v219 = vld [vmem:[%s216 + $0x10] sm:$0xff]
    %v220 = vld [vmem:[%s216 + $0x18] sm:$0xff]
    %v221 = vld [vmem:[%s216 + $0x20] sm:$0xff]
    %v222 = vld [vmem:[%s216 + $0x28] sm:$0xff]
    %v223 = vld [vmem:[%s216 + $0x30] sm:$0xff]
    %v224 = vld [vmem:[%s216 + $0x38] sm:$0xff]
    %v225 = vld [vmem:[%s216 + $0x40] sm:$0xff]
    %v226 = vld [vmem:[%s216 + $0x48] sm:$0xff]
    %v227 = vld [vmem:[%s216 + $0x50] sm:$0xff]
    %v228 = vld [vmem:[%s216 + $0x58] sm:$0xff]
    %v229 = vld [vmem:[%s216 + $0x60] sm:$0xff]
    %v230 = vld [vmem:[%s216 + $0x68] sm:$0xff]
    %v231 = vld [vmem:[%s216 + $0x70] sm:$0xff]
    %v232 = vld [vmem:[%s216 + $0x78] sm:$0xff]
    %v233 = vpack.c.bf16 %v218, %v217
    %v234 = vpack.c.bf16 %v220, %v219
    %v235 = vpack.c.bf16 %v222, %v221
    %v236 = vpack.c.bf16 %v224, %v223
    %v237 = vpack.c.bf16 %v226, %v225
    %v238 = vpack.c.bf16 %v228, %v227
    %v239 = vpack.c.bf16 %v230, %v229
    %v240 = vpack.c.bf16 %v232, %v231
    %v242 = vsel %vm62, %v233, 0
    %v245 = vsel %vm62, %v234, 0
    %v248 = vsel %vm62, %v235, 0
    %v251 = vsel %vm62, %v236, 0
    %v254 = vsel %vm62, %v237, 0
    %v257 = vsel %vm62, %v238, 0
    %v260 = vsel %vm62, %v239, 0
    %v263 = vsel %vm62, %v240, 0
    %265 = vmatprep.subr.bf16.mxu0 0
    %266 = vmatpush1.bf16.msra.mxu0 %v60
    %267 = vmatprep.subr.bf16.mxu0 0
    %268 = vmatpush1.bf16.msra.mxu0 0
    %269 = vmatprep.subr.bf16.mxu0 0
    %270 = vmatpush1.bf16.msra.mxu0 0
    %271 = vmatprep.subr.bf16.mxu0 0
    %272 = vmatpush1.bf16.msra.mxu0 0
    %273 = vmatprep.subr.bf16.mxu0 0
    %274 = vmatpush1.bf16.msra.mxu0 0
    %275 = vmatprep.subr.bf16.mxu0 0
    %276 = vmatpush1.bf16.msra.mxu0 0
    %277 = vmatprep.subr.bf16.mxu0 0
    %278 = vmatpush1.bf16.msra.mxu0 0
    %279 = vmatprep.subr.bf16.mxu0 0
    %280 = vmatpush1.bf16.msra.mxu0 0
    %281 = vmatprep.subr.bf16.mxu0 0
    %282 = vmatpush1.bf16.msra.mxu0 0
    %283 = vmatprep.subr.bf16.mxu0 0
    %284 = vmatpush1.bf16.msra.mxu0 0
    %285 = vmatprep.subr.bf16.mxu0 0
    %286 = vmatpush1.bf16.msra.mxu0 0
    %287 = vmatprep.subr.bf16.mxu0 0
    %288 = vmatpush1.bf16.msra.mxu0 0
    %289 = vmatprep.subr.bf16.mxu0 0
    %290 = vmatpush1.bf16.msra.mxu0 0
    %291 = vmatprep.subr.bf16.mxu0 0
    %292 = vmatpush1.bf16.msra.mxu0 0
    %293 = vmatprep.subr.bf16.mxu0 0
    %294 = vmatpush1.bf16.msra.mxu0 0
    %295 = vmatprep.subr.bf16.mxu0 0
    %296 = vmatpush1.bf16.msra.mxu0 0
    %297 = vmatprep.mubr.bf16.mxu0 0
    %298 = vmatmul.mubr.bf16.gmra.mrb[0].mxu0 %v242
    %v299 = vpop.f32.mrb[0].mxu0
    %v300 = vadd.f32 %v55, %v299
    %v301 = vpop.f32.mrb[0].mxu0
    %v302 = vpop.f32.mrb[0].mxu0
    %v303 = vadd.f32 %v55, %v302
    %v304 = vpop.f32.mrb[0].mxu0
    %305 = vmatprep.mubr.bf16.mxu0 0
    %306 = vmatmul.mubr.bf16.gmra.mrb[0].mxu0 %v245
    %v307 = vpop.f32.mrb[0].mxu0
    %v308 = vadd.f32 %v55, %v307
    %v309 = vpop.f32.mrb[0].mxu0
    %v310 = vpop.f32.mrb[0].mxu0
    %v311 = vadd.f32 %v55, %v310
    %v312 = vpop.f32.mrb[0].mxu0
    %313 = vmatprep.mubr.bf16.mxu0 0
    %314 = vmatmul.mubr.bf16.gmra.mrb[0].mxu0 %v248
    %v315 = vpop.f32.mrb[0].mxu0
    %v316 = vadd.f32 %v55, %v315
    %v317 = vpop.f32.mrb[0].mxu0
    %v318 = vpop.f32.mrb[0].mxu0
    %v319 = vadd.f32 %v55, %v318
    %v320 = vpop.f32.mrb[0].mxu0
    %321 = vmatprep.mubr.bf16.mxu0 0
    %322 = vmatmul.mubr.bf16.gmra.mrb[0].mxu0 %v251
    %v323 = vpop.f32.mrb[0].mxu0
    %v324 = vadd.f32 %v55, %v323
    %v325 = vpop.f32.mrb[0].mxu0
    %v326 = vpop.f32.mrb[0].mxu0
    %v327 = vadd.f32 %v55, %v326
    %v328 = vpop.f32.mrb[0].mxu0
    %329 = vmatprep.mubr.bf16.mxu0 0
    %330 = vmatmul.mubr.bf16.gmra.mrb[0].mxu0 %v254
    %v331 = vpop.f32.mrb[0].mxu0
    %v332 = vadd.f32 %v55, %v331
    %v333 = vpop.f32.mrb[0].mxu0
    %v334 = vpop.f32.mrb[0].mxu0
    %v335 = vadd.f32 %v55, %v334
    %v336 = vpop.f32.mrb[0].mxu0
    %337 = vmatprep.mubr.bf16.mxu0 0
    %338 = vmatmul.mubr.bf16.gmra.mrb[0].mxu0 %v257
    %v339 = vpop.f32.mrb[0].mxu0
    %v340 = vadd.f32 %v55, %v339
    %v341 = vpop.f32.mrb[0].mxu0
    %v342 = vpop.f32.mrb[0].mxu0
    %v343 = vadd.f32 %v55, %v342
    %v344 = vpop.f32.mrb[0].mxu0
    %345 = vmatprep.mubr.bf16.mxu0 0
    %346 = vmatmul.mubr.bf16.gmra.mrb[0].mxu0 %v260
    %v347 = vpop.f32.mrb[0].mxu0
    %v348 = vadd.f32 %v55, %v347
    %v349 = vpop.f32.mrb[0].mxu0
    %v350 = vpop.f32.mrb[0].mxu0
    %v351 = vadd.f32 %v55, %v350
    %v352 = vpop.f32.mrb[0].mxu0
    %353 = vmatprep.mubr.bf16.mxu0 0
    %354 = vmatmul.mubr.bf16.gmra.mrb[0].mxu0 %v263
    %v355 = vpop.f32.mrb[0].mxu0
    %v356 = vadd.f32 %v55, %v355
    %v357 = vpop.f32.mrb[0].mxu0
    %v358 = vpop.f32.mrb[0].mxu0
    %v359 = vadd.f32 %v55, %v358
    %v360 = vpop.f32.mrb[0].mxu0
    %361 = vdwg.mxu0
    %v362 = vmax.f32 %v300, 0.0
    %v363 = vmax.f32 %v303, 0.0
    %v364 = vmax.f32 %v308, 0.0
    %v365 = vmax.f32 %v311, 0.0
    %v366 = vmax.f32 %v316, 0.0
    %v367 = vmax.f32 %v319, 0.0
    %v368 = vmax.f32 %v324, 0.0
    %v369 = vmax.f32 %v327, 0.0
    %v370 = vmax.f32 %v332, 0.0
    %v371 = vmax.f32 %v335, 0.0
    %v372 = vmax.f32 %v340, 0.0
    %v373 = vmax.f32 %v343, 0.0
    %v374 = vmax.f32 %v348, 0.0
    %v375 = vmax.f32 %v351, 0.0
    %v376 = vmax.f32 %v356, 0.0
    %v377 = vmax.f32 %v359, 0.0
    %378 = vst [vmem:[#allocation2 + $0xa0] sm:$0xff] %v362
    %379 = vst [vmem:[#allocation2 + $0xa8] sm:$0xff] %v363
    %380 = vst [vmem:[#allocation2 + $0xb0] sm:$0xff] %v364
    %381 = vst [vmem:[#allocation2 + $0xb8] sm:$0xff] %v365
    %382 = vst [vmem:[#allocation2 + $0xc0] sm:$0xff] %v366
    %383 = vst [vmem:[#allocation2 + $0xc8] sm:$0xff] %v367
    %384 = vst [vmem:[#allocation2 + $0xd0] sm:$0xff] %v368
    %385 = vst [vmem:[#allocation2 + $0xd8] sm:$0xff] %v369
    %386 = vst [vmem:[#allocation2 + $0xe0] sm:$0xff] %v370
    %387 = vst [vmem:[#allocation2 + $0xe8] sm:$0xff] %v371
    %388 = vst [vmem:[#allocation2 + $0xf0] sm:$0xff] %v372
    %389 = vst [vmem:[#allocation2 + $0xf8] sm:$0xff] %v373
    %390 = vst [vmem:[#allocation2 + $0x100] sm:$0xff] %v374
    %391 = vst [vmem:[#allocation2 + $0x108] sm:$0xff] %v375
    %392 = vst [vmem:[#allocation2 + $0x110] sm:$0xff] %v376
    %393 = vst [vmem:[#allocation2 + $0x118] sm:$0xff] %v377
    %s394 = scalar_lea.vmem %s0, 256
    %v395 = vld [vmem:[%s394] sm:$0xff]
    %v396 = vld [vmem:[%s394 + $0x8] sm:$0xff]
    %v397 = vld [vmem:[%s394 + $0x10] sm:$0xff]
    %v398 = vld [vmem:[%s394 + $0x18] sm:$0xff]
    %v399 = vld [vmem:[%s394 + $0x20] sm:$0xff]
    %v400 = vld [vmem:[%s394 + $0x28] sm:$0xff]
    %v401 = vld [vmem:[%s394 + $0x30] sm:$0xff]
    %v402 = vld [vmem:[%s394 + $0x38] sm:$0xff]
    %v403 = vld [vmem:[%s394 + $0x40] sm:$0xff]
    %v404 = vld [vmem:[%s394 + $0x48] sm:$0xff]
    %v405 = vld [vmem:[%s394 + $0x50] sm:$0xff]
    %v406 = vld [vmem:[%s394 + $0x58] sm:$0xff]
    %v407 = vld [vmem:[%s394 + $0x60] sm:$0xff]
    %v408 = vld [vmem:[%s394 + $0x68] sm:$0xff]
    %v409 = vld [vmem:[%s394 + $0x70] sm:$0xff]
    %v410 = vld [vmem:[%s394 + $0x78] sm:$0xff]
    %v411 = vpack.c.bf16 %v396, %v395
    %v412 = vpack.c.bf16 %v398, %v397
    %v413 = vpack.c.bf16 %v400, %v399
    %v414 = vpack.c.bf16 %v402, %v401
    %v415 = vpack.c.bf16 %v404, %v403
    %v416 = vpack.c.bf16 %v406, %v405
    %v417 = vpack.c.bf16 %v408, %v407
    %v418 = vpack.c.bf16 %v410, %v409
    %v420 = vsel %vm62, %v411, 0
    %v423 = vsel %vm62, %v412, 0
    %v426 = vsel %vm62, %v413, 0
    %v429 = vsel %vm62, %v414, 0
    %v432 = vsel %vm62, %v415, 0
    %v435 = vsel %vm62, %v416, 0
    %v438 = vsel %vm62, %v417, 0
    %v441 = vsel %vm62, %v418, 0
    %443 = vmatprep.subr.bf16.mxu0 0
    %444 = vmatpush1.bf16.msra.mxu0 %v60
    %445 = vmatprep.subr.bf16.mxu0 0
    %446 = vmatpush1.bf16.msra.mxu0 0
    %447 = vmatprep.subr.bf16.mxu0 0
    %448 = vmatpush1.bf16.msra.mxu0 0
    %449 = vmatprep.subr.bf16.mxu0 0
    %450 = vmatpush1.bf16.msra.mxu0 0
    %451 = vmatprep.subr.bf16.mxu0 0
    %452 = vmatpush1.bf16.msra.mxu0 0
    %453 = vmatprep.subr.bf16.mxu0 0
    %454 = vmatpush1.bf16.msra.mxu0 0
    %455 = vmatprep.subr.bf16.mxu0 0
    %456 = vmatpush1.bf16.msra.mxu0 0
    %457 = vmatprep.subr.bf16.mxu0 0
    %458 = vmatpush1.bf16.msra.mxu0 0
    %459 = vmatprep.subr.bf16.mxu0 0
    %460 = vmatpush1.bf16.msra.mxu0 0
    %461 = vmatprep.subr.bf16.mxu0 0
    %462 = vmatpush1.bf16.msra.mxu0 0
    %463 = vmatprep.subr.bf16.mxu0 0
    %464 = vmatpush1.bf16.msra.mxu0 0
    %465 = vmatprep.subr.bf16.mxu0 0
    %466 = vmatpush1.bf16.msra.mxu0 0
    %467 = vmatprep.subr.bf16.mxu0 0
    %468 = vmatpush1.bf16.msra.mxu0 0
    %469 = vmatprep.subr.bf16.mxu0 0
    %470 = vmatpush1.bf16.msra.mxu0 0
    %471 = vmatprep.subr.bf16.mxu0 0
    %472 = vmatpush1.bf16.msra.mxu0 0
    %473 = vmatprep.subr.bf16.mxu0 0
    %474 = vmatpush1.bf16.msra.mxu0 0
    %475 = vmatprep.mubr.bf16.mxu0 0
    %476 = vmatmul.mubr.bf16.gmra.mrb[0].mxu0 %v420
    %v477 = vpop.f32.mrb[0].mxu0
    %v478 = vadd.f32 %v55, %v477
    %v479 = vpop.f32.mrb[0].mxu0
    %v480 = vpop.f32.mrb[0].mxu0
    %v481 = vadd.f32 %v55, %v480
    %v482 = vpop.f32.mrb[0].mxu0
    %483 = vmatprep.mubr.bf16.mxu0 0
    %484 = vmatmul.mubr.bf16.gmra.mrb[0].mxu0 %v423
    %v485 = vpop.f32.mrb[0].mxu0
    %v486 = vadd.f32 %v55, %v485
    %v487 = vpop.f32.mrb[0].mxu0
    %v488 = vpop.f32.mrb[0].mxu0
    %v489 = vadd.f32 %v55, %v488
    %v490 = vpop.f32.mrb[0].mxu0
    %491 = vmatprep.mubr.bf16.mxu0 0
    %492 = vmatmul.mubr.bf16.gmra.mrb[0].mxu0 %v426
    %v493 = vpop.f32.mrb[0].mxu0
    %v494 = vadd.f32 %v55, %v493
    %v495 = vpop.f32.mrb[0].mxu0
    %v496 = vpop.f32.mrb[0].mxu0
    %v497 = vadd.f32 %v55, %v496
    %v498 = vpop.f32.mrb[0].mxu0
    %499 = vmatprep.mubr.bf16.mxu0 0
    %500 = vmatmul.mubr.bf16.gmra.mrb[0].mxu0 %v429
    %v501 = vpop.f32.mrb[0].mxu0
    %v502 = vadd.f32 %v55, %v501
    %v503 = vpop.f32.mrb[0].mxu0
    %v504 = vpop.f32.mrb[0].mxu0
    %v505 = vadd.f32 %v55, %v504
    %v506 = vpop.f32.mrb[0].mxu0
    %507 = vmatprep.mubr.bf16.mxu0 0
    %508 = vmatmul.mubr.bf16.gmra.mrb[0].mxu0 %v432
    %v509 = vpop.f32.mrb[0].mxu0
    %v510 = vadd.f32 %v55, %v509
    %v511 = vpop.f32.mrb[0].mxu0
    %v512 = vpop.f32.mrb[0].mxu0
    %v513 = vadd.f32 %v55, %v512
    %v514 = vpop.f32.mrb[0].mxu0
    %515 = vmatprep.mubr.bf16.mxu0 0
    %516 = vmatmul.mubr.bf16.gmra.mrb[0].mxu0 %v435
    %v517 = vpop.f32.mrb[0].mxu0
    %v518 = vadd.f32 %v55, %v517
    %v519 = vpop.f32.mrb[0].mxu0
    %v520 = vpop.f32.mrb[0].mxu0
    %v521 = vadd.f32 %v55, %v520
    %v522 = vpop.f32.mrb[0].mxu0
    %523 = vmatprep.mubr.bf16.mxu0 0
    %524 = vmatmul.mubr.bf16.gmra.mrb[0].mxu0 %v438
    %v525 = vpop.f32.mrb[0].mxu0
    %v526 = vadd.f32 %v55, %v525
    %v527 = vpop.f32.mrb[0].mxu0
    %v528 = vpop.f32.mrb[0].mxu0
    %v529 = vadd.f32 %v55, %v528
    %v530 = vpop.f32.mrb[0].mxu0
    %531 = vmatprep.mubr.bf16.mxu0 0
    %532 = vmatmul.mubr.bf16.gmra.mrb[0].mxu0 %v441
    %v533 = vpop.f32.mrb[0].mxu0
    %v534 = vadd.f32 %v55, %v533
    %v535 = vpop.f32.mrb[0].mxu0
    %v536 = vpop.f32.mrb[0].mxu0
    %v537 = vadd.f32 %v55, %v536
    %v538 = vpop.f32.mrb[0].mxu0
    %539 = vdwg.mxu0
    %v540 = vmax.f32 %v478, 0.0
    %v541 = vmax.f32 %v481, 0.0
    %v542 = vmax.f32 %v486, 0.0
    %v543 = vmax.f32 %v489, 0.0
    %v544 = vmax.f32 %v494, 0.0
    %v545 = vmax.f32 %v497, 0.0
    %v546 = vmax.f32 %v502, 0.0
    %v547 = vmax.f32 %v505, 0.0
    %v548 = vmax.f32 %v510, 0.0
    %v549 = vmax.f32 %v513, 0.0
    %v550 = vmax.f32 %v518, 0.0
    %v551 = vmax.f32 %v521, 0.0
    %v552 = vmax.f32 %v526, 0.0
    %v553 = vmax.f32 %v529, 0.0
    %v554 = vmax.f32 %v534, 0.0
    %v555 = vmax.f32 %v537, 0.0
    %556 = vst [vmem:[#allocation2 + $0x130] sm:$0xff] %v540
    %557 = vst [vmem:[#allocation2 + $0x138] sm:$0xff] %v541
    %558 = vst [vmem:[#allocation2 + $0x140] sm:$0xff] %v542
    %559 = vst [vmem:[#allocation2 + $0x148] sm:$0xff] %v543
    %560 = vst [vmem:[#allocation2 + $0x150] sm:$0xff] %v544
    %561 = vst [vmem:[#allocation2 + $0x158] sm:$0xff] %v545
    %562 = vst [vmem:[#allocation2 + $0x160] sm:$0xff] %v546
    %563 = vst [vmem:[#allocation2 + $0x168] sm:$0xff] %v547
    %564 = vst [vmem:[#allocation2 + $0x170] sm:$0xff] %v548
    %565 = vst [vmem:[#allocation2 + $0x178] sm:$0xff] %v549
    %566 = vst [vmem:[#allocation2 + $0x180] sm:$0xff] %v550
    %567 = vst [vmem:[#allocation2 + $0x188] sm:$0xff] %v551
    %568 = vst [vmem:[#allocation2 + $0x190] sm:$0xff] %v552
    %569 = vst [vmem:[#allocation2 + $0x198] sm:$0xff] %v553
    %570 = vst [vmem:[#allocation2 + $0x1a0] sm:$0xff] %v554
    %571 = vst [vmem:[#allocation2 + $0x1a8] sm:$0xff] %v555
    %s572 = scalar_lea.vmem %s0, 384
    %v573 = vld [vmem:[%s572] sm:$0xff]
    %v574 = vld [vmem:[%s572 + $0x8] sm:$0xff]
    %v575 = vld [vmem:[%s572 + $0x10] sm:$0xff]
    %v576 = vld [vmem:[%s572 + $0x18] sm:$0xff]
    %v577 = vld [vmem:[%s572 + $0x20] sm:$0xff]
    %v578 = vld [vmem:[%s572 + $0x28] sm:$0xff]
    %v579 = vld [vmem:[%s572 + $0x30] sm:$0xff]
    %v580 = vld [vmem:[%s572 + $0x38] sm:$0xff]
    %v581 = vld [vmem:[%s572 + $0x40] sm:$0xff]
    %v582 = vld [vmem:[%s572 + $0x48] sm:$0xff]
    %v583 = vld [vmem:[%s572 + $0x50] sm:$0xff]
    %v584 = vld [vmem:[%s572 + $0x58] sm:$0xff]
    %v585 = vld [vmem:[%s572 + $0x60] sm:$0xff]
    %v586 = vld [vmem:[%s572 + $0x68] sm:$0xff]
    %v587 = vld [vmem:[%s572 + $0x70] sm:$0xff]
    %v588 = vld [vmem:[%s572 + $0x78] sm:$0xff]
    %v589 = vpack.c.bf16 %v574, %v573
    %v590 = vpack.c.bf16 %v576, %v575
    %v591 = vpack.c.bf16 %v578, %v577
    %v592 = vpack.c.bf16 %v580, %v579
    %v593 = vpack.c.bf16 %v582, %v581
    %v594 = vpack.c.bf16 %v584, %v583
    %v595 = vpack.c.bf16 %v586, %v585
    %v596 = vpack.c.bf16 %v588, %v587
    %v598 = vsel %vm62, %v589, 0
    %v601 = vsel %vm62, %v590, 0
    %v604 = vsel %vm62, %v591, 0
    %v607 = vsel %vm62, %v592, 0
    %v610 = vsel %vm62, %v593, 0
    %v613 = vsel %vm62, %v594, 0
    %v616 = vsel %vm62, %v595, 0
    %v619 = vsel %vm62, %v596, 0
    %621 = vmatprep.subr.bf16.mxu0 0
    %622 = vmatpush1.bf16.msra.mxu0 %v60
    %623 = vmatprep.subr.bf16.mxu0 0
    %624 = vmatpush1.bf16.msra.mxu0 0
    %625 = vmatprep.subr.bf16.mxu0 0
    %626 = vmatpush1.bf16.msra.mxu0 0
    %627 = vmatprep.subr.bf16.mxu0 0
    %628 = vmatpush1.bf16.msra.mxu0 0
    %629 = vmatprep.subr.bf16.mxu0 0
    %630 = vmatpush1.bf16.msra.mxu0 0
    %631 = vmatprep.subr.bf16.mxu0 0
    %632 = vmatpush1.bf16.msra.mxu0 0
    %633 = vmatprep.subr.bf16.mxu0 0
    %634 = vmatpush1.bf16.msra.mxu0 0
    %635 = vmatprep.subr.bf16.mxu0 0
    %636 = vmatpush1.bf16.msra.mxu0 0
    %637 = vmatprep.subr.bf16.mxu0 0
    %638 = vmatpush1.bf16.msra.mxu0 0
    %639 = vmatprep.subr.bf16.mxu0 0
    %640 = vmatpush1.bf16.msra.mxu0 0
    %641 = vmatprep.subr.bf16.mxu0 0
    %642 = vmatpush1.bf16.msra.mxu0 0
    %643 = vmatprep.subr.bf16.mxu0 0
    %644 = vmatpush1.bf16.msra.mxu0 0
    %645 = vmatprep.subr.bf16.mxu0 0
    %646 = vmatpush1.bf16.msra.mxu0 0
    %647 = vmatprep.subr.bf16.mxu0 0
    %648 = vmatpush1.bf16.msra.mxu0 0
    %649 = vmatprep.subr.bf16.mxu0 0
    %650 = vmatpush1.bf16.msra.mxu0 0
    %651 = vmatprep.subr.bf16.mxu0 0
    %652 = vmatpush1.bf16.msra.mxu0 0
    %653 = vmatprep.mubr.bf16.mxu0 0
    %654 = vmatmul.mubr.bf16.gmra.mrb[0].mxu0 %v598
    %v655 = vpop.f32.mrb[0].mxu0
    %v656 = vadd.f32 %v55, %v655
    %v657 = vpop.f32.mrb[0].mxu0
    %v658 = vpop.f32.mrb[0].mxu0
    %v659 = vadd.f32 %v55, %v658
    %v660 = vpop.f32.mrb[0].mxu0
    %661 = vmatprep.mubr.bf16.mxu0 0
    %662 = vmatmul.mubr.bf16.gmra.mrb[0].mxu0 %v601
    %v663 = vpop.f32.mrb[0].mxu0
    %v664 = vadd.f32 %v55, %v663
    %v665 = vpop.f32.mrb[0].mxu0
    %v666 = vpop.f32.mrb[0].mxu0
    %v667 = vadd.f32 %v55, %v666
    %v668 = vpop.f32.mrb[0].mxu0
    %669 = vmatprep.mubr.bf16.mxu0 0
    %670 = vmatmul.mubr.bf16.gmra.mrb[0].mxu0 %v604
    %v671 = vpop.f32.mrb[0].mxu0
    %v672 = vadd.f32 %v55, %v671
    %v673 = vpop.f32.mrb[0].mxu0
    %v674 = vpop.f32.mrb[0].mxu0
    %v675 = vadd.f32 %v55, %v674
    %v676 = vpop.f32.mrb[0].mxu0
    %677 = vmatprep.mubr.bf16.mxu0 0
    %678 = vmatmul.mubr.bf16.gmra.mrb[0].mxu0 %v607
    %v679 = vpop.f32.mrb[0].mxu0
    %v680 = vadd.f32 %v55, %v679
    %v681 = vpop.f32.mrb[0].mxu0
    %v682 = vpop.f32.mrb[0].mxu0
    %v683 = vadd.f32 %v55, %v682
    %v684 = vpop.f32.mrb[0].mxu0
    %685 = vmatprep.mubr.bf16.mxu0 0
    %686 = vmatmul.mubr.bf16.gmra.mrb[0].mxu0 %v610
    %v687 = vpop.f32.mrb[0].mxu0
    %v688 = vadd.f32 %v55, %v687
    %v689 = vpop.f32.mrb[0].mxu0
    %v690 = vpop.f32.mrb[0].mxu0
    %v691 = vadd.f32 %v55, %v690
    %v692 = vpop.f32.mrb[0].mxu0
    %693 = vmatprep.mubr.bf16.mxu0 0
    %694 = vmatmul.mubr.bf16.gmra.mrb[0].mxu0 %v613
    %v695 = vpop.f32.mrb[0].mxu0
    %v696 = vadd.f32 %v55, %v695
    %v697 = vpop.f32.mrb[0].mxu0
    %v698 = vpop.f32.mrb[0].mxu0
    %v699 = vadd.f32 %v55, %v698
    %v700 = vpop.f32.mrb[0].mxu0
    %701 = vmatprep.mubr.bf16.mxu0 0
    %702 = vmatmul.mubr.bf16.gmra.mrb[0].mxu0 %v616
    %v703 = vpop.f32.mrb[0].mxu0
    %v704 = vadd.f32 %v55, %v703
    %v705 = vpop.f32.mrb[0].mxu0
    %v706 = vpop.f32.mrb[0].mxu0
    %v707 = vadd.f32 %v55, %v706
    %v708 = vpop.f32.mrb[0].mxu0
    %709 = vmatprep.mubr.bf16.mxu0 0
    %710 = vmatmul.mubr.bf16.gmra.mrb[0].mxu0 %v619
    %v711 = vpop.f32.mrb[0].mxu0
    %v712 = vadd.f32 %v55, %v711
    %v713 = vpop.f32.mrb[0].mxu0
    %v714 = vpop.f32.mrb[0].mxu0
    %v715 = vadd.f32 %v55, %v714
    %v716 = vpop.f32.mrb[0].mxu0
    %717 = vdwg.mxu0
    %v718 = vmax.f32 %v656, 0.0
    %v719 = vmax.f32 %v659, 0.0
    %v720 = vmax.f32 %v664, 0.0
    %v721 = vmax.f32 %v667, 0.0
    %v722 = vmax.f32 %v672, 0.0
    %v723 = vmax.f32 %v675, 0.0
    %v724 = vmax.f32 %v680, 0.0
    %v725 = vmax.f32 %v683, 0.0
    %v726 = vmax.f32 %v688, 0.0
    %v727 = vmax.f32 %v691, 0.0
    %v728 = vmax.f32 %v696, 0.0
    %v729 = vmax.f32 %v699, 0.0
    %v730 = vmax.f32 %v704, 0.0
    %v731 = vmax.f32 %v707, 0.0
    %v732 = vmax.f32 %v712, 0.0
    %v733 = vmax.f32 %v715, 0.0
    %734 = vst [vmem:[#allocation2 + $0x1c0] sm:$0xff] %v718
    %735 = vst [vmem:[#allocation2 + $0x1c8] sm:$0xff] %v719
    %736 = vst [vmem:[#allocation2 + $0x1d0] sm:$0xff] %v720
    %737 = vst [vmem:[#allocation2 + $0x1d8] sm:$0xff] %v721
    %738 = vst [vmem:[#allocation2 + $0x1e0] sm:$0xff] %v722
    %739 = vst [vmem:[#allocation2 + $0x1e8] sm:$0xff] %v723
    %740 = vst [vmem:[#allocation2 + $0x1f0] sm:$0xff] %v724
    %741 = vst [vmem:[#allocation2 + $0x1f8] sm:$0xff] %v725
    %742 = vst [vmem:[#allocation2 + $0x200] sm:$0xff] %v726
    %743 = vst [vmem:[#allocation2 + $0x208] sm:$0xff] %v727
    %744 = vst [vmem:[#allocation2 + $0x210] sm:$0xff] %v728
    %745 = vst [vmem:[#allocation2 + $0x218] sm:$0xff] %v729
    %746 = vst [vmem:[#allocation2 + $0x220] sm:$0xff] %v730
    %747 = vst [vmem:[#allocation2 + $0x228] sm:$0xff] %v731
    %748 = vst [vmem:[#allocation2 + $0x230] sm:$0xff] %v732
    %749 = vst [vmem:[#allocation2 + $0x238] sm:$0xff] %v733
    %v750 = vlaneseq
    %v751 = vshrl.u32 %v750, 7
    %v752 = vadd.s32 %v751, 8
    %v753 = vadd.s32 %v751, 16
    %v754 = vadd.s32 %v751, 24
    %v755 = vadd.s32 %v751, 32
    %v756 = vadd.s32 %v751, 40
    %v757 = vadd.s32 %v751, 48
    %v758 = vadd.s32 %v751, 56
    %v759 = vadd.s32 %v751, 64
    %v760 = vadd.s32 %v751, 72
    %v761 = vadd.s32 %v751, 80
    %v762 = vadd.s32 %v751, 88
    %v763 = vadd.s32 %v751, 96
    %v764 = vadd.s32 %v751, 104
    %v765 = vadd.s32 %v751, 112
    %v766 = vadd.s32 %v751, 120
    %vm767 = vcmp.lt.s32.totalorder %v751, 0
    %v768 = vsub.s32 0, %v751
    %v769 = vsel %vm767, %v768, %v751
    %v770 = vshrl.u32 %v769, 6
    %v771 = vand.u32 %v769, 63
    %v772 = vsub.s32 0, %v771
    %v773 = vsel %vm767, %v772, %v771
    %vm774 = vcmp.lt.s32.totalorder %v752, 0
    %v775 = vsub.s32 0, %v752
    %v776 = vsel %vm774, %v775, %v752
    %v777 = vshrl.u32 %v776, 6
    %v778 = vand.u32 %v776, 63
    %v779 = vsub.s32 0, %v778
    %v780 = vsel %vm774, %v779, %v778
    %vm781 = vcmp.lt.s32.totalorder %v753, 0
    %v782 = vsub.s32 0, %v753
    %v783 = vsel %vm781, %v782, %v753
    %v784 = vshrl.u32 %v783, 6
    %v785 = vand.u32 %v783, 63
    %v786 = vsub.s32 0, %v785
    %v787 = vsel %vm781, %v786, %v785
    %vm788 = vcmp.lt.s32.totalorder %v754, 0
    %v789 = vsub.s32 0, %v754
    %v790 = vsel %vm788, %v789, %v754
    %v791 = vshrl.u32 %v790, 6
    %v792 = vand.u32 %v790, 63
    %v793 = vsub.s32 0, %v792
    %v794 = vsel %vm788, %v793, %v792
    %vm795 = vcmp.lt.s32.totalorder %v755, 0
    %v796 = vsub.s32 0, %v755
    %v797 = vsel %vm795, %v796, %v755
    %v798 = vshrl.u32 %v797, 6
    %v799 = vand.u32 %v797, 63
    %v800 = vsub.s32 0, %v799
    %v801 = vsel %vm795, %v800, %v799
    %vm802 = vcmp.lt.s32.totalorder %v756, 0
    %v803 = vsub.s32 0, %v756
    %v804 = vsel %vm802, %v803, %v756
    %v805 = vshrl.u32 %v804, 6
    %v806 = vand.u32 %v804, 63
    %v807 = vsub.s32 0, %v806
    %v808 = vsel %vm802, %v807, %v806
    %vm809 = vcmp.lt.s32.totalorder %v757, 0
    %v810 = vsub.s32 0, %v757
    %v811 = vsel %vm809, %v810, %v757
    %v812 = vshrl.u32 %v811, 6
    %v813 = vand.u32 %v811, 63
    %v814 = vsub.s32 0, %v813
    %v815 = vsel %vm809, %v814, %v813
    %vm816 = vcmp.lt.s32.totalorder %v758, 0
    %v817 = vsub.s32 0, %v758
    %v818 = vsel %vm816, %v817, %v758
    %v819 = vshrl.u32 %v818, 6
    %v820 = vand.u32 %v818, 63
    %v821 = vsub.s32 0, %v820
    %v822 = vsel %vm816, %v821, %v820
    %vm823 = vcmp.lt.s32.totalorder %v759, 0
    %v824 = vsub.s32 0, %v759
    %v825 = vsel %vm823, %v824, %v759
    %v826 = vshrl.u32 %v825, 6
    %v827 = vand.u32 %v825, 63
    %v828 = vsub.s32 0, %v827
    %v829 = vsel %vm823, %v828, %v827
    %vm830 = vcmp.lt.s32.totalorder %v760, 0
    %v831 = vsub.s32 0, %v760
    %v832 = vsel %vm830, %v831, %v760
    %v833 = vshrl.u32 %v832, 6
    %v834 = vand.u32 %v832, 63
    %v835 = vsub.s32 0, %v834
    %v836 = vsel %vm830, %v835, %v834
    %vm837 = vcmp.lt.s32.totalorder %v761, 0
    %v838 = vsub.s32 0, %v761
    %v839 = vsel %vm837, %v838, %v761
    %v840 = vshrl.u32 %v839, 6
    %v841 = vand.u32 %v839, 63
    %v842 = vsub.s32 0, %v841
    %v843 = vsel %vm837, %v842, %v841
    %vm844 = vcmp.lt.s32.totalorder %v762, 0
    %v845 = vsub.s32 0, %v762
    %v846 = vsel %vm844, %v845, %v762
    %v847 = vshrl.u32 %v846, 6
    %v848 = vand.u32 %v846, 63
    %v849 = vsub.s32 0, %v848
    %v850 = vsel %vm844, %v849, %v848
    %vm851 = vcmp.lt.s32.totalorder %v763, 0
    %v852 = vsub.s32 0, %v763
    %v853 = vsel %vm851, %v852, %v763
    %v854 = vshrl.u32 %v853, 6
    %v855 = vand.u32 %v853, 63
    %v856 = vsub.s32 0, %v855
    %v857 = vsel %vm851, %v856, %v855
    %vm858 = vcmp.lt.s32.totalorder %v764, 0
    %v859 = vsub.s32 0, %v764
    %v860 = vsel %vm858, %v859, %v764
    %v861 = vshrl.u32 %v860, 6
    %v862 = vand.u32 %v860, 63
    %v863 = vsub.s32 0, %v862
    %v864 = vsel %vm858, %v863, %v862
    %vm865 = vcmp.lt.s32.totalorder %v765, 0
    %v866 = vsub.s32 0, %v765
    %v867 = vsel %vm865, %v866, %v765
    %v868 = vshrl.u32 %v867, 6
    %v869 = vand.u32 %v867, 63
    %v870 = vsub.s32 0, %v869
    %v871 = vsel %vm865, %v870, %v869
    %vm872 = vcmp.lt.s32.totalorder %v766, 0
    %v873 = vsub.s32 0, %v766
    %v874 = vsel %vm872, %v873, %v766
    %v875 = vshrl.u32 %v874, 6
    %v876 = vand.u32 %v874, 63
    %v877 = vsub.s32 0, %v876
    %v878 = vsel %vm872, %v877, %v876
    %vm879 = vcmp.ne.s32.totalorder %v773, 0
    %vm880 = vcmp.ne.s32.totalorder %v780, 0
    %vm881 = vcmp.ne.s32.totalorder %v787, 0
    %vm882 = vcmp.ne.s32.totalorder %v794, 0
    %vm883 = vcmp.ne.s32.totalorder %v801, 0
    %vm884 = vcmp.ne.s32.totalorder %v808, 0
    %vm885 = vcmp.ne.s32.totalorder %v815, 0
    %vm886 = vcmp.ne.s32.totalorder %v822, 0
    %vm887 = vcmp.ne.s32.totalorder %v829, 0
    %vm888 = vcmp.ne.s32.totalorder %v836, 0
    %vm889 = vcmp.ne.s32.totalorder %v843, 0
    %vm890 = vcmp.ne.s32.totalorder %v850, 0
    %vm891 = vcmp.ne.s32.totalorder %v857, 0
    %vm892 = vcmp.ne.s32.totalorder %v864, 0
    %vm893 = vcmp.ne.s32.totalorder %v871, 0
    %vm894 = vcmp.ne.s32.totalorder %v878, 0
    %vm895 = vcmp.lt.s32.totalorder %v773, 0
    %vm896 = vcmp.lt.s32.totalorder %v780, 0
    %vm897 = vcmp.lt.s32.totalorder %v787, 0
    %vm898 = vcmp.lt.s32.totalorder %v794, 0
    %vm899 = vcmp.lt.s32.totalorder %v801, 0
    %vm900 = vcmp.lt.s32.totalorder %v808, 0
    %vm901 = vcmp.lt.s32.totalorder %v815, 0
    %vm902 = vcmp.lt.s32.totalorder %v822, 0
    %vm903 = vcmp.lt.s32.totalorder %v829, 0
    %vm904 = vcmp.lt.s32.totalorder %v836, 0
    %vm905 = vcmp.lt.s32.totalorder %v843, 0
    %vm906 = vcmp.lt.s32.totalorder %v850, 0
    %vm907 = vcmp.lt.s32.totalorder %v857, 0
    %vm908 = vcmp.lt.s32.totalorder %v864, 0
    %vm909 = vcmp.lt.s32.totalorder %v871, 0
    %vm910 = vcmp.lt.s32.totalorder %v878, 0
    %vm911 = vmand %vm895, %vm879
    %vm912 = vmand %vm896, %vm880
    %vm913 = vmand %vm897, %vm881
    %vm914 = vmand %vm898, %vm882
    %vm915 = vmand %vm899, %vm883
    %vm916 = vmand %vm900, %vm884
    %vm917 = vmand %vm901, %vm885
    %vm918 = vmand %vm902, %vm886
    %vm919 = vmand %vm903, %vm887
    %vm920 = vmand %vm904, %vm888
    %vm921 = vmand %vm905, %vm889
    %vm922 = vmand %vm906, %vm890
    %vm923 = vmand %vm907, %vm891
    %vm924 = vmand %vm908, %vm892
    %vm925 = vmand %vm909, %vm893
    %vm926 = vmand %vm910, %vm894
    %v927 = vadd.s32 %v773, 64
    %v928 = vadd.s32 %v780, 64
    %v929 = vadd.s32 %v787, 64
    %v930 = vadd.s32 %v794, 64
    %v931 = vadd.s32 %v801, 64
    %v932 = vadd.s32 %v808, 64
    %v933 = vadd.s32 %v815, 64
    %v934 = vadd.s32 %v822, 64
    %v935 = vadd.s32 %v829, 64
    %v936 = vadd.s32 %v836, 64
    %v937 = vadd.s32 %v843, 64
    %v938 = vadd.s32 %v850, 64
    %v939 = vadd.s32 %v857, 64
    %v940 = vadd.s32 %v864, 64
    %v941 = vadd.s32 %v871, 64
    %v942 = vadd.s32 %v878, 64
    %v943 = vsel %vm911, %v927, %v773
    %v944 = vsel %vm912, %v928, %v780
    %v945 = vsel %vm913, %v929, %v787
    %v946 = vsel %vm914, %v930, %v794
    %v947 = vsel %vm915, %v931, %v801
    %v948 = vsel %vm916, %v932, %v808
    %v949 = vsel %vm917, %v933, %v815
    %v950 = vsel %vm918, %v934, %v822
    %v951 = vsel %vm919, %v935, %v829
    %v952 = vsel %vm920, %v936, %v836
    %v953 = vsel %vm921, %v937, %v843
    %v954 = vsel %vm922, %v938, %v850
    %v955 = vsel %vm923, %v939, %v857
    %v956 = vsel %vm924, %v940, %v864
    %v957 = vsel %vm925, %v941, %v871
    %v958 = vsel %vm926, %v942, %v878
    %vm959 = vcmp.lt.s32.totalorder %v943, 0
    %v960 = vsub.s32 0, %v943
    %v961 = vsel %vm959, %v960, %v943
    %v962 = vshrl.u32 %v961, 3
    %v963 = vand.u32 %v961, 7
    %v964 = vsub.s32 0, %v963
    %v965 = vsel %vm959, %v964, %v963
    %vm966 = vcmp.lt.s32.totalorder %v944, 0
    %v967 = vsub.s32 0, %v944
    %v968 = vsel %vm966, %v967, %v944
    %v969 = vshrl.u32 %v968, 3
    %v970 = vand.u32 %v968, 7
    %v971 = vsub.s32 0, %v970
    %v972 = vsel %vm966, %v971, %v970
    %vm973 = vcmp.lt.s32.totalorder %v945, 0
    %v974 = vsub.s32 0, %v945
    %v975 = vsel %vm973, %v974, %v945
    %v976 = vshrl.u32 %v975, 3
    %v977 = vand.u32 %v975, 7
    %v978 = vsub.s32 0, %v977
    %v979 = vsel %vm973, %v978, %v977
    %vm980 = vcmp.lt.s32.totalorder %v946, 0
    %v981 = vsub.s32 0, %v946
    %v982 = vsel %vm980, %v981, %v946
    %v983 = vshrl.u32 %v982, 3
    %v984 = vand.u32 %v982, 7
    %v985 = vsub.s32 0, %v984
    %v986 = vsel %vm980, %v985, %v984
    %vm987 = vcmp.lt.s32.totalorder %v947, 0
    %v988 = vsub.s32 0, %v947
    %v989 = vsel %vm987, %v988, %v947
    %v990 = vshrl.u32 %v989, 3
    %v991 = vand.u32 %v989, 7
    %v992 = vsub.s32 0, %v991
    %v993 = vsel %vm987, %v992, %v991
    %vm994 = vcmp.lt.s32.totalorder %v948, 0
    %v995 = vsub.s32 0, %v948
    %v996 = vsel %vm994, %v995, %v948
    %v997 = vshrl.u32 %v996, 3
    %v998 = vand.u32 %v996, 7
    %v999 = vsub.s32 0, %v998
    %v1000 = vsel %vm994, %v999, %v998
    %vm1001 = vcmp.lt.s32.totalorder %v949, 0
    %v1002 = vsub.s32 0, %v949
    %v1003 = vsel %vm1001, %v1002, %v949
    %v1004 = vshrl.u32 %v1003, 3
    %v1005 = vand.u32 %v1003, 7
    %v1006 = vsub.s32 0, %v1005
    %v1007 = vsel %vm1001, %v1006, %v1005
    %vm1008 = vcmp.lt.s32.totalorder %v950, 0
    %v1009 = vsub.s32 0, %v950
    %v1010 = vsel %vm1008, %v1009, %v950
    %v1011 = vshrl.u32 %v1010, 3
    %v1012 = vand.u32 %v1010, 7
    %v1013 = vsub.s32 0, %v1012
    %v1014 = vsel %vm1008, %v1013, %v1012
    %vm1015 = vcmp.lt.s32.totalorder %v951, 0
    %v1016 = vsub.s32 0, %v951
    %v1017 = vsel %vm1015, %v1016, %v951
    %v1018 = vshrl.u32 %v1017, 3
    %v1019 = vand.u32 %v1017, 7
    %v1020 = vsub.s32 0, %v1019
    %v1021 = vsel %vm1015, %v1020, %v1019
    %vm1022 = vcmp.lt.s32.totalorder %v952, 0
    %v1023 = vsub.s32 0, %v952
    %v1024 = vsel %vm1022, %v1023, %v952
    %v1025 = vshrl.u32 %v1024, 3
    %v1026 = vand.u32 %v1024, 7
    %v1027 = vsub.s32 0, %v1026
    %v1028 = vsel %vm1022, %v1027, %v1026
    %vm1029 = vcmp.lt.s32.totalorder %v953, 0
    %v1030 = vsub.s32 0, %v953
    %v1031 = vsel %vm1029, %v1030, %v953
    %v1032 = vshrl.u32 %v1031, 3
    %v1033 = vand.u32 %v1031, 7
    %v1034 = vsub.s32 0, %v1033
    %v1035 = vsel %vm1029, %v1034, %v1033
    %vm1036 = vcmp.lt.s32.totalorder %v954, 0
    %v1037 = vsub.s32 0, %v954
    %v1038 = vsel %vm1036, %v1037, %v954
    %v1039 = vshrl.u32 %v1038, 3
    %v1040 = vand.u32 %v1038, 7
    %v1041 = vsub.s32 0, %v1040
    %v1042 = vsel %vm1036, %v1041, %v1040
    %vm1043 = vcmp.lt.s32.totalorder %v955, 0
    %v1044 = vsub.s32 0, %v955
    %v1045 = vsel %vm1043, %v1044, %v955
    %v1046 = vshrl.u32 %v1045, 3
    %v1047 = vand.u32 %v1045, 7
    %v1048 = vsub.s32 0, %v1047
    %v1049 = vsel %vm1043, %v1048, %v1047
    %vm1050 = vcmp.lt.s32.totalorder %v956, 0
    %v1051 = vsub.s32 0, %v956
    %v1052 = vsel %vm1050, %v1051, %v956
    %v1053 = vshrl.u32 %v1052, 3
    %v1054 = vand.u32 %v1052, 7
    %v1055 = vsub.s32 0, %v1054
    %v1056 = vsel %vm1050, %v1055, %v1054
    %vm1057 = vcmp.lt.s32.totalorder %v957, 0
    %v1058 = vsub.s32 0, %v957
    %v1059 = vsel %vm1057, %v1058, %v957
    %v1060 = vshrl.u32 %v1059, 3
    %v1061 = vand.u32 %v1059, 7
    %v1062 = vsub.s32 0, %v1061
    %v1063 = vsel %vm1057, %v1062, %v1061
    %vm1064 = vcmp.lt.s32.totalorder %v958, 0
    %v1065 = vsub.s32 0, %v958
    %v1066 = vsel %vm1064, %v1065, %v958
    %v1067 = vshrl.u32 %v1066, 3
    %v1068 = vand.u32 %v1066, 7
    %v1069 = vsub.s32 0, %v1068
    %v1070 = vsel %vm1064, %v1069, %v1068
    %vm1071 = vcmp.ne.s32.totalorder %v965, 0
    %vm1072 = vcmp.ne.s32.totalorder %v972, 0
    %vm1073 = vcmp.ne.s32.totalorder %v979, 0
    %vm1074 = vcmp.ne.s32.totalorder %v986, 0
    %vm1075 = vcmp.ne.s32.totalorder %v993, 0
    %vm1076 = vcmp.ne.s32.totalorder %v1000, 0
    %vm1077 = vcmp.ne.s32.totalorder %v1007, 0
    %vm1078 = vcmp.ne.s32.totalorder %v1014, 0
    %vm1079 = vcmp.ne.s32.totalorder %v1021, 0
    %vm1080 = vcmp.ne.s32.totalorder %v1028, 0
    %vm1081 = vcmp.ne.s32.totalorder %v1035, 0
    %vm1082 = vcmp.ne.s32.totalorder %v1042, 0
    %vm1083 = vcmp.ne.s32.totalorder %v1049, 0
    %vm1084 = vcmp.ne.s32.totalorder %v1056, 0
    %vm1085 = vcmp.ne.s32.totalorder %v1063, 0
    %vm1086 = vcmp.ne.s32.totalorder %v1070, 0
    %vm1087 = vcmp.lt.s32.totalorder %v965, 0
    %vm1088 = vcmp.lt.s32.totalorder %v972, 0
    %vm1089 = vcmp.lt.s32.totalorder %v979, 0
    %vm1090 = vcmp.lt.s32.totalorder %v986, 0
    %vm1091 = vcmp.lt.s32.totalorder %v993, 0
    %vm1092 = vcmp.lt.s32.totalorder %v1000, 0
    %vm1093 = vcmp.lt.s32.totalorder %v1007, 0
    %vm1094 = vcmp.lt.s32.totalorder %v1014, 0
    %vm1095 = vcmp.lt.s32.totalorder %v1021, 0
    %vm1096 = vcmp.lt.s32.totalorder %v1028, 0
    %vm1097 = vcmp.lt.s32.totalorder %v1035, 0
    %vm1098 = vcmp.lt.s32.totalorder %v1042, 0
    %vm1099 = vcmp.lt.s32.totalorder %v1049, 0
    %vm1100 = vcmp.lt.s32.totalorder %v1056, 0
    %vm1101 = vcmp.lt.s32.totalorder %v1063, 0
    %vm1102 = vcmp.lt.s32.totalorder %v1070, 0
    %vm1103 = vmand %vm1087, %vm1071
    %vm1104 = vmand %vm1088, %vm1072
    %vm1105 = vmand %vm1089, %vm1073
    %vm1106 = vmand %vm1090, %vm1074
    %vm1107 = vmand %vm1091, %vm1075
    %vm1108 = vmand %vm1092, %vm1076
    %vm1109 = vmand %vm1093, %vm1077
    %vm1110 = vmand %vm1094, %vm1078
    %vm1111 = vmand %vm1095, %vm1079
    %vm1112 = vmand %vm1096, %vm1080
    %vm1113 = vmand %vm1097, %vm1081
    %vm1114 = vmand %vm1098, %vm1082
    %vm1115 = vmand %vm1099, %vm1083
    %vm1116 = vmand %vm1100, %vm1084
    %vm1117 = vmand %vm1101, %vm1085
    %vm1118 = vmand %vm1102, %vm1086
    %v1119 = vadd.s32 %v965, 8
    %v1120 = vadd.s32 %v972, 8
    %v1121 = vadd.s32 %v979, 8
    %v1122 = vadd.s32 %v986, 8
    %v1123 = vadd.s32 %v993, 8
    %v1124 = vadd.s32 %v1000, 8
    %v1125 = vadd.s32 %v1007, 8
    %v1126 = vadd.s32 %v1014, 8
    %v1127 = vadd.s32 %v1021, 8
    %v1128 = vadd.s32 %v1028, 8
    %v1129 = vadd.s32 %v1035, 8
    %v1130 = vadd.s32 %v1042, 8
    %v1131 = vadd.s32 %v1049, 8
    %v1132 = vadd.s32 %v1056, 8
    %v1133 = vadd.s32 %v1063, 8
    %v1134 = vadd.s32 %v1070, 8
    %v1135 = vsel %vm1103, %v1119, %v965
    %v1136 = vsel %vm1104, %v1120, %v972
    %v1137 = vsel %vm1105, %v1121, %v979
    %v1138 = vsel %vm1106, %v1122, %v986
    %v1139 = vsel %vm1107, %v1123, %v993
    %v1140 = vsel %vm1108, %v1124, %v1000
    %v1141 = vsel %vm1109, %v1125, %v1007
    %v1142 = vsel %vm1110, %v1126, %v1014
    %v1143 = vsel %vm1111, %v1127, %v1021
    %v1144 = vsel %vm1112, %v1128, %v1028
    %v1145 = vsel %vm1113, %v1129, %v1035
    %v1146 = vsel %vm1114, %v1130, %v1042
    %v1147 = vsel %vm1115, %v1131, %v1049
    %v1148 = vsel %vm1116, %v1132, %v1056
    %v1149 = vsel %vm1117, %v1133, %v1063
    %v1150 = vsel %vm1118, %v1134, %v1070
    %vm1151 = vcmp.ge.s32.totalorder %v943, 8
    %vm1152 = vcmp.ge.s32.totalorder %v944, 8
    %vm1153 = vcmp.ge.s32.totalorder %v945, 8
    %vm1154 = vcmp.ge.s32.totalorder %v946, 8
    %vm1155 = vcmp.ge.s32.totalorder %v947, 8
    %vm1156 = vcmp.ge.s32.totalorder %v948, 8
    %vm1157 = vcmp.ge.s32.totalorder %v949, 8
    %vm1158 = vcmp.ge.s32.totalorder %v950, 8
    %vm1159 = vcmp.ge.s32.totalorder %v951, 8
    %vm1160 = vcmp.ge.s32.totalorder %v952, 8
    %vm1161 = vcmp.ge.s32.totalorder %v953, 8
    %vm1162 = vcmp.ge.s32.totalorder %v954, 8
    %vm1163 = vcmp.ge.s32.totalorder %v955, 8
    %vm1164 = vcmp.ge.s32.totalorder %v956, 8
    %vm1165 = vcmp.ge.s32.totalorder %v957, 8
    %vm1166 = vcmp.ge.s32.totalorder %v958, 8
    %vm1167 = vcmp.ne.s32.totalorder %v1135, 0
    %vm1168 = vcmp.ne.s32.totalorder %v1136, 0
    %vm1169 = vcmp.ne.s32.totalorder %v1137, 0
    %vm1170 = vcmp.ne.s32.totalorder %v1138, 0
    %vm1171 = vcmp.ne.s32.totalorder %v1139, 0
    %vm1172 = vcmp.ne.s32.totalorder %v1140, 0
    %vm1173 = vcmp.ne.s32.totalorder %v1141, 0
    %vm1174 = vcmp.ne.s32.totalorder %v1142, 0
    %vm1175 = vcmp.ne.s32.totalorder %v1143, 0
    %vm1176 = vcmp.ne.s32.totalorder %v1144, 0
    %vm1177 = vcmp.ne.s32.totalorder %v1145, 0
    %vm1178 = vcmp.ne.s32.totalorder %v1146, 0
    %vm1179 = vcmp.ne.s32.totalorder %v1147, 0
    %vm1180 = vcmp.ne.s32.totalorder %v1148, 0
    %vm1181 = vcmp.ne.s32.totalorder %v1149, 0
    %vm1182 = vcmp.ne.s32.totalorder %v1150, 0
    %v1183 = vld [vmem:[#allocation2 + $0x1b7] sm:$0xff]
    %v1184 = vld [vmem:[#allocation2 + $0x1bf] sm:$0xff]
    %v1185 = vld [vmem:[#allocation2 + $0x1c7] sm:$0xff]
    %v1186 = vld [vmem:[#allocation2 + $0x1cf] sm:$0xff]
    %v1187 = vld [vmem:[#allocation2 + $0x1d7] sm:$0xff]
    %v1188 = vld [vmem:[#allocation2 + $0x1df] sm:$0xff]
    %v1189 = vld [vmem:[#allocation2 + $0x1e7] sm:$0xff]
    %v1190 = vld [vmem:[#allocation2 + $0x1ef] sm:$0xff]
    %v1191 = vld [vmem:[#allocation2 + $0x1f7] sm:$0xff]
    %v1192 = vld [vmem:[#allocation2 + $0x1ff] sm:$0xff]
    %v1193 = vld [vmem:[#allocation2 + $0x207] sm:$0xff]
    %v1194 = vld [vmem:[#allocation2 + $0x20f] sm:$0xff]
    %v1195 = vld [vmem:[#allocation2 + $0x217] sm:$0xff]
    %v1196 = vld [vmem:[#allocation2 + $0x21f] sm:$0xff]
    %v1197 = vld [vmem:[#allocation2 + $0x227] sm:$0xff]
    %v1198 = vld [vmem:[#allocation2 + $0x22f] sm:$0xff]
    %vm1199 = vmand %vm1151, %vm1167
    %vm1200 = vmand %vm1152, %vm1168
    %vm1201 = vmand %vm1153, %vm1169
    %vm1202 = vmand %vm1154, %vm1170
    %vm1203 = vmand %vm1155, %vm1171
    %vm1204 = vmand %vm1156, %vm1172
    %vm1205 = vmand %vm1157, %vm1173
    %vm1206 = vmand %vm1158, %vm1174
    %vm1207 = vmand %vm1159, %vm1175
    %vm1208 = vmand %vm1160, %vm1176
    %vm1209 = vmand %vm1161, %vm1177
    %vm1210 = vmand %vm1162, %vm1178
    %vm1211 = vmand %vm1163, %vm1179
    %vm1212 = vmand %vm1164, %vm1180
    %vm1213 = vmand %vm1165, %vm1181
    %vm1214 = vmand %vm1166, %vm1182
    %v1215 = vsel %vm1199, 1, 0
    %v1216 = vsel %vm1200, 1, 0
    %v1217 = vsel %vm1201, 1, 0
    %v1218 = vsel %vm1202, 1, 0
    %v1219 = vsel %vm1203, 1, 0
    %v1220 = vsel %vm1204, 1, 0
    %v1221 = vsel %vm1205, 1, 0
    %v1222 = vsel %vm1206, 1, 0
    %v1223 = vsel %vm1207, 1, 0
    %v1224 = vsel %vm1208, 1, 0
    %v1225 = vsel %vm1209, 1, 0
    %v1226 = vsel %vm1210, 1, 0
    %v1227 = vsel %vm1211, 1, 0
    %v1228 = vsel %vm1212, 1, 0
    %v1229 = vsel %vm1213, 1, 0
    %v1230 = vsel %vm1214, 1, 0
    %vm1231 = vcmp.eq.s32.totalorder %v1215, 1
    %vm1232 = vcmp.eq.s32.totalorder %v1216, 1
    %vm1233 = vcmp.eq.s32.totalorder %v1217, 1
    %vm1234 = vcmp.eq.s32.totalorder %v1218, 1
    %vm1235 = vcmp.eq.s32.totalorder %v1219, 1
    %vm1236 = vcmp.eq.s32.totalorder %v1220, 1
    %vm1237 = vcmp.eq.s32.totalorder %v1221, 1
    %vm1238 = vcmp.eq.s32.totalorder %v1222, 1
    %vm1239 = vcmp.eq.s32.totalorder %v1223, 1
    %vm1240 = vcmp.eq.s32.totalorder %v1224, 1
    %vm1241 = vcmp.eq.s32.totalorder %v1225, 1
    %vm1242 = vcmp.eq.s32.totalorder %v1226, 1
    %vm1243 = vcmp.eq.s32.totalorder %v1227, 1
    %vm1244 = vcmp.eq.s32.totalorder %v1228, 1
    %vm1245 = vcmp.eq.s32.totalorder %v1229, 1
    %vm1246 = vcmp.eq.s32.totalorder %v1230, 1
    %v1247 = vsel %vm1231, %v1183, 0.0
    %v1248 = vsel %vm1232, %v1184, 0.0
    %v1249 = vsel %vm1233, %v1185, 0.0
    %v1250 = vsel %vm1234, %v1186, 0.0
    %v1251 = vsel %vm1235, %v1187, 0.0
    %v1252 = vsel %vm1236, %v1188, 0.0
    %v1253 = vsel %vm1237, %v1189, 0.0
    %v1254 = vsel %vm1238, %v1190, 0.0
    %v1255 = vsel %vm1239, %v1191, 0.0
    %v1256 = vsel %vm1240, %v1192, 0.0
    %v1257 = vsel %vm1241, %v1193, 0.0
    %v1258 = vsel %vm1242, %v1194, 0.0
    %v1259 = vsel %vm1243, %v1195, 0.0
    %v1260 = vsel %vm1244, %v1196, 0.0
    %v1261 = vsel %vm1245, %v1197, 0.0
    %v1262 = vsel %vm1246, %v1198, 0.0
    %v1263 = vpack.c.bf16 %v1248, %v1247
    %v1264 = vpack.c.bf16 %v1250, %v1249
    %v1265 = vpack.c.bf16 %v1252, %v1251
    %v1266 = vpack.c.bf16 %v1254, %v1253
    %v1267 = vpack.c.bf16 %v1256, %v1255
    %v1268 = vpack.c.bf16 %v1258, %v1257
    %v1269 = vpack.c.bf16 %v1260, %v1259
    %v1270 = vpack.c.bf16 %v1262, %v1261
    %v1271 = vld [vmem:[%s2] sm:$0xf]
    %v1272 = vld [vmem:[%s2 + $0x4] sm:$0xf]
    %v1273 = vld [vmem:[%s2 + $0x8] sm:$0xf]
    %v1274 = vld [vmem:[%s2 + $0xc] sm:$0xf]
    %v1275 = vld [vmem:[%s2 + $0x10] sm:$0xf]
    %v1276 = vld [vmem:[%s2 + $0x14] sm:$0xf]
    %v1277 = vld [vmem:[%s2 + $0x18] sm:$0xf]
    %v1278 = vld [vmem:[%s2 + $0x1c] sm:$0xf]
    %v1279 = vld [vmem:[%s2 + $0x20] sm:$0xf]
    %v1280 = vld [vmem:[%s2 + $0x24] sm:$0xf]
    %v1281 = vld [vmem:[%s2 + $0x28] sm:$0xf]
    %v1282 = vld [vmem:[%s2 + $0x2c] sm:$0xf]
    %v1283 = vld [vmem:[%s2 + $0x30] sm:$0xf]
    %v1284 = vld [vmem:[%s2 + $0x34] sm:$0xf]
    %v1285 = vld [vmem:[%s2 + $0x38] sm:$0xf]
    %v1286 = vld [vmem:[%s2 + $0x3c] sm:$0xf]
    %v1287 = vld [vmem:[#allocation2 + $0x128] sm:$0xff]
    %v1288 = vld [vmem:[#allocation2 + $0x130] sm:$0xff]
    %v1289 = vld [vmem:[#allocation2 + $0x138] sm:$0xff]
    %v1290 = vld [vmem:[#allocation2 + $0x140] sm:$0xff]
    %v1291 = vld [vmem:[#allocation2 + $0x148] sm:$0xff]
    %v1292 = vld [vmem:[#allocation2 + $0x150] sm:$0xff]
    %v1293 = vld [vmem:[#allocation2 + $0x158] sm:$0xff]
    %v1294 = vld [vmem:[#allocation2 + $0x160] sm:$0xff]
    %v1295 = vld [vmem:[#allocation2 + $0x168] sm:$0xff]
    %v1296 = vld [vmem:[#allocation2 + $0x170] sm:$0xff]
    %v1297 = vld [vmem:[#allocation2 + $0x178] sm:$0xff]
    %v1298 = vld [vmem:[#allocation2 + $0x180] sm:$0xff]
    %v1299 = vld [vmem:[#allocation2 + $0x188] sm:$0xff]
    %v1300 = vld [vmem:[#allocation2 + $0x190] sm:$0xff]
    %v1301 = vld [vmem:[#allocation2 + $0x198] sm:$0xff]
    %v1302 = vld [vmem:[#allocation2 + $0x1a0] sm:$0xff]
    %v1303 = vsel %vm1151, 1, 0
    %v1304 = vsel %vm1152, 1, 0
    %v1305 = vsel %vm1153, 1, 0
    %v1306 = vsel %vm1154, 1, 0
    %v1307 = vsel %vm1155, 1, 0
    %v1308 = vsel %vm1156, 1, 0
    %v1309 = vsel %vm1157, 1, 0
    %v1310 = vsel %vm1158, 1, 0
    %v1311 = vsel %vm1159, 1, 0
    %v1312 = vsel %vm1160, 1, 0
    %v1313 = vsel %vm1161, 1, 0
    %v1314 = vsel %vm1162, 1, 0
    %v1315 = vsel %vm1163, 1, 0
    %v1316 = vsel %vm1164, 1, 0
    %v1317 = vsel %vm1165, 1, 0
    %v1318 = vsel %vm1166, 1, 0
    %vm1319 = vcmp.eq.s32.totalorder %v1303, 1
    %vm1320 = vcmp.eq.s32.totalorder %v1304, 1
    %vm1321 = vcmp.eq.s32.totalorder %v1305, 1
    %vm1322 = vcmp.eq.s32.totalorder %v1306, 1
    %vm1323 = vcmp.eq.s32.totalorder %v1307, 1
    %vm1324 = vcmp.eq.s32.totalorder %v1308, 1
    %vm1325 = vcmp.eq.s32.totalorder %v1309, 1
    %vm1326 = vcmp.eq.s32.totalorder %v1310, 1
    %vm1327 = vcmp.eq.s32.totalorder %v1311, 1
    %vm1328 = vcmp.eq.s32.totalorder %v1312, 1
    %vm1329 = vcmp.eq.s32.totalorder %v1313, 1
    %vm1330 = vcmp.eq.s32.totalorder %v1314, 1
    %vm1331 = vcmp.eq.s32.totalorder %v1315, 1
    %vm1332 = vcmp.eq.s32.totalorder %v1316, 1
    %vm1333 = vcmp.eq.s32.totalorder %v1317, 1
    %vm1334 = vcmp.eq.s32.totalorder %v1318, 1
    %v1335 = vsel %vm1319, %v1287, 0.0
    %v1336 = vsel %vm1320, %v1288, 0.0
    %v1337 = vsel %vm1321, %v1289, 0.0
    %v1338 = vsel %vm1322, %v1290, 0.0
    %v1339 = vsel %vm1323, %v1291, 0.0
    %v1340 = vsel %vm1324, %v1292, 0.0
    %v1341 = vsel %vm1325, %v1293, 0.0
    %v1342 = vsel %vm1326, %v1294, 0.0
    %v1343 = vsel %vm1327, %v1295, 0.0
    %v1344 = vsel %vm1328, %v1296, 0.0
    %v1345 = vsel %vm1329, %v1297, 0.0
    %v1346 = vsel %vm1330, %v1298, 0.0
    %v1347 = vsel %vm1331, %v1299, 0.0
    %v1348 = vsel %vm1332, %v1300, 0.0
    %v1349 = vsel %vm1333, %v1301, 0.0
    %v1350 = vsel %vm1334, %v1302, 0.0
    %v1351 = vpack.c.bf16 %v1336, %v1335
    %v1352 = vpack.c.bf16 %v1338, %v1337
    %v1353 = vpack.c.bf16 %v1340, %v1339
    %v1354 = vpack.c.bf16 %v1342, %v1341
    %v1355 = vpack.c.bf16 %v1344, %v1343
    %v1356 = vpack.c.bf16 %v1346, %v1345
    %v1357 = vpack.c.bf16 %v1348, %v1347
    %v1358 = vpack.c.bf16 %v1350, %v1349
    %s1359 = scalar_lea.vmem %s2, 64
    %v1360 = vld [vmem:[%s1359] sm:$0xf]
    %v1361 = vld [vmem:[%s1359 + $0x4] sm:$0xf]
    %v1362 = vld [vmem:[%s1359 + $0x8] sm:$0xf]
    %v1363 = vld [vmem:[%s1359 + $0xc] sm:$0xf]
    %v1364 = vld [vmem:[%s1359 + $0x10] sm:$0xf]
    %v1365 = vld [vmem:[%s1359 + $0x14] sm:$0xf]
    %v1366 = vld [vmem:[%s1359 + $0x18] sm:$0xf]
    %v1367 = vld [vmem:[%s1359 + $0x1c] sm:$0xf]
    %v1368 = vld [vmem:[%s1359 + $0x20] sm:$0xf]
    %v1369 = vld [vmem:[%s1359 + $0x24] sm:$0xf]
    %v1370 = vld [vmem:[%s1359 + $0x28] sm:$0xf]
    %v1371 = vld [vmem:[%s1359 + $0x2c] sm:$0xf]
    %v1372 = vld [vmem:[%s1359 + $0x30] sm:$0xf]
    %v1373 = vld [vmem:[%s1359 + $0x34] sm:$0xf]
    %v1374 = vld [vmem:[%s1359 + $0x38] sm:$0xf]
    %v1375 = vld [vmem:[%s1359 + $0x3c] sm:$0xf]
    %v1392 = vunpack.c.l.b16 %v1360
    %v1393 = vunpack.c.l.b16 %v1361
    %v1394 = vunpack.c.l.b16 %v1362
    %v1395 = vunpack.c.l.b16 %v1363
    %v1396 = vunpack.c.l.b16 %v1364
    %v1397 = vunpack.c.l.b16 %v1365
    %v1398 = vunpack.c.l.b16 %v1366
    %v1399 = vunpack.c.l.b16 %v1367
    %v1400 = vunpack.c.l.b16 %v1368
    %v1401 = vunpack.c.l.b16 %v1369
    %v1402 = vunpack.c.l.b16 %v1370
    %v1403 = vunpack.c.l.b16 %v1371
    %v1404 = vunpack.c.l.b16 %v1372
    %v1405 = vunpack.c.l.b16 %v1373
    %v1406 = vunpack.c.l.b16 %v1374
    %v1407 = vunpack.c.l.b16 %v1375
    %v1408 = vpack.c.b16 %v1393, %v1392
    %v1409 = vpack.c.b16 %v1395, %v1394
    %v1410 = vpack.c.b16 %v1397, %v1396
    %v1411 = vpack.c.b16 %v1399, %v1398
    %v1412 = vpack.c.b16 %v1401, %v1400
    %v1413 = vpack.c.b16 %v1403, %v1402
    %v1414 = vpack.c.b16 %v1405, %v1404
    %v1415 = vpack.c.b16 %v1407, %v1406
    %1424 = vmatprep.subr.bf16.mxu0 0
    %1425 = vmatpush1.bf16.msra.mxu0 %v1408
    %1426 = vmatprep.subr.bf16.mxu0 0
    %1427 = vmatpush1.bf16.msra.mxu0 %v1409
    %1428 = vmatprep.subr.bf16.mxu0 0
    %1429 = vmatpush1.bf16.msra.mxu0 %v1410
    %1430 = vmatprep.subr.bf16.mxu0 0
    %1431 = vmatpush1.bf16.msra.mxu0 %v1411
    %1432 = vmatprep.subr.bf16.mxu0 0
    %1433 = vmatpush1.bf16.msra.mxu0 %v1412
    %1434 = vmatprep.subr.bf16.mxu0 0
    %1435 = vmatpush1.bf16.msra.mxu0 %v1413
    %1436 = vmatprep.subr.bf16.mxu0 0
    %1437 = vmatpush1.bf16.msra.mxu0 %v1414
    %1438 = vmatprep.subr.bf16.mxu0 0
    %1439 = vmatpush1.bf16.msra.mxu0 %v1415
    %1440 = vmatprep.subr.bf16.mxu0 0
    %1441 = vmatpush1.bf16.msra.mxu0 0
    %1442 = vmatprep.subr.bf16.mxu0 0
    %1443 = vmatpush1.bf16.msra.mxu0 0
    %1444 = vmatprep.subr.bf16.mxu0 0
    %1445 = vmatpush1.bf16.msra.mxu0 0
    %1446 = vmatprep.subr.bf16.mxu0 0
    %1447 = vmatpush1.bf16.msra.mxu0 0
    %1448 = vmatprep.subr.bf16.mxu0 0
    %1449 = vmatpush1.bf16.msra.mxu0 0
    %1450 = vmatprep.subr.bf16.mxu0 0
    %1451 = vmatpush1.bf16.msra.mxu0 0
    %1452 = vmatprep.subr.bf16.mxu0 0
    %1453 = vmatpush1.bf16.msra.mxu0 0
    %1454 = vmatprep.subr.bf16.mxu0 0
    %1455 = vmatpush1.bf16.msra.mxu0 0
    %1456 = vmatprep.mubr.bf16.mxu0 0
    %1457 = vmatmul.mubr.bf16.gmra.mrb[0].mxu0 %v1351
    %v1458 = vpop.f32.mrb[0].mxu0
    %v1459 = vadd.f32 0.0, %v1458
    %v1460 = vpop.f32.mrb[0].mxu0
    %v1461 = vpop.f32.mrb[0].mxu0
    %v1462 = vadd.f32 0.0, %v1461
    %v1463 = vpop.f32.mrb[0].mxu0
    %1464 = vmatprep.mubr.bf16.mxu0 0
    %1465 = vmatmul.mubr.bf16.gmra.mrb[0].mxu0 %v1352
    %v1466 = vpop.f32.mrb[0].mxu0
    %v1467 = vadd.f32 0.0, %v1466
    %v1468 = vpop.f32.mrb[0].mxu0
    %v1469 = vpop.f32.mrb[0].mxu0
    %v1470 = vadd.f32 0.0, %v1469
    %v1471 = vpop.f32.mrb[0].mxu0
    %1472 = vmatprep.mubr.bf16.mxu0 0
    %1473 = vmatmul.mubr.bf16.gmra.mrb[0].mxu0 %v1353
    %v1474 = vpop.f32.mrb[0].mxu0
    %v1475 = vadd.f32 0.0, %v1474
    %v1476 = vpop.f32.mrb[0].mxu0
    %v1477 = vpop.f32.mrb[0].mxu0
    %v1478 = vadd.f32 0.0, %v1477
    %v1479 = vpop.f32.mrb[0].mxu0
    %1480 = vmatprep.mubr.bf16.mxu0 0
    %1481 = vmatmul.mubr.bf16.gmra.mrb[0].mxu0 %v1354
    %v1482 = vpop.f32.mrb[0].mxu0
    %v1483 = vadd.f32 0.0, %v1482
    %v1484 = vpop.f32.mrb[0].mxu0
    %v1485 = vpop.f32.mrb[0].mxu0
    %v1486 = vadd.f32 0.0, %v1485
    %v1487 = vpop.f32.mrb[0].mxu0
    %1488 = vmatprep.mubr.bf16.mxu0 0
    %1489 = vmatmul.mubr.bf16.gmra.mrb[0].mxu0 %v1355
    %v1490 = vpop.f32.mrb[0].mxu0
    %v1491 = vadd.f32 0.0, %v1490
    %v1492 = vpop.f32.mrb[0].mxu0
    %v1493 = vpop.f32.mrb[0].mxu0
    %v1494 = vadd.f32 0.0, %v1493
    %v1495 = vpop.f32.mrb[0].mxu0
    %1496 = vmatprep.mubr.bf16.mxu0 0
    %1497 = vmatmul.mubr.bf16.gmra.mrb[0].mxu0 %v1356
    %v1498 = vpop.f32.mrb[0].mxu0
    %v1499 = vadd.f32 0.0, %v1498
    %v1500 = vpop.f32.mrb[0].mxu0
    %v1501 = vpop.f32.mrb[0].mxu0
    %v1502 = vadd.f32 0.0, %v1501
    %v1503 = vpop.f32.mrb[0].mxu0
    %1504 = vmatprep.mubr.bf16.mxu0 0
    %1505 = vmatmul.mubr.bf16.gmra.mrb[0].mxu0 %v1357
    %v1506 = vpop.f32.mrb[0].mxu0
    %v1507 = vadd.f32 0.0, %v1506
    %v1508 = vpop.f32.mrb[0].mxu0
    %v1509 = vpop.f32.mrb[0].mxu0
    %v1510 = vadd.f32 0.0, %v1509
    %v1511 = vpop.f32.mrb[0].mxu0
    %1512 = vmatprep.mubr.bf16.mxu0 0
    %1513 = vmatmul.mubr.bf16.gmra.mrb[0].mxu0 %v1358
    %v1514 = vpop.f32.mrb[0].mxu0
    %v1515 = vadd.f32 0.0, %v1514
    %v1516 = vpop.f32.mrb[0].mxu0
    %v1517 = vpop.f32.mrb[0].mxu0
    %v1518 = vadd.f32 0.0, %v1517
    %v1519 = vpop.f32.mrb[0].mxu0
    %1520 = vdwg.mxu0
    %v1537 = vunpack.c.l.b16 %v1271
    %v1538 = vunpack.c.l.b16 %v1272
    %v1539 = vunpack.c.l.b16 %v1273
    %v1540 = vunpack.c.l.b16 %v1274
    %v1541 = vunpack.c.l.b16 %v1275
    %v1542 = vunpack.c.l.b16 %v1276
    %v1543 = vunpack.c.l.b16 %v1277
    %v1544 = vunpack.c.l.b16 %v1278
    %v1545 = vunpack.c.l.b16 %v1279
    %v1546 = vunpack.c.l.b16 %v1280
    %v1547 = vunpack.c.l.b16 %v1281
    %v1548 = vunpack.c.l.b16 %v1282
    %v1549 = vunpack.c.l.b16 %v1283
    %v1550 = vunpack.c.l.b16 %v1284
    %v1551 = vunpack.c.l.b16 %v1285
    %v1552 = vunpack.c.l.b16 %v1286
    %v1553 = vpack.c.b16 %v1538, %v1537
    %v1554 = vpack.c.b16 %v1540, %v1539
    %v1555 = vpack.c.b16 %v1542, %v1541
    %v1556 = vpack.c.b16 %v1544, %v1543
    %v1557 = vpack.c.b16 %v1546, %v1545
    %v1558 = vpack.c.b16 %v1548, %v1547
    %v1559 = vpack.c.b16 %v1550, %v1549
    %v1560 = vpack.c.b16 %v1552, %v1551
    %1569 = vmatprep.subr.bf16.mxu0 0
    %1570 = vmatpush1.bf16.msra.mxu0 %v1553
    %1571 = vmatprep.subr.bf16.mxu0 0
    %1572 = vmatpush1.bf16.msra.mxu0 %v1554
    %1573 = vmatprep.subr.bf16.mxu0 0
    %1574 = vmatpush1.bf16.msra.mxu0 %v1555
    %1575 = vmatprep.subr.bf16.mxu0 0
    %1576 = vmatpush1.bf16.msra.mxu0 %v1556
    %1577 = vmatprep.subr.bf16.mxu0 0
    %1578 = vmatpush1.bf16.msra.mxu0 %v1557
    %1579 = vmatprep.subr.bf16.mxu0 0
    %1580 = vmatpush1.bf16.msra.mxu0 %v1558
    %1581 = vmatprep.subr.bf16.mxu0 0
    %1582 = vmatpush1.bf16.msra.mxu0 %v1559
    %1583 = vmatprep.subr.bf16.mxu0 0
    %1584 = vmatpush1.bf16.msra.mxu0 %v1560
    %1585 = vmatprep.subr.bf16.mxu0 0
    %1586 = vmatpush1.bf16.msra.mxu0 0
    %1587 = vmatprep.subr.bf16.mxu0 0
    %1588 = vmatpush1.bf16.msra.mxu0 0
    %1589 = vmatprep.subr.bf16.mxu0 0
    %1590 = vmatpush1.bf16.msra.mxu0 0
    %1591 = vmatprep.subr.bf16.mxu0 0
    %1592 = vmatpush1.bf16.msra.mxu0 0
    %1593 = vmatprep.subr.bf16.mxu0 0
    %1594 = vmatpush1.bf16.msra.mxu0 0
    %1595 = vmatprep.subr.bf16.mxu0 0
    %1596 = vmatpush1.bf16.msra.mxu0 0
    %1597 = vmatprep.subr.bf16.mxu0 0
    %1598 = vmatpush1.bf16.msra.mxu0 0
    %1599 = vmatprep.subr.bf16.mxu0 0
    %1600 = vmatpush1.bf16.msra.mxu0 0
    %1601 = vmatprep.mubr.bf16.mxu0 0
    %1602 = vmatmul.mubr.bf16.gmra.mrb[0].mxu0 %v1263
    %v1603 = vpop.f32.mrb[0].mxu0
    %v1604 = vadd.f32 %v1459, %v1603
    %v1605 = vpop.f32.mrb[0].mxu0
    %v1606 = vpop.f32.mrb[0].mxu0
    %v1607 = vadd.f32 %v1462, %v1606
    %v1608 = vpop.f32.mrb[0].mxu0
    %1609 = vmatprep.mubr.bf16.mxu0 0
    %1610 = vmatmul.mubr.bf16.gmra.mrb[0].mxu0 %v1264
    %v1611 = vpop.f32.mrb[0].mxu0
    %v1612 = vadd.f32 %v1467, %v1611
    %v1613 = vpop.f32.mrb[0].mxu0
    %v1614 = vpop.f32.mrb[0].mxu0
    %v1615 = vadd.f32 %v1470, %v1614
    %v1616 = vpop.f32.mrb[0].mxu0
    %1617 = vmatprep.mubr.bf16.mxu0 0
    %1618 = vmatmul.mubr.bf16.gmra.mrb[0].mxu0 %v1265
    %v1619 = vpop.f32.mrb[0].mxu0
    %v1620 = vadd.f32 %v1475, %v1619
    %v1621 = vpop.f32.mrb[0].mxu0
    %v1622 = vpop.f32.mrb[0].mxu0
    %v1623 = vadd.f32 %v1478, %v1622
    %v1624 = vpop.f32.mrb[0].mxu0
    %1625 = vmatprep.mubr.bf16.mxu0 0
    %1626 = vmatmul.mubr.bf16.gmra.mrb[0].mxu0 %v1266
    %v1627 = vpop.f32.mrb[0].mxu0
    %v1628 = vadd.f32 %v1483, %v1627
    %v1629 = vpop.f32.mrb[0].mxu0
    %v1630 = vpop.f32.mrb[0].mxu0
    %v1631 = vadd.f32 %v1486, %v1630
    %v1632 = vpop.f32.mrb[0].mxu0
    %1633 = vmatprep.mubr.bf16.mxu0 0
    %1634 = vmatmul.mubr.bf16.gmra.mrb[0].mxu0 %v1267
    %v1635 = vpop.f32.mrb[0].mxu0
    %v1636 = vadd.f32 %v1491, %v1635
    %v1637 = vpop.f32.mrb[0].mxu0
    %v1638 = vpop.f32.mrb[0].mxu0
    %v1639 = vadd.f32 %v1494, %v1638
    %v1640 = vpop.f32.mrb[0].mxu0
    %1641 = vmatprep.mubr.bf16.mxu0 0
    %1642 = vmatmul.mubr.bf16.gmra.mrb[0].mxu0 %v1268
    %v1643 = vpop.f32.mrb[0].mxu0
    %v1644 = vadd.f32 %v1499, %v1643
    %v1645 = vpop.f32.mrb[0].mxu0
    %v1646 = vpop.f32.mrb[0].mxu0
    %v1647 = vadd.f32 %v1502, %v1646
    %v1648 = vpop.f32.mrb[0].mxu0
    %1649 = vmatprep.mubr.bf16.mxu0 0
    %1650 = vmatmul.mubr.bf16.gmra.mrb[0].mxu0 %v1269
    %v1651 = vpop.f32.mrb[0].mxu0
    %v1652 = vadd.f32 %v1507, %v1651
    %v1653 = vpop.f32.mrb[0].mxu0
    %v1654 = vpop.f32.mrb[0].mxu0
    %v1655 = vadd.f32 %v1510, %v1654
    %v1656 = vpop.f32.mrb[0].mxu0
    %1657 = vmatprep.mubr.bf16.mxu0 0
    %1658 = vmatmul.mubr.bf16.gmra.mrb[0].mxu0 %v1270
    %v1659 = vpop.f32.mrb[0].mxu0
    %v1660 = vadd.f32 %v1515, %v1659
    %v1661 = vpop.f32.mrb[0].mxu0
    %v1662 = vpop.f32.mrb[0].mxu0
    %v1663 = vadd.f32 %v1518, %v1662
    %v1664 = vpop.f32.mrb[0].mxu0
    %1665 = vdwg.mxu0
    %v1666 = vld [vmem:[#allocation2 + $0x1b8] sm:$0xff]
    %v1667 = vld [vmem:[#allocation2 + $0x1c0] sm:$0xff]
    %v1668 = vld [vmem:[#allocation2 + $0x1c8] sm:$0xff]
    %v1669 = vld [vmem:[#allocation2 + $0x1d0] sm:$0xff]
    %v1670 = vld [vmem:[#allocation2 + $0x1d8] sm:$0xff]
    %v1671 = vld [vmem:[#allocation2 + $0x1e0] sm:$0xff]
    %v1672 = vld [vmem:[#allocation2 + $0x1e8] sm:$0xff]
    %v1673 = vld [vmem:[#allocation2 + $0x1f0] sm:$0xff]
    %v1674 = vld [vmem:[#allocation2 + $0x1f8] sm:$0xff]
    %v1675 = vld [vmem:[#allocation2 + $0x200] sm:$0xff]
    %v1676 = vld [vmem:[#allocation2 + $0x208] sm:$0xff]
    %v1677 = vld [vmem:[#allocation2 + $0x210] sm:$0xff]
    %v1678 = vld [vmem:[#allocation2 + $0x218] sm:$0xff]
    %v1679 = vld [vmem:[#allocation2 + $0x220] sm:$0xff]
    %v1680 = vld [vmem:[#allocation2 + $0x228] sm:$0xff]
    %v1681 = vld [vmem:[#allocation2 + $0x230] sm:$0xff]
    %v1682 = vsel %vm1319, %v1666, 0.0
    %v1683 = vsel %vm1320, %v1667, 0.0
    %v1684 = vsel %vm1321, %v1668, 0.0
    %v1685 = vsel %vm1322, %v1669, 0.0
    %v1686 = vsel %vm1323, %v1670, 0.0
    %v1687 = vsel %vm1324, %v1671, 0.0
    %v1688 = vsel %vm1325, %v1672, 0.0
    %v1689 = vsel %vm1326, %v1673, 0.0
    %v1690 = vsel %vm1327, %v1674, 0.0
    %v1691 = vsel %vm1328, %v1675, 0.0
    %v1692 = vsel %vm1329, %v1676, 0.0
    %v1693 = vsel %vm1330, %v1677, 0.0
    %v1694 = vsel %vm1331, %v1678, 0.0
    %v1695 = vsel %vm1332, %v1679, 0.0
    %v1696 = vsel %vm1333, %v1680, 0.0
    %v1697 = vsel %vm1334, %v1681, 0.0
    %v1698 = vpack.c.bf16 %v1683, %v1682
    %v1699 = vpack.c.bf16 %v1685, %v1684
    %v1700 = vpack.c.bf16 %v1687, %v1686
    %v1701 = vpack.c.bf16 %v1689, %v1688
    %v1702 = vpack.c.bf16 %v1691, %v1690
    %v1703 = vpack.c.bf16 %v1693, %v1692
    %v1704 = vpack.c.bf16 %v1695, %v1694
    %v1705 = vpack.c.bf16 %v1697, %v1696
    %s1706 = scalar_lea.vmem %s2, 128
    %v1707 = vld [vmem:[%s1706] sm:$0xf]
    %v1708 = vld [vmem:[%s1706 + $0x4] sm:$0xf]
    %v1709 = vld [vmem:[%s1706 + $0x8] sm:$0xf]
    %v1710 = vld [vmem:[%s1706 + $0xc] sm:$0xf]
    %v1711 = vld [vmem:[%s1706 + $0x10] sm:$0xf]
    %v1712 = vld [vmem:[%s1706 + $0x14] sm:$0xf]
    %v1713 = vld [vmem:[%s1706 + $0x18] sm:$0xf]
    %v1714 = vld [vmem:[%s1706 + $0x1c] sm:$0xf]
    %v1715 = vld [vmem:[%s1706 + $0x20] sm:$0xf]
    %v1716 = vld [vmem:[%s1706 + $0x24] sm:$0xf]
    %v1717 = vld [vmem:[%s1706 + $0x28] sm:$0xf]
    %v1718 = vld [vmem:[%s1706 + $0x2c] sm:$0xf]
    %v1719 = vld [vmem:[%s1706 + $0x30] sm:$0xf]
    %v1720 = vld [vmem:[%s1706 + $0x34] sm:$0xf]
    %v1721 = vld [vmem:[%s1706 + $0x38] sm:$0xf]
    %v1722 = vld [vmem:[%s1706 + $0x3c] sm:$0xf]
    %v1739 = vunpack.c.l.b16 %v1707
    %v1740 = vunpack.c.l.b16 %v1708
    %v1741 = vunpack.c.l.b16 %v1709
    %v1742 = vunpack.c.l.b16 %v1710
    %v1743 = vunpack.c.l.b16 %v1711
    %v1744 = vunpack.c.l.b16 %v1712
    %v1745 = vunpack.c.l.b16 %v1713
    %v1746 = vunpack.c.l.b16 %v1714
    %v1747 = vunpack.c.l.b16 %v1715
    %v1748 = vunpack.c.l.b16 %v1716
    %v1749 = vunpack.c.l.b16 %v1717
    %v1750 = vunpack.c.l.b16 %v1718
    %v1751 = vunpack.c.l.b16 %v1719
    %v1752 = vunpack.c.l.b16 %v1720
    %v1753 = vunpack.c.l.b16 %v1721
    %v1754 = vunpack.c.l.b16 %v1722
    %v1755 = vpack.c.b16 %v1740, %v1739
    %v1756 = vpack.c.b16 %v1742, %v1741
    %v1757 = vpack.c.b16 %v1744, %v1743
    %v1758 = vpack.c.b16 %v1746, %v1745
    %v1759 = vpack.c.b16 %v1748, %v1747
    %v1760 = vpack.c.b16 %v1750, %v1749
    %v1761 = vpack.c.b16 %v1752, %v1751
    %v1762 = vpack.c.b16 %v1754, %v1753
    %1771 = vmatprep.subr.bf16.mxu0 0
    %1772 = vmatpush1.bf16.msra.mxu0 %v1755
    %1773 = vmatprep.subr.bf16.mxu0 0
    %1774 = vmatpush1.bf16.msra.mxu0 %v1756
    %1775 = vmatprep.subr.bf16.mxu0 0
    %1776 = vmatpush1.bf16.msra.mxu0 %v1757
    %1777 = vmatprep.subr.bf16.mxu0 0
    %1778 = vmatpush1.bf16.msra.mxu0 %v1758
    %1779 = vmatprep.subr.bf16.mxu0 0
    %1780 = vmatpush1.bf16.msra.mxu0 %v1759
    %1781 = vmatprep.subr.bf16.mxu0 0
    %1782 = vmatpush1.bf16.msra.mxu0 %v1760
    %1783 = vmatprep.subr.bf16.mxu0 0
    %1784 = vmatpush1.bf16.msra.mxu0 %v1761
    %1785 = vmatprep.subr.bf16.mxu0 0
    %1786 = vmatpush1.bf16.msra.mxu0 %v1762
    %1787 = vmatprep.subr.bf16.mxu0 0
    %1788 = vmatpush1.bf16.msra.mxu0 0
    %1789 = vmatprep.subr.bf16.mxu0 0
    %1790 = vmatpush1.bf16.msra.mxu0 0
    %1791 = vmatprep.subr.bf16.mxu0 0
    %1792 = vmatpush1.bf16.msra.mxu0 0
    %1793 = vmatprep.subr.bf16.mxu0 0
    %1794 = vmatpush1.bf16.msra.mxu0 0
    %1795 = vmatprep.subr.bf16.mxu0 0
    %1796 = vmatpush1.bf16.msra.mxu0 0
    %1797 = vmatprep.subr.bf16.mxu0 0
    %1798 = vmatpush1.bf16.msra.mxu0 0
    %1799 = vmatprep.subr.bf16.mxu0 0
    %1800 = vmatpush1.bf16.msra.mxu0 0
    %1801 = vmatprep.subr.bf16.mxu0 0
    %1802 = vmatpush1.bf16.msra.mxu0 0
    %1803 = vmatprep.mubr.bf16.mxu0 0
    %1804 = vmatmul.mubr.bf16.gmra.mrb[0].mxu0 %v1698
    %v1805 = vpop.f32.mrb[0].mxu0
    %v1806 = vadd.f32 0.0, %v1805
    %v1807 = vpop.f32.mrb[0].mxu0
    %v1808 = vpop.f32.mrb[0].mxu0
    %v1809 = vadd.f32 0.0, %v1808
    %v1810 = vpop.f32.mrb[0].mxu0
    %1811 = vmatprep.mubr.bf16.mxu0 0
    %1812 = vmatmul.mubr.bf16.gmra.mrb[0].mxu0 %v1699
    %v1813 = vpop.f32.mrb[0].mxu0
    %v1814 = vadd.f32 0.0, %v1813
    %v1815 = vpop.f32.mrb[0].mxu0
    %v1816 = vpop.f32.mrb[0].mxu0
    %v1817 = vadd.f32 0.0, %v1816
    %v1818 = vpop.f32.mrb[0].mxu0
    %1819 = vmatprep.mubr.bf16.mxu0 0
    %1820 = vmatmul.mubr.bf16.gmra.mrb[0].mxu0 %v1700
    %v1821 = vpop.f32.mrb[0].mxu0
    %v1822 = vadd.f32 0.0, %v1821
    %v1823 = vpop.f32.mrb[0].mxu0
    %v1824 = vpop.f32.mrb[0].mxu0
    %v1825 = vadd.f32 0.0, %v1824
    %v1826 = vpop.f32.mrb[0].mxu0
    %1827 = vmatprep.mubr.bf16.mxu0 0
    %1828 = vmatmul.mubr.bf16.gmra.mrb[0].mxu0 %v1701
    %v1829 = vpop.f32.mrb[0].mxu0
    %v1830 = vadd.f32 0.0, %v1829
    %v1831 = vpop.f32.mrb[0].mxu0
    %v1832 = vpop.f32.mrb[0].mxu0
    %v1833 = vadd.f32 0.0, %v1832
    %v1834 = vpop.f32.mrb[0].mxu0
    %1835 = vmatprep.mubr.bf16.mxu0 0
    %1836 = vmatmul.mubr.bf16.gmra.mrb[0].mxu0 %v1702
    %v1837 = vpop.f32.mrb[0].mxu0
    %v1838 = vadd.f32 0.0, %v1837
    %v1839 = vpop.f32.mrb[0].mxu0
    %v1840 = vpop.f32.mrb[0].mxu0
    %v1841 = vadd.f32 0.0, %v1840
    %v1842 = vpop.f32.mrb[0].mxu0
    %1843 = vmatprep.mubr.bf16.mxu0 0
    %1844 = vmatmul.mubr.bf16.gmra.mrb[0].mxu0 %v1703
    %v1845 = vpop.f32.mrb[0].mxu0
    %v1846 = vadd.f32 0.0, %v1845
    %v1847 = vpop.f32.mrb[0].mxu0
    %v1848 = vpop.f32.mrb[0].mxu0
    %v1849 = vadd.f32 0.0, %v1848
    %v1850 = vpop.f32.mrb[0].mxu0
    %1851 = vmatprep.mubr.bf16.mxu0 0
    %1852 = vmatmul.mubr.bf16.gmra.mrb[0].mxu0 %v1704
    %v1853 = vpop.f32.mrb[0].mxu0
    %v1854 = vadd.f32 0.0, %v1853
    %v1855 = vpop.f32.mrb[0].mxu0
    %v1856 = vpop.f32.mrb[0].mxu0
    %v1857 = vadd.f32 0.0, %v1856
    %v1858 = vpop.f32.mrb[0].mxu0
    %1859 = vmatprep.mubr.bf16.mxu0 0
    %1860 = vmatmul.mubr.bf16.gmra.mrb[0].mxu0 %v1705
    %v1861 = vpop.f32.mrb[0].mxu0
    %v1862 = vadd.f32 0.0, %v1861
    %v1863 = vpop.f32.mrb[0].mxu0
    %v1864 = vpop.f32.mrb[0].mxu0
    %v1865 = vadd.f32 0.0, %v1864
    %v1866 = vpop.f32.mrb[0].mxu0
    %1867 = vdwg.mxu0
    %v1868 = vadd.f32 %v1604, %v1806
    %v1869 = vadd.f32 %v1607, %v1809
    %v1870 = vadd.f32 %v1612, %v1814
    %v1871 = vadd.f32 %v1615, %v1817
    %v1872 = vadd.f32 %v1620, %v1822
    %v1873 = vadd.f32 %v1623, %v1825
    %v1874 = vadd.f32 %v1628, %v1830
    %v1875 = vadd.f32 %v1631, %v1833
    %v1876 = vadd.f32 %v1636, %v1838
    %v1877 = vadd.f32 %v1639, %v1841
    %v1878 = vadd.f32 %v1644, %v1846
    %v1879 = vadd.f32 %v1647, %v1849
    %v1880 = vadd.f32 %v1652, %v1854
    %v1881 = vadd.f32 %v1655, %v1857
    %v1882 = vadd.f32 %v1660, %v1862
    %v1883 = vadd.f32 %v1663, %v1865
    %v1884 = vld [vmem:[#allocation2 + $0x9f] sm:$0xff]
    %v1885 = vld [vmem:[#allocation2 + $0xa7] sm:$0xff]
    %v1886 = vld [vmem:[#allocation2 + $0xaf] sm:$0xff]
    %v1887 = vld [vmem:[#allocation2 + $0xb7] sm:$0xff]
    %v1888 = vld [vmem:[#allocation2 + $0xbf] sm:$0xff]
    %v1889 = vld [vmem:[#allocation2 + $0xc7] sm:$0xff]
    %v1890 = vld [vmem:[#allocation2 + $0xcf] sm:$0xff]
    %v1891 = vld [vmem:[#allocation2 + $0xd7] sm:$0xff]
    %v1892 = vld [vmem:[#allocation2 + $0xdf] sm:$0xff]
    %v1893 = vld [vmem:[#allocation2 + $0xe7] sm:$0xff]
    %v1894 = vld [vmem:[#allocation2 + $0xef] sm:$0xff]
    %v1895 = vld [vmem:[#allocation2 + $0xf7] sm:$0xff]
    %v1896 = vld [vmem:[#allocation2 + $0xff] sm:$0xff]
    %v1897 = vld [vmem:[#allocation2 + $0x107] sm:$0xff]
    %v1898 = vld [vmem:[#allocation2 + $0x10f] sm:$0xff]
    %v1899 = vld [vmem:[#allocation2 + $0x117] sm:$0xff]
    %v1900 = vsel %vm1167, 1, 0
    %v1901 = vsel %vm1168, 1, 0
    %v1902 = vsel %vm1169, 1, 0
    %v1903 = vsel %vm1170, 1, 0
    %v1904 = vsel %vm1171, 1, 0
    %v1905 = vsel %vm1172, 1, 0
    %v1906 = vsel %vm1173, 1, 0
    %v1907 = vsel %vm1174, 1, 0
    %v1908 = vsel %vm1175, 1, 0
    %v1909 = vsel %vm1176, 1, 0
    %v1910 = vsel %vm1177, 1, 0
    %v1911 = vsel %vm1178, 1, 0
    %v1912 = vsel %vm1179, 1, 0
    %v1913 = vsel %vm1180, 1, 0
    %v1914 = vsel %vm1181, 1, 0
    %v1915 = vsel %vm1182, 1, 0
    %vm1916 = vcmp.eq.s32.totalorder %v1900, 1
    %vm1917 = vcmp.eq.s32.totalorder %v1901, 1
    %vm1918 = vcmp.eq.s32.totalorder %v1902, 1
    %vm1919 = vcmp.eq.s32.totalorder %v1903, 1
    %vm1920 = vcmp.eq.s32.totalorder %v1904, 1
    %vm1921 = vcmp.eq.s32.totalorder %v1905, 1
    %vm1922 = vcmp.eq.s32.totalorder %v1906, 1
    %vm1923 = vcmp.eq.s32.totalorder %v1907, 1
    %vm1924 = vcmp.eq.s32.totalorder %v1908, 1
    %vm1925 = vcmp.eq.s32.totalorder %v1909, 1
    %vm1926 = vcmp.eq.s32.totalorder %v1910, 1
    %vm1927 = vcmp.eq.s32.totalorder %v1911, 1
    %vm1928 = vcmp.eq.s32.totalorder %v1912, 1
    %vm1929 = vcmp.eq.s32.totalorder %v1913, 1
    %vm1930 = vcmp.eq.s32.totalorder %v1914, 1
    %vm1931 = vcmp.eq.s32.totalorder %v1915, 1
    %v1932 = vsel %vm1916, %v1884, 0.0
    %v1933 = vsel %vm1917, %v1885, 0.0
    %v1934 = vsel %vm1918, %v1886, 0.0
    %v1935 = vsel %vm1919, %v1887, 0.0
    %v1936 = vsel %vm1920, %v1888, 0.0
    %v1937 = vsel %vm1921, %v1889, 0.0
    %v1938 = vsel %vm1922, %v1890, 0.0
    %v1939 = vsel %vm1923, %v1891, 0.0
    %v1940 = vsel %vm1924, %v1892, 0.0
    %v1941 = vsel %vm1925, %v1893, 0.0
    %v1942 = vsel %vm1926, %v1894, 0.0
    %v1943 = vsel %vm1927, %v1895, 0.0
    %v1944 = vsel %vm1928, %v1896, 0.0
    %v1945 = vsel %vm1929, %v1897, 0.0
    %v1946 = vsel %vm1930, %v1898, 0.0
    %v1947 = vsel %vm1931, %v1899, 0.0
    %v1948 = vpack.c.bf16 %v1933, %v1932
    %v1949 = vpack.c.bf16 %v1935, %v1934
    %v1950 = vpack.c.bf16 %v1937, %v1936
    %v1951 = vpack.c.bf16 %v1939, %v1938
    %v1952 = vpack.c.bf16 %v1941, %v1940
    %v1953 = vpack.c.bf16 %v1943, %v1942
    %v1954 = vpack.c.bf16 %v1945, %v1944
    %v1955 = vpack.c.bf16 %v1947, %v1946
    %s1956 = scalar_lea.vmem %s2, 192
    %v1957 = vld [vmem:[%s1956] sm:$0xf]
    %v1958 = vld [vmem:[%s1956 + $0x4] sm:$0xf]
    %v1959 = vld [vmem:[%s1956 + $0x8] sm:$0xf]
    %v1960 = vld [vmem:[%s1956 + $0xc] sm:$0xf]
    %v1961 = vld [vmem:[%s1956 + $0x10] sm:$0xf]
    %v1962 = vld [vmem:[%s1956 + $0x14] sm:$0xf]
    %v1963 = vld [vmem:[%s1956 + $0x18] sm:$0xf]
    %v1964 = vld [vmem:[%s1956 + $0x1c] sm:$0xf]
    %v1965 = vld [vmem:[%s1956 + $0x20] sm:$0xf]
    %v1966 = vld [vmem:[%s1956 + $0x24] sm:$0xf]
    %v1967 = vld [vmem:[%s1956 + $0x28] sm:$0xf]
    %v1968 = vld [vmem:[%s1956 + $0x2c] sm:$0xf]
    %v1969 = vld [vmem:[%s1956 + $0x30] sm:$0xf]
    %v1970 = vld [vmem:[%s1956 + $0x34] sm:$0xf]
    %v1971 = vld [vmem:[%s1956 + $0x38] sm:$0xf]
    %v1972 = vld [vmem:[%s1956 + $0x3c] sm:$0xf]
    %v1989 = vunpack.c.l.b16 %v1957
    %v1990 = vunpack.c.l.b16 %v1958
    %v1991 = vunpack.c.l.b16 %v1959
    %v1992 = vunpack.c.l.b16 %v1960
    %v1993 = vunpack.c.l.b16 %v1961
    %v1994 = vunpack.c.l.b16 %v1962
    %v1995 = vunpack.c.l.b16 %v1963
    %v1996 = vunpack.c.l.b16 %v1964
    %v1997 = vunpack.c.l.b16 %v1965
    %v1998 = vunpack.c.l.b16 %v1966
    %v1999 = vunpack.c.l.b16 %v1967
    %v2000 = vunpack.c.l.b16 %v1968
    %v2001 = vunpack.c.l.b16 %v1969
    %v2002 = vunpack.c.l.b16 %v1970
    %v2003 = vunpack.c.l.b16 %v1971
    %v2004 = vunpack.c.l.b16 %v1972
    %v2005 = vpack.c.b16 %v1990, %v1989
    %v2006 = vpack.c.b16 %v1992, %v1991
    %v2007 = vpack.c.b16 %v1994, %v1993
    %v2008 = vpack.c.b16 %v1996, %v1995
    %v2009 = vpack.c.b16 %v1998, %v1997
    %v2010 = vpack.c.b16 %v2000, %v1999
    %v2011 = vpack.c.b16 %v2002, %v2001
    %v2012 = vpack.c.b16 %v2004, %v2003
    %2021 = vmatprep.subr.bf16.mxu0 0
    %2022 = vmatpush1.bf16.msra.mxu0 %v2005
    %2023 = vmatprep.subr.bf16.mxu0 0
    %2024 = vmatpush1.bf16.msra.mxu0 %v2006
    %2025 = vmatprep.subr.bf16.mxu0 0
    %2026 = vmatpush1.bf16.msra.mxu0 %v2007
    %2027 = vmatprep.subr.bf16.mxu0 0
    %2028 = vmatpush1.bf16.msra.mxu0 %v2008
    %2029 = vmatprep.subr.bf16.mxu0 0
    %2030 = vmatpush1.bf16.msra.mxu0 %v2009
    %2031 = vmatprep.subr.bf16.mxu0 0
    %2032 = vmatpush1.bf16.msra.mxu0 %v2010
    %2033 = vmatprep.subr.bf16.mxu0 0
    %2034 = vmatpush1.bf16.msra.mxu0 %v2011
    %2035 = vmatprep.subr.bf16.mxu0 0
    %2036 = vmatpush1.bf16.msra.mxu0 %v2012
    %2037 = vmatprep.subr.bf16.mxu0 0
    %2038 = vmatpush1.bf16.msra.mxu0 0
    %2039 = vmatprep.subr.bf16.mxu0 0
    %2040 = vmatpush1.bf16.msra.mxu0 0
    %2041 = vmatprep.subr.bf16.mxu0 0
    %2042 = vmatpush1.bf16.msra.mxu0 0
    %2043 = vmatprep.subr.bf16.mxu0 0
    %2044 = vmatpush1.bf16.msra.mxu0 0
    %2045 = vmatprep.subr.bf16.mxu0 0
    %2046 = vmatpush1.bf16.msra.mxu0 0
    %2047 = vmatprep.subr.bf16.mxu0 0
    %2048 = vmatpush1.bf16.msra.mxu0 0
    %2049 = vmatprep.subr.bf16.mxu0 0
    %2050 = vmatpush1.bf16.msra.mxu0 0
    %2051 = vmatprep.subr.bf16.mxu0 0
    %2052 = vmatpush1.bf16.msra.mxu0 0
    %2053 = vmatprep.mubr.bf16.mxu0 0
    %2054 = vmatmul.mubr.bf16.gmra.mrb[0].mxu0 %v1948
    %v2055 = vpop.f32.mrb[0].mxu0
    %v2056 = vadd.f32 0.0, %v2055
    %v2057 = vpop.f32.mrb[0].mxu0
    %v2058 = vpop.f32.mrb[0].mxu0
    %v2059 = vadd.f32 0.0, %v2058
    %v2060 = vpop.f32.mrb[0].mxu0
    %2061 = vmatprep.mubr.bf16.mxu0 0
    %2062 = vmatmul.mubr.bf16.gmra.mrb[0].mxu0 %v1949
    %v2063 = vpop.f32.mrb[0].mxu0
    %v2064 = vadd.f32 0.0, %v2063
    %v2065 = vpop.f32.mrb[0].mxu0
    %v2066 = vpop.f32.mrb[0].mxu0
    %v2067 = vadd.f32 0.0, %v2066
    %v2068 = vpop.f32.mrb[0].mxu0
    %2069 = vmatprep.mubr.bf16.mxu0 0
    %2070 = vmatmul.mubr.bf16.gmra.mrb[0].mxu0 %v1950
    %v2071 = vpop.f32.mrb[0].mxu0
    %v2072 = vadd.f32 0.0, %v2071
    %v2073 = vpop.f32.mrb[0].mxu0
    %v2074 = vpop.f32.mrb[0].mxu0
    %v2075 = vadd.f32 0.0, %v2074
    %v2076 = vpop.f32.mrb[0].mxu0
    %2077 = vmatprep.mubr.bf16.mxu0 0
    %2078 = vmatmul.mubr.bf16.gmra.mrb[0].mxu0 %v1951
    %v2079 = vpop.f32.mrb[0].mxu0
    %v2080 = vadd.f32 0.0, %v2079
    %v2081 = vpop.f32.mrb[0].mxu0
    %v2082 = vpop.f32.mrb[0].mxu0
    %v2083 = vadd.f32 0.0, %v2082
    %v2084 = vpop.f32.mrb[0].mxu0
    %2085 = vmatprep.mubr.bf16.mxu0 0
    %2086 = vmatmul.mubr.bf16.gmra.mrb[0].mxu0 %v1952
    %v2087 = vpop.f32.mrb[0].mxu0
    %v2088 = vadd.f32 0.0, %v2087
    %v2089 = vpop.f32.mrb[0].mxu0
    %v2090 = vpop.f32.mrb[0].mxu0
    %v2091 = vadd.f32 0.0, %v2090
    %v2092 = vpop.f32.mrb[0].mxu0
    %2093 = vmatprep.mubr.bf16.mxu0 0
    %2094 = vmatmul.mubr.bf16.gmra.mrb[0].mxu0 %v1953
    %v2095 = vpop.f32.mrb[0].mxu0
    %v2096 = vadd.f32 0.0, %v2095
    %v2097 = vpop.f32.mrb[0].mxu0
    %v2098 = vpop.f32.mrb[0].mxu0
    %v2099 = vadd.f32 0.0, %v2098
    %v2100 = vpop.f32.mrb[0].mxu0
    %2101 = vmatprep.mubr.bf16.mxu0 0
    %2102 = vmatmul.mubr.bf16.gmra.mrb[0].mxu0 %v1954
    %v2103 = vpop.f32.mrb[0].mxu0
    %v2104 = vadd.f32 0.0, %v2103
    %v2105 = vpop.f32.mrb[0].mxu0
    %v2106 = vpop.f32.mrb[0].mxu0
    %v2107 = vadd.f32 0.0, %v2106
    %v2108 = vpop.f32.mrb[0].mxu0
    %2109 = vmatprep.mubr.bf16.mxu0 0
    %2110 = vmatmul.mubr.bf16.gmra.mrb[0].mxu0 %v1955
    %v2111 = vpop.f32.mrb[0].mxu0
    %v2112 = vadd.f32 0.0, %v2111
    %v2113 = vpop.f32.mrb[0].mxu0
    %v2114 = vpop.f32.mrb[0].mxu0
    %v2115 = vadd.f32 0.0, %v2114
    %v2116 = vpop.f32.mrb[0].mxu0
    %2117 = vdwg.mxu0
    %v2118 = vadd.f32 %v1868, %v2056
    %v2119 = vadd.f32 %v1869, %v2059
    %v2120 = vadd.f32 %v1870, %v2064
    %v2121 = vadd.f32 %v1871, %v2067
    %v2122 = vadd.f32 %v1872, %v2072
    %v2123 = vadd.f32 %v1873, %v2075
    %v2124 = vadd.f32 %v1874, %v2080
    %v2125 = vadd.f32 %v1875, %v2083
    %v2126 = vadd.f32 %v1876, %v2088
    %v2127 = vadd.f32 %v1877, %v2091
    %v2128 = vadd.f32 %v1878, %v2096
    %v2129 = vadd.f32 %v1879, %v2099
    %v2130 = vadd.f32 %v1880, %v2104
    %v2131 = vadd.f32 %v1881, %v2107
    %v2132 = vadd.f32 %v1882, %v2112
    %v2133 = vadd.f32 %v1883, %v2115
    %v2134 = vld [vmem:[#allocation2 + $0x10] sm:$0xff]
    %v2135 = vld [vmem:[#allocation2 + $0x18] sm:$0xff]
    %v2136 = vld [vmem:[#allocation2 + $0x20] sm:$0xff]
    %v2137 = vld [vmem:[#allocation2 + $0x28] sm:$0xff]
    %v2138 = vld [vmem:[#allocation2 + $0x30] sm:$0xff]
    %v2139 = vld [vmem:[#allocation2 + $0x38] sm:$0xff]
    %v2140 = vld [vmem:[#allocation2 + $0x40] sm:$0xff]
    %v2141 = vld [vmem:[#allocation2 + $0x48] sm:$0xff]
    %v2142 = vld [vmem:[#allocation2 + $0x50] sm:$0xff]
    %v2143 = vld [vmem:[#allocation2 + $0x58] sm:$0xff]
    %v2144 = vld [vmem:[#allocation2 + $0x60] sm:$0xff]
    %v2145 = vld [vmem:[#allocation2 + $0x68] sm:$0xff]
    %v2146 = vld [vmem:[#allocation2 + $0x70] sm:$0xff]
    %v2147 = vld [vmem:[#allocation2 + $0x78] sm:$0xff]
    %v2148 = vld [vmem:[#allocation2 + $0x80] sm:$0xff]
    %v2149 = vld [vmem:[#allocation2 + $0x88] sm:$0xff]
    %v2150 = vpack.c.bf16 %v2135, %v2134
    %v2151 = vpack.c.bf16 %v2137, %v2136
    %v2152 = vpack.c.bf16 %v2139, %v2138
    %v2153 = vpack.c.bf16 %v2141, %v2140
    %v2154 = vpack.c.bf16 %v2143, %v2142
    %v2155 = vpack.c.bf16 %v2145, %v2144
    %v2156 = vpack.c.bf16 %v2147, %v2146
    %v2157 = vpack.c.bf16 %v2149, %v2148
    %s2158 = scalar_lea.vmem %s2, 256
    %v2159 = vld [vmem:[%s2158] sm:$0xf]
    %v2160 = vld [vmem:[%s2158 + $0x4] sm:$0xf]
    %v2161 = vld [vmem:[%s2158 + $0x8] sm:$0xf]
    %v2162 = vld [vmem:[%s2158 + $0xc] sm:$0xf]
    %v2163 = vld [vmem:[%s2158 + $0x10] sm:$0xf]
    %v2164 = vld [vmem:[%s2158 + $0x14] sm:$0xf]
    %v2165 = vld [vmem:[%s2158 + $0x18] sm:$0xf]
    %v2166 = vld [vmem:[%s2158 + $0x1c] sm:$0xf]
    %v2167 = vld [vmem:[%s2158 + $0x20] sm:$0xf]
    %v2168 = vld [vmem:[%s2158 + $0x24] sm:$0xf]
    %v2169 = vld [vmem:[%s2158 + $0x28] sm:$0xf]
    %v2170 = vld [vmem:[%s2158 + $0x2c] sm:$0xf]
    %v2171 = vld [vmem:[%s2158 + $0x30] sm:$0xf]
    %v2172 = vld [vmem:[%s2158 + $0x34] sm:$0xf]
    %v2173 = vld [vmem:[%s2158 + $0x38] sm:$0xf]
    %v2174 = vld [vmem:[%s2158 + $0x3c] sm:$0xf]
    %v2191 = vunpack.c.l.b16 %v2159
    %v2192 = vunpack.c.l.b16 %v2160
    %v2193 = vunpack.c.l.b16 %v2161
    %v2194 = vunpack.c.l.b16 %v2162
    %v2195 = vunpack.c.l.b16 %v2163
    %v2196 = vunpack.c.l.b16 %v2164
    %v2197 = vunpack.c.l.b16 %v2165
    %v2198 = vunpack.c.l.b16 %v2166
    %v2199 = vunpack.c.l.b16 %v2167
    %v2200 = vunpack.c.l.b16 %v2168
    %v2201 = vunpack.c.l.b16 %v2169
    %v2202 = vunpack.c.l.b16 %v2170
    %v2203 = vunpack.c.l.b16 %v2171
    %v2204 = vunpack.c.l.b16 %v2172
    %v2205 = vunpack.c.l.b16 %v2173
    %v2206 = vunpack.c.l.b16 %v2174
    %v2207 = vpack.c.b16 %v2192, %v2191
    %v2208 = vpack.c.b16 %v2194, %v2193
    %v2209 = vpack.c.b16 %v2196, %v2195
    %v2210 = vpack.c.b16 %v2198, %v2197
    %v2211 = vpack.c.b16 %v2200, %v2199
    %v2212 = vpack.c.b16 %v2202, %v2201
    %v2213 = vpack.c.b16 %v2204, %v2203
    %v2214 = vpack.c.b16 %v2206, %v2205
    %2223 = vmatprep.subr.bf16.mxu0 0
    %2224 = vmatpush1.bf16.msra.mxu0 %v2207
    %2225 = vmatprep.subr.bf16.mxu0 0
    %2226 = vmatpush1.bf16.msra.mxu0 %v2208
    %2227 = vmatprep.subr.bf16.mxu0 0
    %2228 = vmatpush1.bf16.msra.mxu0 %v2209
    %2229 = vmatprep.subr.bf16.mxu0 0
    %2230 = vmatpush1.bf16.msra.mxu0 %v2210
    %2231 = vmatprep.subr.bf16.mxu0 0
    %2232 = vmatpush1.bf16.msra.mxu0 %v2211
    %2233 = vmatprep.subr.bf16.mxu0 0
    %2234 = vmatpush1.bf16.msra.mxu0 %v2212
    %2235 = vmatprep.subr.bf16.mxu0 0
    %2236 = vmatpush1.bf16.msra.mxu0 %v2213
    %2237 = vmatprep.subr.bf16.mxu0 0
    %2238 = vmatpush1.bf16.msra.mxu0 %v2214
    %2239 = vmatprep.subr.bf16.mxu0 0
    %2240 = vmatpush1.bf16.msra.mxu0 0
    %2241 = vmatprep.subr.bf16.mxu0 0
    %2242 = vmatpush1.bf16.msra.mxu0 0
    %2243 = vmatprep.subr.bf16.mxu0 0
    %2244 = vmatpush1.bf16.msra.mxu0 0
    %2245 = vmatprep.subr.bf16.mxu0 0
    %2246 = vmatpush1.bf16.msra.mxu0 0
    %2247 = vmatprep.subr.bf16.mxu0 0
    %2248 = vmatpush1.bf16.msra.mxu0 0
    %2249 = vmatprep.subr.bf16.mxu0 0
    %2250 = vmatpush1.bf16.msra.mxu0 0
    %2251 = vmatprep.subr.bf16.mxu0 0
    %2252 = vmatpush1.bf16.msra.mxu0 0
    %2253 = vmatprep.subr.bf16.mxu0 0
    %2254 = vmatpush1.bf16.msra.mxu0 0
    %2255 = vmatprep.mubr.bf16.mxu0 0
    %2256 = vmatmul.mubr.bf16.gmra.mrb[0].mxu0 %v2150
    %v2257 = vpop.f32.mrb[0].mxu0
    %v2258 = vadd.f32 0.0, %v2257
    %v2259 = vpop.f32.mrb[0].mxu0
    %v2260 = vpop.f32.mrb[0].mxu0
    %v2261 = vadd.f32 0.0, %v2260
    %v2262 = vpop.f32.mrb[0].mxu0
    %2263 = vmatprep.mubr.bf16.mxu0 0
    %2264 = vmatmul.mubr.bf16.gmra.mrb[0].mxu0 %v2151
    %v2265 = vpop.f32.mrb[0].mxu0
    %v2266 = vadd.f32 0.0, %v2265
    %v2267 = vpop.f32.mrb[0].mxu0
    %v2268 = vpop.f32.mrb[0].mxu0
    %v2269 = vadd.f32 0.0, %v2268
    %v2270 = vpop.f32.mrb[0].mxu0
    %2271 = vmatprep.mubr.bf16.mxu0 0
    %2272 = vmatmul.mubr.bf16.gmra.mrb[0].mxu0 %v2152
    %v2273 = vpop.f32.mrb[0].mxu0
    %v2274 = vadd.f32 0.0, %v2273
    %v2275 = vpop.f32.mrb[0].mxu0
    %v2276 = vpop.f32.mrb[0].mxu0
    %v2277 = vadd.f32 0.0, %v2276
    %v2278 = vpop.f32.mrb[0].mxu0
    %2279 = vmatprep.mubr.bf16.mxu0 0
    %2280 = vmatmul.mubr.bf16.gmra.mrb[0].mxu0 %v2153
    %v2281 = vpop.f32.mrb[0].mxu0
    %v2282 = vadd.f32 0.0, %v2281
    %v2283 = vpop.f32.mrb[0].mxu0
    %v2284 = vpop.f32.mrb[0].mxu0
    %v2285 = vadd.f32 0.0, %v2284
    %v2286 = vpop.f32.mrb[0].mxu0
    %2287 = vmatprep.mubr.bf16.mxu0 0
    %2288 = vmatmul.mubr.bf16.gmra.mrb[0].mxu0 %v2154
    %v2289 = vpop.f32.mrb[0].mxu0
    %v2290 = vadd.f32 0.0, %v2289
    %v2291 = vpop.f32.mrb[0].mxu0
    %v2292 = vpop.f32.mrb[0].mxu0
    %v2293 = vadd.f32 0.0, %v2292
    %v2294 = vpop.f32.mrb[0].mxu0
    %2295 = vmatprep.mubr.bf16.mxu0 0
    %2296 = vmatmul.mubr.bf16.gmra.mrb[0].mxu0 %v2155
    %v2297 = vpop.f32.mrb[0].mxu0
    %v2298 = vadd.f32 0.0, %v2297
    %v2299 = vpop.f32.mrb[0].mxu0
    %v2300 = vpop.f32.mrb[0].mxu0
    %v2301 = vadd.f32 0.0, %v2300
    %v2302 = vpop.f32.mrb[0].mxu0
    %2303 = vmatprep.mubr.bf16.mxu0 0
    %2304 = vmatmul.mubr.bf16.gmra.mrb[0].mxu0 %v2156
    %v2305 = vpop.f32.mrb[0].mxu0
    %v2306 = vadd.f32 0.0, %v2305
    %v2307 = vpop.f32.mrb[0].mxu0
    %v2308 = vpop.f32.mrb[0].mxu0
    %v2309 = vadd.f32 0.0, %v2308
    %v2310 = vpop.f32.mrb[0].mxu0
    %2311 = vmatprep.mubr.bf16.mxu0 0
    %2312 = vmatmul.mubr.bf16.gmra.mrb[0].mxu0 %v2157
    %v2313 = vpop.f32.mrb[0].mxu0
    %v2314 = vadd.f32 0.0, %v2313
    %v2315 = vpop.f32.mrb[0].mxu0
    %v2316 = vpop.f32.mrb[0].mxu0
    %v2317 = vadd.f32 0.0, %v2316
    %v2318 = vpop.f32.mrb[0].mxu0
    %2319 = vdwg.mxu0
    %v2320 = vadd.f32 %v2118, %v2258
    %v2321 = vadd.f32 %v2119, %v2261
    %v2322 = vadd.f32 %v2120, %v2266
    %v2323 = vadd.f32 %v2121, %v2269
    %v2324 = vadd.f32 %v2122, %v2274
    %v2325 = vadd.f32 %v2123, %v2277
    %v2326 = vadd.f32 %v2124, %v2282
    %v2327 = vadd.f32 %v2125, %v2285
    %v2328 = vadd.f32 %v2126, %v2290
    %v2329 = vadd.f32 %v2127, %v2293
    %v2330 = vadd.f32 %v2128, %v2298
    %v2331 = vadd.f32 %v2129, %v2301
    %v2332 = vadd.f32 %v2130, %v2306
    %v2333 = vadd.f32 %v2131, %v2309
    %v2334 = vadd.f32 %v2132, %v2314
    %v2335 = vadd.f32 %v2133, %v2317
    %v2336 = vld [vmem:[#allocation2 + $0xa0] sm:$0xff]
    %v2337 = vld [vmem:[#allocation2 + $0xa8] sm:$0xff]
    %v2338 = vld [vmem:[#allocation2 + $0xb0] sm:$0xff]
    %v2339 = vld [vmem:[#allocation2 + $0xb8] sm:$0xff]
    %v2340 = vld [vmem:[#allocation2 + $0xc0] sm:$0xff]
    %v2341 = vld [vmem:[#allocation2 + $0xc8] sm:$0xff]
    %v2342 = vld [vmem:[#allocation2 + $0xd0] sm:$0xff]
    %v2343 = vld [vmem:[#allocation2 + $0xd8] sm:$0xff]
    %v2344 = vld [vmem:[#allocation2 + $0xe0] sm:$0xff]
    %v2345 = vld [vmem:[#allocation2 + $0xe8] sm:$0xff]
    %v2346 = vld [vmem:[#allocation2 + $0xf0] sm:$0xff]
    %v2347 = vld [vmem:[#allocation2 + $0xf8] sm:$0xff]
    %v2348 = vld [vmem:[#allocation2 + $0x100] sm:$0xff]
    %v2349 = vld [vmem:[#allocation2 + $0x108] sm:$0xff]
    %v2350 = vld [vmem:[#allocation2 + $0x110] sm:$0xff]
    %v2351 = vld [vmem:[#allocation2 + $0x118] sm:$0xff]
    %v2352 = vpack.c.bf16 %v2337, %v2336
    %v2353 = vpack.c.bf16 %v2339, %v2338
    %v2354 = vpack.c.bf16 %v2341, %v2340
    %v2355 = vpack.c.bf16 %v2343, %v2342
    %v2356 = vpack.c.bf16 %v2345, %v2344
    %v2357 = vpack.c.bf16 %v2347, %v2346
    %v2358 = vpack.c.bf16 %v2349, %v2348
    %v2359 = vpack.c.bf16 %v2351, %v2350
    %s2360 = scalar_lea.vmem %s2, 320
    %v2361 = vld [vmem:[%s2360] sm:$0xf]
    %v2362 = vld [vmem:[%s2360 + $0x4] sm:$0xf]
    %v2363 = vld [vmem:[%s2360 + $0x8] sm:$0xf]
    %v2364 = vld [vmem:[%s2360 + $0xc] sm:$0xf]
    %v2365 = vld [vmem:[%s2360 + $0x10] sm:$0xf]
    %v2366 = vld [vmem:[%s2360 + $0x14] sm:$0xf]
    %v2367 = vld [vmem:[%s2360 + $0x18] sm:$0xf]
    %v2368 = vld [vmem:[%s2360 + $0x1c] sm:$0xf]
    %v2369 = vld [vmem:[%s2360 + $0x20] sm:$0xf]
    %v2370 = vld [vmem:[%s2360 + $0x24] sm:$0xf]
    %v2371 = vld [vmem:[%s2360 + $0x28] sm:$0xf]
    %v2372 = vld [vmem:[%s2360 + $0x2c] sm:$0xf]
    %v2373 = vld [vmem:[%s2360 + $0x30] sm:$0xf]
    %v2374 = vld [vmem:[%s2360 + $0x34] sm:$0xf]
    %v2375 = vld [vmem:[%s2360 + $0x38] sm:$0xf]
    %v2376 = vld [vmem:[%s2360 + $0x3c] sm:$0xf]
    %v2393 = vunpack.c.l.b16 %v2361
    %v2394 = vunpack.c.l.b16 %v2362
    %v2395 = vunpack.c.l.b16 %v2363
    %v2396 = vunpack.c.l.b16 %v2364
    %v2397 = vunpack.c.l.b16 %v2365
    %v2398 = vunpack.c.l.b16 %v2366
    %v2399 = vunpack.c.l.b16 %v2367
    %v2400 = vunpack.c.l.b16 %v2368
    %v2401 = vunpack.c.l.b16 %v2369
    %v2402 = vunpack.c.l.b16 %v2370
    %v2403 = vunpack.c.l.b16 %v2371
    %v2404 = vunpack.c.l.b16 %v2372
    %v2405 = vunpack.c.l.b16 %v2373
    %v2406 = vunpack.c.l.b16 %v2374
    %v2407 = vunpack.c.l.b16 %v2375
    %v2408 = vunpack.c.l.b16 %v2376
    %v2409 = vpack.c.b16 %v2394, %v2393
    %v2410 = vpack.c.b16 %v2396, %v2395
    %v2411 = vpack.c.b16 %v2398, %v2397
    %v2412 = vpack.c.b16 %v2400, %v2399
    %v2413 = vpack.c.b16 %v2402, %v2401
    %v2414 = vpack.c.b16 %v2404, %v2403
    %v2415 = vpack.c.b16 %v2406, %v2405
    %v2416 = vpack.c.b16 %v2408, %v2407
    %2425 = vmatprep.subr.bf16.mxu0 0
    %2426 = vmatpush1.bf16.msra.mxu0 %v2409
    %2427 = vmatprep.subr.bf16.mxu0 0
    %2428 = vmatpush1.bf16.msra.mxu0 %v2410
    %2429 = vmatprep.subr.bf16.mxu0 0
    %2430 = vmatpush1.bf16.msra.mxu0 %v2411
    %2431 = vmatprep.subr.bf16.mxu0 0
    %2432 = vmatpush1.bf16.msra.mxu0 %v2412
    %2433 = vmatprep.subr.bf16.mxu0 0
    %2434 = vmatpush1.bf16.msra.mxu0 %v2413
    %2435 = vmatprep.subr.bf16.mxu0 0
    %2436 = vmatpush1.bf16.msra.mxu0 %v2414
    %2437 = vmatprep.subr.bf16.mxu0 0
    %2438 = vmatpush1.bf16.msra.mxu0 %v2415
    %2439 = vmatprep.subr.bf16.mxu0 0
    %2440 = vmatpush1.bf16.msra.mxu0 %v2416
    %2441 = vmatprep.subr.bf16.mxu0 0
    %2442 = vmatpush1.bf16.msra.mxu0 0
    %2443 = vmatprep.subr.bf16.mxu0 0
    %2444 = vmatpush1.bf16.msra.mxu0 0
    %2445 = vmatprep.subr.bf16.mxu0 0
    %2446 = vmatpush1.bf16.msra.mxu0 0
    %2447 = vmatprep.subr.bf16.mxu0 0
    %2448 = vmatpush1.bf16.msra.mxu0 0
    %2449 = vmatprep.subr.bf16.mxu0 0
    %2450 = vmatpush1.bf16.msra.mxu0 0
    %2451 = vmatprep.subr.bf16.mxu0 0
    %2452 = vmatpush1.bf16.msra.mxu0 0
    %2453 = vmatprep.subr.bf16.mxu0 0
    %2454 = vmatpush1.bf16.msra.mxu0 0
    %2455 = vmatprep.subr.bf16.mxu0 0
    %2456 = vmatpush1.bf16.msra.mxu0 0
    %2457 = vmatprep.mubr.bf16.mxu0 0
    %2458 = vmatmul.mubr.bf16.gmra.mrb[0].mxu0 %v2352
    %v2459 = vpop.f32.mrb[0].mxu0
    %v2460 = vadd.f32 0.0, %v2459
    %v2461 = vpop.f32.mrb[0].mxu0
    %v2462 = vpop.f32.mrb[0].mxu0
    %v2463 = vadd.f32 0.0, %v2462
    %v2464 = vpop.f32.mrb[0].mxu0
    %2465 = vmatprep.mubr.bf16.mxu0 0
    %2466 = vmatmul.mubr.bf16.gmra.mrb[0].mxu0 %v2353
    %v2467 = vpop.f32.mrb[0].mxu0
    %v2468 = vadd.f32 0.0, %v2467
    %v2469 = vpop.f32.mrb[0].mxu0
    %v2470 = vpop.f32.mrb[0].mxu0
    %v2471 = vadd.f32 0.0, %v2470
    %v2472 = vpop.f32.mrb[0].mxu0
    %2473 = vmatprep.mubr.bf16.mxu0 0
    %2474 = vmatmul.mubr.bf16.gmra.mrb[0].mxu0 %v2354
    %v2475 = vpop.f32.mrb[0].mxu0
    %v2476 = vadd.f32 0.0, %v2475
    %v2477 = vpop.f32.mrb[0].mxu0
    %v2478 = vpop.f32.mrb[0].mxu0
    %v2479 = vadd.f32 0.0, %v2478
    %v2480 = vpop.f32.mrb[0].mxu0
    %2481 = vmatprep.mubr.bf16.mxu0 0
    %2482 = vmatmul.mubr.bf16.gmra.mrb[0].mxu0 %v2355
    %v2483 = vpop.f32.mrb[0].mxu0
    %v2484 = vadd.f32 0.0, %v2483
    %v2485 = vpop.f32.mrb[0].mxu0
    %v2486 = vpop.f32.mrb[0].mxu0
    %v2487 = vadd.f32 0.0, %v2486
    %v2488 = vpop.f32.mrb[0].mxu0
    %2489 = vmatprep.mubr.bf16.mxu0 0
    %2490 = vmatmul.mubr.bf16.gmra.mrb[0].mxu0 %v2356
    %v2491 = vpop.f32.mrb[0].mxu0
    %v2492 = vadd.f32 0.0, %v2491
    %v2493 = vpop.f32.mrb[0].mxu0
    %v2494 = vpop.f32.mrb[0].mxu0
    %v2495 = vadd.f32 0.0, %v2494
    %v2496 = vpop.f32.mrb[0].mxu0
    %2497 = vmatprep.mubr.bf16.mxu0 0
    %2498 = vmatmul.mubr.bf16.gmra.mrb[0].mxu0 %v2357
    %v2499 = vpop.f32.mrb[0].mxu0
    %v2500 = vadd.f32 0.0, %v2499
    %v2501 = vpop.f32.mrb[0].mxu0
    %v2502 = vpop.f32.mrb[0].mxu0
    %v2503 = vadd.f32 0.0, %v2502
    %v2504 = vpop.f32.mrb[0].mxu0
    %2505 = vmatprep.mubr.bf16.mxu0 0
    %2506 = vmatmul.mubr.bf16.gmra.mrb[0].mxu0 %v2358
    %v2507 = vpop.f32.mrb[0].mxu0
    %v2508 = vadd.f32 0.0, %v2507
    %v2509 = vpop.f32.mrb[0].mxu0
    %v2510 = vpop.f32.mrb[0].mxu0
    %v2511 = vadd.f32 0.0, %v2510
    %v2512 = vpop.f32.mrb[0].mxu0
    %2513 = vmatprep.mubr.bf16.mxu0 0
    %2514 = vmatmul.mubr.bf16.gmra.mrb[0].mxu0 %v2359
    %v2515 = vpop.f32.mrb[0].mxu0
    %v2516 = vadd.f32 0.0, %v2515
    %v2517 = vpop.f32.mrb[0].mxu0
    %v2518 = vpop.f32.mrb[0].mxu0
    %v2519 = vadd.f32 0.0, %v2518
    %v2520 = vpop.f32.mrb[0].mxu0
    %2521 = vdwg.mxu0
    %v2522 = vadd.f32 %v2320, %v2460
    %v2523 = vadd.f32 %v2321, %v2463
    %v2524 = vadd.f32 %v2322, %v2468
    %v2525 = vadd.f32 %v2323, %v2471
    %v2526 = vadd.f32 %v2324, %v2476
    %v2527 = vadd.f32 %v2325, %v2479
    %v2528 = vadd.f32 %v2326, %v2484
    %v2529 = vadd.f32 %v2327, %v2487
    %v2530 = vadd.f32 %v2328, %v2492
    %v2531 = vadd.f32 %v2329, %v2495
    %v2532 = vadd.f32 %v2330, %v2500
    %v2533 = vadd.f32 %v2331, %v2503
    %v2534 = vadd.f32 %v2332, %v2508
    %v2535 = vadd.f32 %v2333, %v2511
    %v2536 = vadd.f32 %v2334, %v2516
    %v2537 = vadd.f32 %v2335, %v2519
    %v2538 = vld [vmem:[#allocation2 + $0x1bf] sm:$0xff]
    %v2539 = vld [vmem:[#allocation2 + $0x1c7] sm:$0xff]
    %v2540 = vld [vmem:[#allocation2 + $0x1cf] sm:$0xff]
    %v2541 = vld [vmem:[#allocation2 + $0x1d7] sm:$0xff]
    %v2542 = vld [vmem:[#allocation2 + $0x1df] sm:$0xff]
    %v2543 = vld [vmem:[#allocation2 + $0x1e7] sm:$0xff]
    %v2544 = vld [vmem:[#allocation2 + $0x1ef] sm:$0xff]
    %v2545 = vld [vmem:[#allocation2 + $0x1f7] sm:$0xff]
    %v2546 = vld [vmem:[#allocation2 + $0x1ff] sm:$0xff]
    %v2547 = vld [vmem:[#allocation2 + $0x207] sm:$0xff]
    %v2548 = vld [vmem:[#allocation2 + $0x20f] sm:$0xff]
    %v2549 = vld [vmem:[#allocation2 + $0x217] sm:$0xff]
    %v2550 = vld [vmem:[#allocation2 + $0x21f] sm:$0xff]
    %v2551 = vld [vmem:[#allocation2 + $0x227] sm:$0xff]
    %v2552 = vld [vmem:[#allocation2 + $0x22f] sm:$0xff]
    %v2553 = vld [vmem:[#allocation2 + $0x237] sm:$0xff]
    %v2554 = vsel %vm1916, %v2538, 0.0
    %v2555 = vsel %vm1917, %v2539, 0.0
    %v2556 = vsel %vm1918, %v2540, 0.0
    %v2557 = vsel %vm1919, %v2541, 0.0
    %v2558 = vsel %vm1920, %v2542, 0.0
    %v2559 = vsel %vm1921, %v2543, 0.0
    %v2560 = vsel %vm1922, %v2544, 0.0
    %v2561 = vsel %vm1923, %v2545, 0.0
    %v2562 = vsel %vm1924, %v2546, 0.0
    %v2563 = vsel %vm1925, %v2547, 0.0
    %v2564 = vsel %vm1926, %v2548, 0.0
    %v2565 = vsel %vm1927, %v2549, 0.0
    %v2566 = vsel %vm1928, %v2550, 0.0
    %v2567 = vsel %vm1929, %v2551, 0.0
    %v2568 = vsel %vm1930, %v2552, 0.0
    %v2569 = vsel %vm1931, %v2553, 0.0
    %v2570 = vpack.c.bf16 %v2555, %v2554
    %v2571 = vpack.c.bf16 %v2557, %v2556
    %v2572 = vpack.c.bf16 %v2559, %v2558
    %v2573 = vpack.c.bf16 %v2561, %v2560
    %v2574 = vpack.c.bf16 %v2563, %v2562
    %v2575 = vpack.c.bf16 %v2565, %v2564
    %v2576 = vpack.c.bf16 %v2567, %v2566
    %v2577 = vpack.c.bf16 %v2569, %v2568
    %s2578 = scalar_lea.vmem %s2, 384
    %v2579 = vld [vmem:[%s2578] sm:$0xf]
    %v2580 = vld [vmem:[%s2578 + $0x4] sm:$0xf]
    %v2581 = vld [vmem:[%s2578 + $0x8] sm:$0xf]
    %v2582 = vld [vmem:[%s2578 + $0xc] sm:$0xf]
    %v2583 = vld [vmem:[%s2578 + $0x10] sm:$0xf]
    %v2584 = vld [vmem:[%s2578 + $0x14] sm:$0xf]
    %v2585 = vld [vmem:[%s2578 + $0x18] sm:$0xf]
    %v2586 = vld [vmem:[%s2578 + $0x1c] sm:$0xf]
    %v2587 = vld [vmem:[%s2578 + $0x20] sm:$0xf]
    %v2588 = vld [vmem:[%s2578 + $0x24] sm:$0xf]
    %v2589 = vld [vmem:[%s2578 + $0x28] sm:$0xf]
    %v2590 = vld [vmem:[%s2578 + $0x2c] sm:$0xf]
    %v2591 = vld [vmem:[%s2578 + $0x30] sm:$0xf]
    %v2592 = vld [vmem:[%s2578 + $0x34] sm:$0xf]
    %v2593 = vld [vmem:[%s2578 + $0x38] sm:$0xf]
    %v2594 = vld [vmem:[%s2578 + $0x3c] sm:$0xf]
    %v2611 = vunpack.c.l.b16 %v2579
    %v2612 = vunpack.c.l.b16 %v2580
    %v2613 = vunpack.c.l.b16 %v2581
    %v2614 = vunpack.c.l.b16 %v2582
    %v2615 = vunpack.c.l.b16 %v2583
    %v2616 = vunpack.c.l.b16 %v2584
    %v2617 = vunpack.c.l.b16 %v2585
    %v2618 = vunpack.c.l.b16 %v2586
    %v2619 = vunpack.c.l.b16 %v2587
    %v2620 = vunpack.c.l.b16 %v2588
    %v2621 = vunpack.c.l.b16 %v2589
    %v2622 = vunpack.c.l.b16 %v2590
    %v2623 = vunpack.c.l.b16 %v2591
    %v2624 = vunpack.c.l.b16 %v2592
    %v2625 = vunpack.c.l.b16 %v2593
    %v2626 = vunpack.c.l.b16 %v2594
    %v2627 = vpack.c.b16 %v2612, %v2611
    %v2628 = vpack.c.b16 %v2614, %v2613
    %v2629 = vpack.c.b16 %v2616, %v2615
    %v2630 = vpack.c.b16 %v2618, %v2617
    %v2631 = vpack.c.b16 %v2620, %v2619
    %v2632 = vpack.c.b16 %v2622, %v2621
    %v2633 = vpack.c.b16 %v2624, %v2623
    %v2634 = vpack.c.b16 %v2626, %v2625
    %2643 = vmatprep.subr.bf16.mxu0 0
    %2644 = vmatpush1.bf16.msra.mxu0 %v2627
    %2645 = vmatprep.subr.bf16.mxu0 0
    %2646 = vmatpush1.bf16.msra.mxu0 %v2628
    %2647 = vmatprep.subr.bf16.mxu0 0
    %2648 = vmatpush1.bf16.msra.mxu0 %v2629
    %2649 = vmatprep.subr.bf16.mxu0 0
    %2650 = vmatpush1.bf16.msra.mxu0 %v2630
    %2651 = vmatprep.subr.bf16.mxu0 0
    %2652 = vmatpush1.bf16.msra.mxu0 %v2631
    %2653 = vmatprep.subr.bf16.mxu0 0
    %2654 = vmatpush1.bf16.msra.mxu0 %v2632
    %2655 = vmatprep.subr.bf16.mxu0 0
    %2656 = vmatpush1.bf16.msra.mxu0 %v2633
    %2657 = vmatprep.subr.bf16.mxu0 0
    %2658 = vmatpush1.bf16.msra.mxu0 %v2634
    %2659 = vmatprep.subr.bf16.mxu0 0
    %2660 = vmatpush1.bf16.msra.mxu0 0
    %2661 = vmatprep.subr.bf16.mxu0 0
    %2662 = vmatpush1.bf16.msra.mxu0 0
    %2663 = vmatprep.subr.bf16.mxu0 0
    %2664 = vmatpush1.bf16.msra.mxu0 0
    %2665 = vmatprep.subr.bf16.mxu0 0
    %2666 = vmatpush1.bf16.msra.mxu0 0
    %2667 = vmatprep.subr.bf16.mxu0 0
    %2668 = vmatpush1.bf16.msra.mxu0 0
    %2669 = vmatprep.subr.bf16.mxu0 0
    %2670 = vmatpush1.bf16.msra.mxu0 0
    %2671 = vmatprep.subr.bf16.mxu0 0
    %2672 = vmatpush1.bf16.msra.mxu0 0
    %2673 = vmatprep.subr.bf16.mxu0 0
    %2674 = vmatpush1.bf16.msra.mxu0 0
    %2675 = vmatprep.mubr.bf16.mxu0 0
    %2676 = vmatmul.mubr.bf16.gmra.mrb[0].mxu0 %v2570
    %v2677 = vpop.f32.mrb[0].mxu0
    %v2678 = vadd.f32 0.0, %v2677
    %v2679 = vpop.f32.mrb[0].mxu0
    %v2680 = vpop.f32.mrb[0].mxu0
    %v2681 = vadd.f32 0.0, %v2680
    %v2682 = vpop.f32.mrb[0].mxu0
    %2683 = vmatprep.mubr.bf16.mxu0 0
    %2684 = vmatmul.mubr.bf16.gmra.mrb[0].mxu0 %v2571
    %v2685 = vpop.f32.mrb[0].mxu0
    %v2686 = vadd.f32 0.0, %v2685
    %v2687 = vpop.f32.mrb[0].mxu0
    %v2688 = vpop.f32.mrb[0].mxu0
    %v2689 = vadd.f32 0.0, %v2688
    %v2690 = vpop.f32.mrb[0].mxu0
    %2691 = vmatprep.mubr.bf16.mxu0 0
    %2692 = vmatmul.mubr.bf16.gmra.mrb[0].mxu0 %v2572
    %v2693 = vpop.f32.mrb[0].mxu0
    %v2694 = vadd.f32 0.0, %v2693
    %v2695 = vpop.f32.mrb[0].mxu0
    %v2696 = vpop.f32.mrb[0].mxu0
    %v2697 = vadd.f32 0.0, %v2696
    %v2698 = vpop.f32.mrb[0].mxu0
    %2699 = vmatprep.mubr.bf16.mxu0 0
    %2700 = vmatmul.mubr.bf16.gmra.mrb[0].mxu0 %v2573
    %v2701 = vpop.f32.mrb[0].mxu0
    %v2702 = vadd.f32 0.0, %v2701
    %v2703 = vpop.f32.mrb[0].mxu0
    %v2704 = vpop.f32.mrb[0].mxu0
    %v2705 = vadd.f32 0.0, %v2704
    %v2706 = vpop.f32.mrb[0].mxu0
    %2707 = vmatprep.mubr.bf16.mxu0 0
    %2708 = vmatmul.mubr.bf16.gmra.mrb[0].mxu0 %v2574
    %v2709 = vpop.f32.mrb[0].mxu0
    %v2710 = vadd.f32 0.0, %v2709
    %v2711 = vpop.f32.mrb[0].mxu0
    %v2712 = vpop.f32.mrb[0].mxu0
    %v2713 = vadd.f32 0.0, %v2712
    %v2714 = vpop.f32.mrb[0].mxu0
    %2715 = vmatprep.mubr.bf16.mxu0 0
    %2716 = vmatmul.mubr.bf16.gmra.mrb[0].mxu0 %v2575
    %v2717 = vpop.f32.mrb[0].mxu0
    %v2718 = vadd.f32 0.0, %v2717
    %v2719 = vpop.f32.mrb[0].mxu0
    %v2720 = vpop.f32.mrb[0].mxu0
    %v2721 = vadd.f32 0.0, %v2720
    %v2722 = vpop.f32.mrb[0].mxu0
    %2723 = vmatprep.mubr.bf16.mxu0 0
    %2724 = vmatmul.mubr.bf16.gmra.mrb[0].mxu0 %v2576
    %v2725 = vpop.f32.mrb[0].mxu0
    %v2726 = vadd.f32 0.0, %v2725
    %v2727 = vpop.f32.mrb[0].mxu0
    %v2728 = vpop.f32.mrb[0].mxu0
    %v2729 = vadd.f32 0.0, %v2728
    %v2730 = vpop.f32.mrb[0].mxu0
    %2731 = vmatprep.mubr.bf16.mxu0 0
    %2732 = vmatmul.mubr.bf16.gmra.mrb[0].mxu0 %v2577
    %v2733 = vpop.f32.mrb[0].mxu0
    %v2734 = vadd.f32 0.0, %v2733
    %v2735 = vpop.f32.mrb[0].mxu0
    %v2736 = vpop.f32.mrb[0].mxu0
    %v2737 = vadd.f32 0.0, %v2736
    %v2738 = vpop.f32.mrb[0].mxu0
    %2739 = vdwg.mxu0
    %v2740 = vadd.f32 %v2522, %v2678
    %v2741 = vadd.f32 %v2523, %v2681
    %v2742 = vadd.f32 %v2524, %v2686
    %v2743 = vadd.f32 %v2525, %v2689
    %v2744 = vadd.f32 %v2526, %v2694
    %v2745 = vadd.f32 %v2527, %v2697
    %v2746 = vadd.f32 %v2528, %v2702
    %v2747 = vadd.f32 %v2529, %v2705
    %v2748 = vadd.f32 %v2530, %v2710
    %v2749 = vadd.f32 %v2531, %v2713
    %v2750 = vadd.f32 %v2532, %v2718
    %v2751 = vadd.f32 %v2533, %v2721
    %v2752 = vadd.f32 %v2534, %v2726
    %v2753 = vadd.f32 %v2535, %v2729
    %v2754 = vadd.f32 %v2536, %v2734
    %v2755 = vadd.f32 %v2537, %v2737
    %v2756 = vld [vmem:[#allocation2 + $0x130] sm:$0xff]
    %v2757 = vld [vmem:[#allocation2 + $0x138] sm:$0xff]
    %v2758 = vld [vmem:[#allocation2 + $0x140] sm:$0xff]
    %v2759 = vld [vmem:[#allocation2 + $0x148] sm:$0xff]
    %v2760 = vld [vmem:[#allocation2 + $0x150] sm:$0xff]
    %v2761 = vld [vmem:[#allocation2 + $0x158] sm:$0xff]
    %v2762 = vld [vmem:[#allocation2 + $0x160] sm:$0xff]
    %v2763 = vld [vmem:[#allocation2 + $0x168] sm:$0xff]
    %v2764 = vld [vmem:[#allocation2 + $0x170] sm:$0xff]
    %v2765 = vld [vmem:[#allocation2 + $0x178] sm:$0xff]
    %v2766 = vld [vmem:[#allocation2 + $0x180] sm:$0xff]
    %v2767 = vld [vmem:[#allocation2 + $0x188] sm:$0xff]
    %v2768 = vld [vmem:[#allocation2 + $0x190] sm:$0xff]
    %v2769 = vld [vmem:[#allocation2 + $0x198] sm:$0xff]
    %v2770 = vld [vmem:[#allocation2 + $0x1a0] sm:$0xff]
    %v2771 = vld [vmem:[#allocation2 + $0x1a8] sm:$0xff]
    %v2772 = vpack.c.bf16 %v2757, %v2756
    %v2773 = vpack.c.bf16 %v2759, %v2758
    %v2774 = vpack.c.bf16 %v2761, %v2760
    %v2775 = vpack.c.bf16 %v2763, %v2762
    %v2776 = vpack.c.bf16 %v2765, %v2764
    %v2777 = vpack.c.bf16 %v2767, %v2766
    %v2778 = vpack.c.bf16 %v2769, %v2768
    %v2779 = vpack.c.bf16 %v2771, %v2770
    %s2780 = scalar_lea.vmem %s2, 448
    %v2781 = vld [vmem:[%s2780] sm:$0xf]
    %v2782 = vld [vmem:[%s2780 + $0x4] sm:$0xf]
    %v2783 = vld [vmem:[%s2780 + $0x8] sm:$0xf]
    %v2784 = vld [vmem:[%s2780 + $0xc] sm:$0xf]
    %v2785 = vld [vmem:[%s2780 + $0x10] sm:$0xf]
    %v2786 = vld [vmem:[%s2780 + $0x14] sm:$0xf]
    %v2787 = vld [vmem:[%s2780 + $0x18] sm:$0xf]
    %v2788 = vld [vmem:[%s2780 + $0x1c] sm:$0xf]
    %v2789 = vld [vmem:[%s2780 + $0x20] sm:$0xf]
    %v2790 = vld [vmem:[%s2780 + $0x24] sm:$0xf]
    %v2791 = vld [vmem:[%s2780 + $0x28] sm:$0xf]
    %v2792 = vld [vmem:[%s2780 + $0x2c] sm:$0xf]
    %v2793 = vld [vmem:[%s2780 + $0x30] sm:$0xf]
    %v2794 = vld [vmem:[%s2780 + $0x34] sm:$0xf]
    %v2795 = vld [vmem:[%s2780 + $0x38] sm:$0xf]
    %v2796 = vld [vmem:[%s2780 + $0x3c] sm:$0xf]
    %v2813 = vunpack.c.l.b16 %v2781
    %v2814 = vunpack.c.l.b16 %v2782
    %v2815 = vunpack.c.l.b16 %v2783
    %v2816 = vunpack.c.l.b16 %v2784
    %v2817 = vunpack.c.l.b16 %v2785
    %v2818 = vunpack.c.l.b16 %v2786
    %v2819 = vunpack.c.l.b16 %v2787
    %v2820 = vunpack.c.l.b16 %v2788
    %v2821 = vunpack.c.l.b16 %v2789
    %v2822 = vunpack.c.l.b16 %v2790
    %v2823 = vunpack.c.l.b16 %v2791
    %v2824 = vunpack.c.l.b16 %v2792
    %v2825 = vunpack.c.l.b16 %v2793
    %v2826 = vunpack.c.l.b16 %v2794
    %v2827 = vunpack.c.l.b16 %v2795
    %v2828 = vunpack.c.l.b16 %v2796
    %v2829 = vpack.c.b16 %v2814, %v2813
    %v2830 = vpack.c.b16 %v2816, %v2815
    %v2831 = vpack.c.b16 %v2818, %v2817
    %v2832 = vpack.c.b16 %v2820, %v2819
    %v2833 = vpack.c.b16 %v2822, %v2821
    %v2834 = vpack.c.b16 %v2824, %v2823
    %v2835 = vpack.c.b16 %v2826, %v2825
    %v2836 = vpack.c.b16 %v2828, %v2827
    %2845 = vmatprep.subr.bf16.mxu0 0
    %2846 = vmatpush1.bf16.msra.mxu0 %v2829
    %2847 = vmatprep.subr.bf16.mxu0 0
    %2848 = vmatpush1.bf16.msra.mxu0 %v2830
    %2849 = vmatprep.subr.bf16.mxu0 0
    %2850 = vmatpush1.bf16.msra.mxu0 %v2831
    %2851 = vmatprep.subr.bf16.mxu0 0
    %2852 = vmatpush1.bf16.msra.mxu0 %v2832
    %2853 = vmatprep.subr.bf16.mxu0 0
    %2854 = vmatpush1.bf16.msra.mxu0 %v2833
    %2855 = vmatprep.subr.bf16.mxu0 0
    %2856 = vmatpush1.bf16.msra.mxu0 %v2834
    %2857 = vmatprep.subr.bf16.mxu0 0
    %2858 = vmatpush1.bf16.msra.mxu0 %v2835
    %2859 = vmatprep.subr.bf16.mxu0 0
    %2860 = vmatpush1.bf16.msra.mxu0 %v2836
    %2861 = vmatprep.subr.bf16.mxu0 0
    %2862 = vmatpush1.bf16.msra.mxu0 0
    %2863 = vmatprep.subr.bf16.mxu0 0
    %2864 = vmatpush1.bf16.msra.mxu0 0
    %2865 = vmatprep.subr.bf16.mxu0 0
    %2866 = vmatpush1.bf16.msra.mxu0 0
    %2867 = vmatprep.subr.bf16.mxu0 0
    %2868 = vmatpush1.bf16.msra.mxu0 0
    %2869 = vmatprep.subr.bf16.mxu0 0
    %2870 = vmatpush1.bf16.msra.mxu0 0
    %2871 = vmatprep.subr.bf16.mxu0 0
    %2872 = vmatpush1.bf16.msra.mxu0 0
    %2873 = vmatprep.subr.bf16.mxu0 0
    %2874 = vmatpush1.bf16.msra.mxu0 0
    %2875 = vmatprep.subr.bf16.mxu0 0
    %2876 = vmatpush1.bf16.msra.mxu0 0
    %2877 = vmatprep.mubr.bf16.mxu0 0
    %2878 = vmatmul.mubr.bf16.gmra.mrb[0].mxu0 %v2772
    %v2879 = vpop.f32.mrb[0].mxu0
    %v2880 = vadd.f32 0.0, %v2879
    %v2881 = vpop.f32.mrb[0].mxu0
    %v2882 = vpop.f32.mrb[0].mxu0
    %v2883 = vadd.f32 0.0, %v2882
    %v2884 = vpop.f32.mrb[0].mxu0
    %2885 = vmatprep.mubr.bf16.mxu0 0
    %2886 = vmatmul.mubr.bf16.gmra.mrb[0].mxu0 %v2773
    %v2887 = vpop.f32.mrb[0].mxu0
    %v2888 = vadd.f32 0.0, %v2887
    %v2889 = vpop.f32.mrb[0].mxu0
    %v2890 = vpop.f32.mrb[0].mxu0
    %v2891 = vadd.f32 0.0, %v2890
    %v2892 = vpop.f32.mrb[0].mxu0
    %2893 = vmatprep.mubr.bf16.mxu0 0
    %2894 = vmatmul.mubr.bf16.gmra.mrb[0].mxu0 %v2774
    %v2895 = vpop.f32.mrb[0].mxu0
    %v2896 = vadd.f32 0.0, %v2895
    %v2897 = vpop.f32.mrb[0].mxu0
    %v2898 = vpop.f32.mrb[0].mxu0
    %v2899 = vadd.f32 0.0, %v2898
    %v2900 = vpop.f32.mrb[0].mxu0
    %2901 = vmatprep.mubr.bf16.mxu0 0
    %2902 = vmatmul.mubr.bf16.gmra.mrb[0].mxu0 %v2775
    %v2903 = vpop.f32.mrb[0].mxu0
    %v2904 = vadd.f32 0.0, %v2903
    %v2905 = vpop.f32.mrb[0].mxu0
    %v2906 = vpop.f32.mrb[0].mxu0
    %v2907 = vadd.f32 0.0, %v2906
    %v2908 = vpop.f32.mrb[0].mxu0
    %2909 = vmatprep.mubr.bf16.mxu0 0
    %2910 = vmatmul.mubr.bf16.gmra.mrb[0].mxu0 %v2776
    %v2911 = vpop.f32.mrb[0].mxu0
    %v2912 = vadd.f32 0.0, %v2911
    %v2913 = vpop.f32.mrb[0].mxu0
    %v2914 = vpop.f32.mrb[0].mxu0
    %v2915 = vadd.f32 0.0, %v2914
    %v2916 = vpop.f32.mrb[0].mxu0
    %2917 = vmatprep.mubr.bf16.mxu0 0
    %2918 = vmatmul.mubr.bf16.gmra.mrb[0].mxu0 %v2777
    %v2919 = vpop.f32.mrb[0].mxu0
    %v2920 = vadd.f32 0.0, %v2919
    %v2921 = vpop.f32.mrb[0].mxu0
    %v2922 = vpop.f32.mrb[0].mxu0
    %v2923 = vadd.f32 0.0, %v2922
    %v2924 = vpop.f32.mrb[0].mxu0
    %2925 = vmatprep.mubr.bf16.mxu0 0
    %2926 = vmatmul.mubr.bf16.gmra.mrb[0].mxu0 %v2778
    %v2927 = vpop.f32.mrb[0].mxu0
    %v2928 = vadd.f32 0.0, %v2927
    %v2929 = vpop.f32.mrb[0].mxu0
    %v2930 = vpop.f32.mrb[0].mxu0
    %v2931 = vadd.f32 0.0, %v2930
    %v2932 = vpop.f32.mrb[0].mxu0
    %2933 = vmatprep.mubr.bf16.mxu0 0
    %2934 = vmatmul.mubr.bf16.gmra.mrb[0].mxu0 %v2779
    %v2935 = vpop.f32.mrb[0].mxu0
    %v2936 = vadd.f32 0.0, %v2935
    %v2937 = vpop.f32.mrb[0].mxu0
    %v2938 = vpop.f32.mrb[0].mxu0
    %v2939 = vadd.f32 0.0, %v2938
    %v2940 = vpop.f32.mrb[0].mxu0
    %2941 = vdwg.mxu0
    %v2942 = vadd.f32 %v2740, %v2880
    %v2943 = vadd.f32 %v2741, %v2883
    %v2944 = vadd.f32 %v2742, %v2888
    %v2945 = vadd.f32 %v2743, %v2891
    %v2946 = vadd.f32 %v2744, %v2896
    %v2947 = vadd.f32 %v2745, %v2899
    %v2948 = vadd.f32 %v2746, %v2904
    %v2949 = vadd.f32 %v2747, %v2907
    %v2950 = vadd.f32 %v2748, %v2912
    %v2951 = vadd.f32 %v2749, %v2915
    %v2952 = vadd.f32 %v2750, %v2920
    %v2953 = vadd.f32 %v2751, %v2923
    %v2954 = vadd.f32 %v2752, %v2928
    %v2955 = vadd.f32 %v2753, %v2931
    %v2956 = vadd.f32 %v2754, %v2936
    %v2957 = vadd.f32 %v2755, %v2939
    %v2958 = vld [vmem:[#allocation2 + $0x1c0] sm:$0xff]
    %v2959 = vld [vmem:[#allocation2 + $0x1c8] sm:$0xff]
    %v2960 = vld [vmem:[#allocation2 + $0x1d0] sm:$0xff]
    %v2961 = vld [vmem:[#allocation2 + $0x1d8] sm:$0xff]
    %v2962 = vld [vmem:[#allocation2 + $0x1e0] sm:$0xff]
    %v2963 = vld [vmem:[#allocation2 + $0x1e8] sm:$0xff]
    %v2964 = vld [vmem:[#allocation2 + $0x1f0] sm:$0xff]
    %v2965 = vld [vmem:[#allocation2 + $0x1f8] sm:$0xff]
    %v2966 = vld [vmem:[#allocation2 + $0x200] sm:$0xff]
    %v2967 = vld [vmem:[#allocation2 + $0x208] sm:$0xff]
    %v2968 = vld [vmem:[#allocation2 + $0x210] sm:$0xff]
    %v2969 = vld [vmem:[#allocation2 + $0x218] sm:$0xff]
    %v2970 = vld [vmem:[#allocation2 + $0x220] sm:$0xff]
    %v2971 = vld [vmem:[#allocation2 + $0x228] sm:$0xff]
    %v2972 = vld [vmem:[#allocation2 + $0x230] sm:$0xff]
    %v2973 = vld [vmem:[#allocation2 + $0x238] sm:$0xff]
    %v2974 = vpack.c.bf16 %v2959, %v2958
    %v2975 = vpack.c.bf16 %v2961, %v2960
    %v2976 = vpack.c.bf16 %v2963, %v2962
    %v2977 = vpack.c.bf16 %v2965, %v2964
    %v2978 = vpack.c.bf16 %v2967, %v2966
    %v2979 = vpack.c.bf16 %v2969, %v2968
    %v2980 = vpack.c.bf16 %v2971, %v2970
    %v2981 = vpack.c.bf16 %v2973, %v2972
    %s2982 = scalar_lea.vmem %s2, 512
    %v2983 = vld [vmem:[%s2982] sm:$0xf]
    %v2984 = vld [vmem:[%s2982 + $0x4] sm:$0xf]
    %v2985 = vld [vmem:[%s2982 + $0x8] sm:$0xf]
    %v2986 = vld [vmem:[%s2982 + $0xc] sm:$0xf]
    %v2987 = vld [vmem:[%s2982 + $0x10] sm:$0xf]
    %v2988 = vld [vmem:[%s2982 + $0x14] sm:$0xf]
    %v2989 = vld [vmem:[%s2982 + $0x18] sm:$0xf]
    %v2990 = vld [vmem:[%s2982 + $0x1c] sm:$0xf]
    %v2991 = vld [vmem:[%s2982 + $0x20] sm:$0xf]
    %v2992 = vld [vmem:[%s2982 + $0x24] sm:$0xf]
    %v2993 = vld [vmem:[%s2982 + $0x28] sm:$0xf]
    %v2994 = vld [vmem:[%s2982 + $0x2c] sm:$0xf]
    %v2995 = vld [vmem:[%s2982 + $0x30] sm:$0xf]
    %v2996 = vld [vmem:[%s2982 + $0x34] sm:$0xf]
    %v2997 = vld [vmem:[%s2982 + $0x38] sm:$0xf]
    %v2998 = vld [vmem:[%s2982 + $0x3c] sm:$0xf]
    %v3015 = vunpack.c.l.b16 %v2983
    %v3016 = vunpack.c.l.b16 %v2984
    %v3017 = vunpack.c.l.b16 %v2985
    %v3018 = vunpack.c.l.b16 %v2986
    %v3019 = vunpack.c.l.b16 %v2987
    %v3020 = vunpack.c.l.b16 %v2988
    %v3021 = vunpack.c.l.b16 %v2989
    %v3022 = vunpack.c.l.b16 %v2990
    %v3023 = vunpack.c.l.b16 %v2991
    %v3024 = vunpack.c.l.b16 %v2992
    %v3025 = vunpack.c.l.b16 %v2993
    %v3026 = vunpack.c.l.b16 %v2994
    %v3027 = vunpack.c.l.b16 %v2995
    %v3028 = vunpack.c.l.b16 %v2996
    %v3029 = vunpack.c.l.b16 %v2997
    %v3030 = vunpack.c.l.b16 %v2998
    %v3031 = vpack.c.b16 %v3016, %v3015
    %v3032 = vpack.c.b16 %v3018, %v3017
    %v3033 = vpack.c.b16 %v3020, %v3019
    %v3034 = vpack.c.b16 %v3022, %v3021
    %v3035 = vpack.c.b16 %v3024, %v3023
    %v3036 = vpack.c.b16 %v3026, %v3025
    %v3037 = vpack.c.b16 %v3028, %v3027
    %v3038 = vpack.c.b16 %v3030, %v3029
    %3047 = vmatprep.subr.bf16.mxu0 0
    %3048 = vmatpush1.bf16.msra.mxu0 %v3031
    %3049 = vmatprep.subr.bf16.mxu0 0
    %3050 = vmatpush1.bf16.msra.mxu0 %v3032
    %3051 = vmatprep.subr.bf16.mxu0 0
    %3052 = vmatpush1.bf16.msra.mxu0 %v3033
    %3053 = vmatprep.subr.bf16.mxu0 0
    %3054 = vmatpush1.bf16.msra.mxu0 %v3034
    %3055 = vmatprep.subr.bf16.mxu0 0
    %3056 = vmatpush1.bf16.msra.mxu0 %v3035
    %3057 = vmatprep.subr.bf16.mxu0 0
    %3058 = vmatpush1.bf16.msra.mxu0 %v3036
    %3059 = vmatprep.subr.bf16.mxu0 0
    %3060 = vmatpush1.bf16.msra.mxu0 %v3037
    %3061 = vmatprep.subr.bf16.mxu0 0
    %3062 = vmatpush1.bf16.msra.mxu0 %v3038
    %3063 = vmatprep.subr.bf16.mxu0 0
    %3064 = vmatpush1.bf16.msra.mxu0 0
    %3065 = vmatprep.subr.bf16.mxu0 0
    %3066 = vmatpush1.bf16.msra.mxu0 0
    %3067 = vmatprep.subr.bf16.mxu0 0
    %3068 = vmatpush1.bf16.msra.mxu0 0
    %3069 = vmatprep.subr.bf16.mxu0 0
    %3070 = vmatpush1.bf16.msra.mxu0 0
    %3071 = vmatprep.subr.bf16.mxu0 0
    %3072 = vmatpush1.bf16.msra.mxu0 0
    %3073 = vmatprep.subr.bf16.mxu0 0
    %3074 = vmatpush1.bf16.msra.mxu0 0
    %3075 = vmatprep.subr.bf16.mxu0 0
    %3076 = vmatpush1.bf16.msra.mxu0 0
    %3077 = vmatprep.subr.bf16.mxu0 0
    %3078 = vmatpush1.bf16.msra.mxu0 0
    %3079 = vmatprep.mubr.bf16.mxu0 0
    %3080 = vmatmul.mubr.bf16.gmra.mrb[0].mxu0 %v2974
    %v3081 = vpop.f32.mrb[0].mxu0
    %v3082 = vadd.f32 0.0, %v3081
    %v3083 = vpop.f32.mrb[0].mxu0
    %v3084 = vpop.f32.mrb[0].mxu0
    %v3085 = vadd.f32 0.0, %v3084
    %v3086 = vpop.f32.mrb[0].mxu0
    %3087 = vmatprep.mubr.bf16.mxu0 0
    %3088 = vmatmul.mubr.bf16.gmra.mrb[0].mxu0 %v2975
    %v3089 = vpop.f32.mrb[0].mxu0
    %v3090 = vadd.f32 0.0, %v3089
    %v3091 = vpop.f32.mrb[0].mxu0
    %v3092 = vpop.f32.mrb[0].mxu0
    %v3093 = vadd.f32 0.0, %v3092
    %v3094 = vpop.f32.mrb[0].mxu0
    %3095 = vmatprep.mubr.bf16.mxu0 0
    %3096 = vmatmul.mubr.bf16.gmra.mrb[0].mxu0 %v2976
    %v3097 = vpop.f32.mrb[0].mxu0
    %v3098 = vadd.f32 0.0, %v3097
    %v3099 = vpop.f32.mrb[0].mxu0
    %v3100 = vpop.f32.mrb[0].mxu0
    %v3101 = vadd.f32 0.0, %v3100
    %v3102 = vpop.f32.mrb[0].mxu0
    %3103 = vmatprep.mubr.bf16.mxu0 0
    %3104 = vmatmul.mubr.bf16.gmra.mrb[0].mxu0 %v2977
    %v3105 = vpop.f32.mrb[0].mxu0
    %v3106 = vadd.f32 0.0, %v3105
    %v3107 = vpop.f32.mrb[0].mxu0
    %v3108 = vpop.f32.mrb[0].mxu0
    %v3109 = vadd.f32 0.0, %v3108
    %v3110 = vpop.f32.mrb[0].mxu0
    %3111 = vmatprep.mubr.bf16.mxu0 0
    %3112 = vmatmul.mubr.bf16.gmra.mrb[0].mxu0 %v2978
    %v3113 = vpop.f32.mrb[0].mxu0
    %v3114 = vadd.f32 0.0, %v3113
    %v3115 = vpop.f32.mrb[0].mxu0
    %v3116 = vpop.f32.mrb[0].mxu0
    %v3117 = vadd.f32 0.0, %v3116
    %v3118 = vpop.f32.mrb[0].mxu0
    %3119 = vmatprep.mubr.bf16.mxu0 0
    %3120 = vmatmul.mubr.bf16.gmra.mrb[0].mxu0 %v2979
    %v3121 = vpop.f32.mrb[0].mxu0
    %v3122 = vadd.f32 0.0, %v3121
    %v3123 = vpop.f32.mrb[0].mxu0
    %v3124 = vpop.f32.mrb[0].mxu0
    %v3125 = vadd.f32 0.0, %v3124
    %v3126 = vpop.f32.mrb[0].mxu0
    %3127 = vmatprep.mubr.bf16.mxu0 0
    %3128 = vmatmul.mubr.bf16.gmra.mrb[0].mxu0 %v2980
    %v3129 = vpop.f32.mrb[0].mxu0
    %v3130 = vadd.f32 0.0, %v3129
    %v3131 = vpop.f32.mrb[0].mxu0
    %v3132 = vpop.f32.mrb[0].mxu0
    %v3133 = vadd.f32 0.0, %v3132
    %v3134 = vpop.f32.mrb[0].mxu0
    %3135 = vmatprep.mubr.bf16.mxu0 0
    %3136 = vmatmul.mubr.bf16.gmra.mrb[0].mxu0 %v2981
    %v3137 = vpop.f32.mrb[0].mxu0
    %v3138 = vadd.f32 0.0, %v3137
    %v3139 = vpop.f32.mrb[0].mxu0
    %v3140 = vpop.f32.mrb[0].mxu0
    %v3141 = vadd.f32 0.0, %v3140
    %v3142 = vpop.f32.mrb[0].mxu0
    %3143 = vdwg.mxu0
    %v3144 = vadd.f32 %v2942, %v3082
    %v3145 = vadd.f32 %v2943, %v3085
    %v3146 = vadd.f32 %v2944, %v3090
    %v3147 = vadd.f32 %v2945, %v3093
    %v3148 = vadd.f32 %v2946, %v3098
    %v3149 = vadd.f32 %v2947, %v3101
    %v3150 = vadd.f32 %v2948, %v3106
    %v3151 = vadd.f32 %v2949, %v3109
    %v3152 = vadd.f32 %v2950, %v3114
    %v3153 = vadd.f32 %v2951, %v3117
    %v3154 = vadd.f32 %v2952, %v3122
    %v3155 = vadd.f32 %v2953, %v3125
    %v3156 = vadd.f32 %v2954, %v3130
    %v3157 = vadd.f32 %v2955, %v3133
    %v3158 = vadd.f32 %v2956, %v3138
    %v3159 = vadd.f32 %v2957, %v3141
    %v3160 = vld [vmem:[%s5 + $0x1] sm:$0x1]
    %v3161 = vlaneseq
    %v3162 = vshrl.u32 %v3161, 7
    %v3163 = vsub.s32 0, %v3162
    %v3164 = vrot.slane %v3160, %v3163
    %v3165 = vadd.f32 %v3144, %v3164
    %v3166 = vadd.f32 %v3145, %v3164
    %v3167 = vadd.f32 %v3146, %v3164
    %v3168 = vadd.f32 %v3147, %v3164
    %v3169 = vadd.f32 %v3148, %v3164
    %v3170 = vadd.f32 %v3149, %v3164
    %v3171 = vadd.f32 %v3150, %v3164
    %v3172 = vadd.f32 %v3151, %v3164
    %v3173 = vadd.f32 %v3152, %v3164
    %v3174 = vadd.f32 %v3153, %v3164
    %v3175 = vadd.f32 %v3154, %v3164
    %v3176 = vadd.f32 %v3155, %v3164
    %v3177 = vadd.f32 %v3156, %v3164
    %v3178 = vadd.f32 %v3157, %v3164
    %v3179 = vadd.f32 %v3158, %v3164
    %v3180 = vadd.f32 %v3159, %v3164
    %v3181 = vmax.f32 %v3165, 0.0
    %v3182 = vmax.f32 %v3166, 0.0
    %v3183 = vmax.f32 %v3167, 0.0
    %v3184 = vmax.f32 %v3168, 0.0
    %v3185 = vmax.f32 %v3169, 0.0
    %v3186 = vmax.f32 %v3170, 0.0
    %v3187 = vmax.f32 %v3171, 0.0
    %v3188 = vmax.f32 %v3172, 0.0
    %v3189 = vmax.f32 %v3173, 0.0
    %v3190 = vmax.f32 %v3174, 0.0
    %v3191 = vmax.f32 %v3175, 0.0
    %v3192 = vmax.f32 %v3176, 0.0
    %v3193 = vmax.f32 %v3177, 0.0
    %v3194 = vmax.f32 %v3178, 0.0
    %v3195 = vmax.f32 %v3179, 0.0
    %v3196 = vmax.f32 %v3180, 0.0
    %v3197 = vpack.c.bf16 %v3182, %v3181
    %v3198 = vpack.c.bf16 %v3184, %v3183
    %v3199 = vpack.c.bf16 %v3186, %v3185
    %v3200 = vpack.c.bf16 %v3188, %v3187
    %v3201 = vpack.c.bf16 %v3190, %v3189
    %v3202 = vpack.c.bf16 %v3192, %v3191
    %v3203 = vpack.c.bf16 %v3194, %v3193
    %v3204 = vpack.c.bf16 %v3196, %v3195
    %v3205 = vld [vmem:[%s3] sm:$0xf]
    %v3206 = vld [vmem:[%s5 + $0x2] sm:$0x1]
    %v3207 = vlaneseq
    %v3208 = vshrl.u32 %v3207, 7
    %v3209 = vsub.s32 0, %v3208
    %v3210 = vrot.slane %v3206, %v3209
    %vm3211 = vcmask 64512
    %v3213 = vsel %vm3211, %v3197, 0
    %v3216 = vsel %vm3211, %v3198, 0
    %v3219 = vsel %vm3211, %v3199, 0
    %v3222 = vsel %vm3211, %v3200, 0
    %v3225 = vsel %vm3211, %v3201, 0
    %v3228 = vsel %vm3211, %v3202, 0
    %v3231 = vsel %vm3211, %v3203, 0
    %v3234 = vsel %vm3211, %v3204, 0
    %vm3236 = vcmask 1043456
    %v3238 = vsel %vm3236, %v3205, 0
    %3240 = vmatprep.subr.bf16.mxu0 0
    %3241 = vmatpush1.bf16.msra.mxu0 %v3238
    %3242 = vmatprep.subr.bf16.mxu0 0
    %3243 = vmatpush1.bf16.msra.mxu0 0
    %3244 = vmatprep.subr.bf16.mxu0 0
    %3245 = vmatpush1.bf16.msra.mxu0 0
    %3246 = vmatprep.subr.bf16.mxu0 0
    %3247 = vmatpush1.bf16.msra.mxu0 0
    %3248 = vmatprep.subr.bf16.mxu0 0
    %3249 = vmatpush1.bf16.msra.mxu0 0
    %3250 = vmatprep.subr.bf16.mxu0 0
    %3251 = vmatpush1.bf16.msra.mxu0 0
    %3252 = vmatprep.subr.bf16.mxu0 0
    %3253 = vmatpush1.bf16.msra.mxu0 0
    %3254 = vmatprep.subr.bf16.mxu0 0
    %3255 = vmatpush1.bf16.msra.mxu0 0
    %3256 = vmatprep.subr.bf16.mxu0 0
    %3257 = vmatpush1.bf16.msra.mxu0 0
    %3258 = vmatprep.subr.bf16.mxu0 0
    %3259 = vmatpush1.bf16.msra.mxu0 0
    %3260 = vmatprep.subr.bf16.mxu0 0
    %3261 = vmatpush1.bf16.msra.mxu0 0
    %3262 = vmatprep.subr.bf16.mxu0 0
    %3263 = vmatpush1.bf16.msra.mxu0 0
    %3264 = vmatprep.subr.bf16.mxu0 0
    %3265 = vmatpush1.bf16.msra.mxu0 0
    %3266 = vmatprep.subr.bf16.mxu0 0
    %3267 = vmatpush1.bf16.msra.mxu0 0
    %3268 = vmatprep.subr.bf16.mxu0 0
    %3269 = vmatpush1.bf16.msra.mxu0 0
    %3270 = vmatprep.subr.bf16.mxu0 0
    %3271 = vmatpush1.bf16.msra.mxu0 0
    %3272 = vmatprep.mubr.bf16.mxu0 0
    %3273 = vmatmul.mubr.bf16.gmra.mrb[0].mxu0 %v3213
    %v3274 = vpop.f32.mrb[0].mxu0
    %v3275 = vadd.f32 %v3210, %v3274
    %v3276 = vpop.f32.mrb[0].mxu0
    %v3277 = vpop.f32.mrb[0].mxu0
    %v3278 = vadd.f32 %v3210, %v3277
    %v3279 = vpop.f32.mrb[0].mxu0
    %3280 = vmatprep.mubr.bf16.mxu0 0
    %3281 = vmatmul.mubr.bf16.gmra.mrb[0].mxu0 %v3216
    %v3282 = vpop.f32.mrb[0].mxu0
    %v3283 = vadd.f32 %v3210, %v3282
    %v3284 = vpop.f32.mrb[0].mxu0
    %v3285 = vpop.f32.mrb[0].mxu0
    %v3286 = vadd.f32 %v3210, %v3285
    %v3287 = vpop.f32.mrb[0].mxu0
    %3288 = vmatprep.mubr.bf16.mxu0 0
    %3289 = vmatmul.mubr.bf16.gmra.mrb[0].mxu0 %v3219
    %v3290 = vpop.f32.mrb[0].mxu0
    %v3291 = vadd.f32 %v3210, %v3290
    %v3292 = vpop.f32.mrb[0].mxu0
    %v3293 = vpop.f32.mrb[0].mxu0
    %v3294 = vadd.f32 %v3210, %v3293
    %v3295 = vpop.f32.mrb[0].mxu0
    %3296 = vmatprep.mubr.bf16.mxu0 0
    %3297 = vmatmul.mubr.bf16.gmra.mrb[0].mxu0 %v3222
    %v3298 = vpop.f32.mrb[0].mxu0
    %v3299 = vadd.f32 %v3210, %v3298
    %v3300 = vpop.f32.mrb[0].mxu0
    %v3301 = vpop.f32.mrb[0].mxu0
    %v3302 = vadd.f32 %v3210, %v3301
    %v3303 = vpop.f32.mrb[0].mxu0
    %3304 = vmatprep.mubr.bf16.mxu0 0
    %3305 = vmatmul.mubr.bf16.gmra.mrb[0].mxu0 %v3225
    %v3306 = vpop.f32.mrb[0].mxu0
    %v3307 = vadd.f32 %v3210, %v3306
    %v3308 = vpop.f32.mrb[0].mxu0
    %v3309 = vpop.f32.mrb[0].mxu0
    %v3310 = vadd.f32 %v3210, %v3309
    %v3311 = vpop.f32.mrb[0].mxu0
    %3312 = vmatprep.mubr.bf16.mxu0 0
    %3313 = vmatmul.mubr.bf16.gmra.mrb[0].mxu0 %v3228
    %v3314 = vpop.f32.mrb[0].mxu0
    %v3315 = vadd.f32 %v3210, %v3314
    %v3316 = vpop.f32.mrb[0].mxu0
    %v3317 = vpop.f32.mrb[0].mxu0
    %v3318 = vadd.f32 %v3210, %v3317
    %v3319 = vpop.f32.mrb[0].mxu0
    %3320 = vmatprep.mubr.bf16.mxu0 0
    %3321 = vmatmul.mubr.bf16.gmra.mrb[0].mxu0 %v3231
    %v3322 = vpop.f32.mrb[0].mxu0
    %v3323 = vadd.f32 %v3210, %v3322
    %v3324 = vpop.f32.mrb[0].mxu0
    %v3325 = vpop.f32.mrb[0].mxu0
    %v3326 = vadd.f32 %v3210, %v3325
    %v3327 = vpop.f32.mrb[0].mxu0
    %3328 = vmatprep.mubr.bf16.mxu0 0
    %3329 = vmatmul.mubr.bf16.gmra.mrb[0].mxu0 %v3234
    %v3330 = vpop.f32.mrb[0].mxu0
    %v3331 = vadd.f32 %v3210, %v3330
    %v3332 = vpop.f32.mrb[0].mxu0
    %v3333 = vpop.f32.mrb[0].mxu0
    %v3334 = vadd.f32 %v3210, %v3333
    %v3335 = vpop.f32.mrb[0].mxu0
    %3336 = vdwg.mxu0
    %v3337 = vld [vmem:[%s0] sm:$0xff]
    %v3338 = vld [vmem:[%s0 + $0x8] sm:$0xff]
    %v3339 = vld [vmem:[%s0 + $0x10] sm:$0xff]
    %v3340 = vld [vmem:[%s0 + $0x18] sm:$0xff]
    %v3341 = vld [vmem:[%s0 + $0x20] sm:$0xff]
    %v3342 = vld [vmem:[%s0 + $0x28] sm:$0xff]
    %v3343 = vld [vmem:[%s0 + $0x30] sm:$0xff]
    %v3344 = vld [vmem:[%s0 + $0x38] sm:$0xff]
    %v3345 = vld [vmem:[%s0 + $0x40] sm:$0xff]
    %v3346 = vld [vmem:[%s0 + $0x48] sm:$0xff]
    %v3347 = vld [vmem:[%s0 + $0x50] sm:$0xff]
    %v3348 = vld [vmem:[%s0 + $0x58] sm:$0xff]
    %v3349 = vld [vmem:[%s0 + $0x60] sm:$0xff]
    %v3350 = vld [vmem:[%s0 + $0x68] sm:$0xff]
    %v3351 = vld [vmem:[%s0 + $0x70] sm:$0xff]
    %v3352 = vld [vmem:[%s0 + $0x78] sm:$0xff]
    %v3353 = vpack.c.bf16 %v3338, %v3337
    %v3354 = vpack.c.bf16 %v3340, %v3339
    %v3355 = vpack.c.bf16 %v3342, %v3341
    %v3356 = vpack.c.bf16 %v3344, %v3343
    %v3357 = vpack.c.bf16 %v3346, %v3345
    %v3358 = vpack.c.bf16 %v3348, %v3347
    %v3359 = vpack.c.bf16 %v3350, %v3349
    %v3360 = vpack.c.bf16 %v3352, %v3351
    %v3361 = vld [vmem:[%s4] sm:$0xf]
    %v3362 = vld [vmem:[%s4 + $0x4] sm:$0xf]
    %v3363 = vld [vmem:[%s5 + $0x3] sm:$0x1]
    %v3364 = vlaneseq
    %v3365 = vshrl.u32 %v3364, 7
    %v3366 = vsub.s32 0, %v3365
    %v3367 = vrot.slane %v3363, %v3366
    %v3370 = vunpack.c.l.b16 %v3361
    %v3371 = vunpack.c.l.b16 %v3362
    %v3372 = vpack.c.b16 %v3371, %v3370
    %v3375 = vsel %vm62, %v3353, 0
    %v3378 = vsel %vm62, %v3354, 0
    %v3381 = vsel %vm62, %v3355, 0
    %v3384 = vsel %vm62, %v3356, 0
    %v3387 = vsel %vm62, %v3357, 0
    %v3390 = vsel %vm62, %v3358, 0
    %v3393 = vsel %vm62, %v3359, 0
    %v3396 = vsel %vm62, %v3360, 0
    %3398 = vmatprep.subr.bf16.mxu0 0
    %3399 = vmatpush1.bf16.msra.mxu0 %v3372
    %3400 = vmatprep.subr.bf16.mxu0 0
    %3401 = vmatpush1.bf16.msra.mxu0 0
    %3402 = vmatprep.subr.bf16.mxu0 0
    %3403 = vmatpush1.bf16.msra.mxu0 0
    %3404 = vmatprep.subr.bf16.mxu0 0
    %3405 = vmatpush1.bf16.msra.mxu0 0
    %3406 = vmatprep.subr.bf16.mxu0 0
    %3407 = vmatpush1.bf16.msra.mxu0 0
    %3408 = vmatprep.subr.bf16.mxu0 0
    %3409 = vmatpush1.bf16.msra.mxu0 0
    %3410 = vmatprep.subr.bf16.mxu0 0
    %3411 = vmatpush1.bf16.msra.mxu0 0
    %3412 = vmatprep.subr.bf16.mxu0 0
    %3413 = vmatpush1.bf16.msra.mxu0 0
    %3414 = vmatprep.subr.bf16.mxu0 0
    %3415 = vmatpush1.bf16.msra.mxu0 0
    %3416 = vmatprep.subr.bf16.mxu0 0
    %3417 = vmatpush1.bf16.msra.mxu0 0
    %3418 = vmatprep.subr.bf16.mxu0 0
    %3419 = vmatpush1.bf16.msra.mxu0 0
    %3420 = vmatprep.subr.bf16.mxu0 0
    %3421 = vmatpush1.bf16.msra.mxu0 0
    %3422 = vmatprep.subr.bf16.mxu0 0
    %3423 = vmatpush1.bf16.msra.mxu0 0
    %3424 = vmatprep.subr.bf16.mxu0 0
    %3425 = vmatpush1.bf16.msra.mxu0 0
    %3426 = vmatprep.subr.bf16.mxu0 0
    %3427 = vmatpush1.bf16.msra.mxu0 0
    %3428 = vmatprep.subr.bf16.mxu0 0
    %3429 = vmatpush1.bf16.msra.mxu0 0
    %3430 = vmatprep.mubr.bf16.mxu0 0
    %3431 = vmatmul.mubr.bf16.gmra.mrb[0].mxu0 %v3375
    %v3432 = vpop.f32.mrb[0].mxu0
    %v3433 = vadd.f32 %v3367, %v3432
    %v3434 = vpop.f32.mrb[0].mxu0
    %v3435 = vpop.f32.mrb[0].mxu0
    %v3436 = vadd.f32 %v3367, %v3435
    %v3437 = vpop.f32.mrb[0].mxu0
    %3438 = vmatprep.mubr.bf16.mxu0 0
    %3439 = vmatmul.mubr.bf16.gmra.mrb[0].mxu0 %v3378
    %v3440 = vpop.f32.mrb[0].mxu0
    %v3441 = vadd.f32 %v3367, %v3440
    %v3442 = vpop.f32.mrb[0].mxu0
    %v3443 = vpop.f32.mrb[0].mxu0
    %v3444 = vadd.f32 %v3367, %v3443
    %v3445 = vpop.f32.mrb[0].mxu0
    %3446 = vmatprep.mubr.bf16.mxu0 0
    %3447 = vmatmul.mubr.bf16.gmra.mrb[0].mxu0 %v3381
    %v3448 = vpop.f32.mrb[0].mxu0
    %v3449 = vadd.f32 %v3367, %v3448
    %v3450 = vpop.f32.mrb[0].mxu0
    %v3451 = vpop.f32.mrb[0].mxu0
    %v3452 = vadd.f32 %v3367, %v3451
    %v3453 = vpop.f32.mrb[0].mxu0
    %3454 = vmatprep.mubr.bf16.mxu0 0
    %3455 = vmatmul.mubr.bf16.gmra.mrb[0].mxu0 %v3384
    %v3456 = vpop.f32.mrb[0].mxu0
    %v3457 = vadd.f32 %v3367, %v3456
    %v3458 = vpop.f32.mrb[0].mxu0
    %v3459 = vpop.f32.mrb[0].mxu0
    %v3460 = vadd.f32 %v3367, %v3459
    %v3461 = vpop.f32.mrb[0].mxu0
    %3462 = vmatprep.mubr.bf16.mxu0 0
    %3463 = vmatmul.mubr.bf16.gmra.mrb[0].mxu0 %v3387
    %v3464 = vpop.f32.mrb[0].mxu0
    %v3465 = vadd.f32 %v3367, %v3464
    %v3466 = vpop.f32.mrb[0].mxu0
    %v3467 = vpop.f32.mrb[0].mxu0
    %v3468 = vadd.f32 %v3367, %v3467
    %v3469 = vpop.f32.mrb[0].mxu0
    %3470 = vmatprep.mubr.bf16.mxu0 0
    %3471 = vmatmul.mubr.bf16.gmra.mrb[0].mxu0 %v3390
    %v3472 = vpop.f32.mrb[0].mxu0
    %v3473 = vadd.f32 %v3367, %v3472
    %v3474 = vpop.f32.mrb[0].mxu0
    %v3475 = vpop.f32.mrb[0].mxu0
    %v3476 = vadd.f32 %v3367, %v3475
    %v3477 = vpop.f32.mrb[0].mxu0
    %3478 = vmatprep.mubr.bf16.mxu0 0
    %3479 = vmatmul.mubr.bf16.gmra.mrb[0].mxu0 %v3393
    %v3480 = vpop.f32.mrb[0].mxu0
    %v3481 = vadd.f32 %v3367, %v3480
    %v3482 = vpop.f32.mrb[0].mxu0
    %v3483 = vpop.f32.mrb[0].mxu0
    %v3484 = vadd.f32 %v3367, %v3483
    %v3485 = vpop.f32.mrb[0].mxu0
    %3486 = vmatprep.mubr.bf16.mxu0 0
    %3487 = vmatmul.mubr.bf16.gmra.mrb[0].mxu0 %v3396
    %v3488 = vpop.f32.mrb[0].mxu0
    %v3489 = vadd.f32 %v3367, %v3488
    %v3490 = vpop.f32.mrb[0].mxu0
    %v3491 = vpop.f32.mrb[0].mxu0
    %v3492 = vadd.f32 %v3367, %v3491
    %v3493 = vpop.f32.mrb[0].mxu0
    %3494 = vdwg.mxu0
    %v3495 = vadd.f32 %v3275, %v3433
    %v3496 = vadd.f32 %v3278, %v3436
    %v3497 = vadd.f32 %v3283, %v3441
    %v3498 = vadd.f32 %v3286, %v3444
    %v3499 = vadd.f32 %v3291, %v3449
    %v3500 = vadd.f32 %v3294, %v3452
    %v3501 = vadd.f32 %v3299, %v3457
    %v3502 = vadd.f32 %v3302, %v3460
    %v3503 = vadd.f32 %v3307, %v3465
    %v3504 = vadd.f32 %v3310, %v3468
    %v3505 = vadd.f32 %v3315, %v3473
    %v3506 = vadd.f32 %v3318, %v3476
    %v3507 = vadd.f32 %v3323, %v3481
    %v3508 = vadd.f32 %v3326, %v3484
    %v3509 = vadd.f32 %v3331, %v3489
    %v3510 = vadd.f32 %v3334, %v3492
    %v3511 = vmax.f32 %v3495, 0.0
    %v3512 = vmax.f32 %v3496, 0.0
    %v3513 = vmax.f32 %v3497, 0.0
    %v3514 = vmax.f32 %v3498, 0.0
    %v3515 = vmax.f32 %v3499, 0.0
    %v3516 = vmax.f32 %v3500, 0.0
    %v3517 = vmax.f32 %v3501, 0.0
    %v3518 = vmax.f32 %v3502, 0.0
    %v3519 = vmax.f32 %v3503, 0.0
    %v3520 = vmax.f32 %v3504, 0.0
    %v3521 = vmax.f32 %v3505, 0.0
    %v3522 = vmax.f32 %v3506, 0.0
    %v3523 = vmax.f32 %v3507, 0.0
    %v3524 = vmax.f32 %v3508, 0.0
    %v3525 = vmax.f32 %v3509, 0.0
    %v3526 = vmax.f32 %v3510, 0.0
    %v3527 = vpack.c.bf16 %v3512, %v3511
    %v3528 = vpack.c.bf16 %v3514, %v3513
    %v3529 = vpack.c.bf16 %v3516, %v3515
    %v3530 = vpack.c.bf16 %v3518, %v3517
    %v3531 = vpack.c.bf16 %v3520, %v3519
    %v3532 = vpack.c.bf16 %v3522, %v3521
    %v3533 = vpack.c.bf16 %v3524, %v3523
    %v3534 = vpack.c.bf16 %v3526, %v3525
    %v3543 = vunpack.c.l.b16 %v3527
    %v3544 = vunpack.c.h.b16 %v3527
    %v3545 = vunpack.c.l.b16 %v3528
    %v3546 = vunpack.c.h.b16 %v3528
    %v3547 = vunpack.c.l.b16 %v3529
    %v3548 = vunpack.c.h.b16 %v3529
    %v3549 = vunpack.c.l.b16 %v3530
    %v3550 = vunpack.c.h.b16 %v3530
    %v3551 = vunpack.c.l.b16 %v3531
    %v3552 = vunpack.c.h.b16 %v3531
    %v3553 = vunpack.c.l.b16 %v3532
    %v3554 = vunpack.c.h.b16 %v3532
    %v3555 = vunpack.c.l.b16 %v3533
    %v3556 = vunpack.c.h.b16 %v3533
    %v3557 = vunpack.c.l.b16 %v3534
    %v3558 = vunpack.c.h.b16 %v3534
    %v3559 = vpack.c.b16 %v3543, %v3543
    %v3560 = vpack.c.b16 %v3544, %v3544
    %v3561 = vpack.c.b16 %v3545, %v3545
    %v3562 = vpack.c.b16 %v3546, %v3546
    %v3563 = vpack.c.b16 %v3547, %v3547
    %v3564 = vpack.c.b16 %v3548, %v3548
    %v3565 = vpack.c.b16 %v3549, %v3549
    %v3566 = vpack.c.b16 %v3550, %v3550
    %v3567 = vpack.c.b16 %v3551, %v3551
    %v3568 = vpack.c.b16 %v3552, %v3552
    %v3569 = vpack.c.b16 %v3553, %v3553
    %v3570 = vpack.c.b16 %v3554, %v3554
    %v3571 = vpack.c.b16 %v3555, %v3555
    %v3572 = vpack.c.b16 %v3556, %v3556
    %v3573 = vpack.c.b16 %v3557, %v3557
    %v3574 = vpack.c.b16 %v3558, %v3558
    %vm3591 = vcmask 257024
    %3592 = vst.msk [vmem:[#allocation3] sm:$0xf] %vm3591, %v3559
    %3593 = vst.msk [vmem:[#allocation3 + $0x4] sm:$0xf] %vm3591, %v3560
    %3594 = vst.msk [vmem:[#allocation3 + $0x8] sm:$0xf] %vm3591, %v3561
    %3595 = vst.msk [vmem:[#allocation3 + $0xc] sm:$0xf] %vm3591, %v3562
    %3596 = vst.msk [vmem:[#allocation3 + $0x10] sm:$0xf] %vm3591, %v3563
    %3597 = vst.msk [vmem:[#allocation3 + $0x14] sm:$0xf] %vm3591, %v3564
    %3598 = vst.msk [vmem:[#allocation3 + $0x18] sm:$0xf] %vm3591, %v3565
    %3599 = vst.msk [vmem:[#allocation3 + $0x1c] sm:$0xf] %vm3591, %v3566
    %3600 = vst.msk [vmem:[#allocation3 + $0x20] sm:$0xf] %vm3591, %v3567
    %3601 = vst.msk [vmem:[#allocation3 + $0x24] sm:$0xf] %vm3591, %v3568
    %3602 = vst.msk [vmem:[#allocation3 + $0x28] sm:$0xf] %vm3591, %v3569
    %3603 = vst.msk [vmem:[#allocation3 + $0x2c] sm:$0xf] %vm3591, %v3570
    %3604 = vst.msk [vmem:[#allocation3 + $0x30] sm:$0xf] %vm3591, %v3571
    %3605 = vst.msk [vmem:[#allocation3 + $0x34] sm:$0xf] %vm3591, %v3572
    %3606 = vst.msk [vmem:[#allocation3 + $0x38] sm:$0xf] %vm3591, %v3573
    %3607 = vst.msk [vmem:[#allocation3 + $0x3c] sm:$0xf] %vm3591, %v3574
    // Predicated region
    $region26: #{bottleneck_forward.1} parent=1 // pred_check
      _
    $region27: #{bottleneck_forward.1} parent=1 // pred_check_branch
      %3609 = sbr.rel (0) target = $region29
    $region28: #{bottleneck_forward.1} parent=1 // pred_region
      %s3611 = ssub.s32 1024, 1024
      %3612 = vsyncadd [#allocation4], %s3611
      %s3613 = sshll.u32 [#allocation3], 4
      %s3614 = int_to_ptr.vmem [resolvable:$true] %s3613
      %3619 = dma.vmem_to_hbm [thread:$0]  %s3614, 1024, %s6, [#allocation4], 64, 64, 4
    $region29: #{bottleneck_forward.1} parent=1 // pred_fallthru
      _
    // Predicated region
    $region30: #{bottleneck_forward.1} parent=1 // pred_check
      _
    $region31: #{bottleneck_forward.1} parent=1 // pred_check_branch
      %3621 = sbr.rel (0) target = $region33
    $region32: #{bottleneck_forward.1} parent=1 // pred_region
      %3622 = dma.done [#allocation4], 1024
    $region33: #{bottleneck_forward.1} parent=1 // pred_fallthru
      _
    %3623 = vsyncpa [#allocation4], 1

</llo_original>
